<compile_context>
chip_gen: v7x
topology: tpu7x:2x2x1
jax: 0.10.0
libtpu: 0.0.40
codegen_flags: <defaults>
</compile_context>

<pallas_src>
import functools
import math
import struct

import jax
import jax.numpy as jnp
from jax import lax
from jax.experimental import pallas as pl
from jax.experimental.pallas import tpu as pltpu

LARGE_NUMBER = 1.0e9          # same constant as the PyTorch module
_SMALL_K_MAX = 16             # k_top <= this -> O(k) remove-max beats the 31-pass search


def _f32_sort_key_const(x):
    """Monotone int32 key of an f32 value (same transform as used in-kernel)."""
    b = struct.unpack("<i", struct.pack("<f", float(x)))[0]
    return (b ^ 0x7FFFFFFF) if b < 0 else b


# Cosine similarities of L2-normalized vectors live in ~[-1, 1]; bounding the key-space
# search to [-1.5, 1.5] keeps (hi - lo + 1) < 2**31 so the int32 midpoint never overflows.
_KEY_LO = _f32_sort_key_const(-1.5)
_KEY_HI = _f32_sort_key_const(1.5)
_BSEARCH_ITERS = 31           # exact: ceil(log2(_KEY_HI - _KEY_LO + 1)) == 31


def _ntxent_kernel(zrow_ref, zT_ref, zcrow_ref, zcT_ref, nlp_ref, acc_ref, *,
                   half, k_top, small_k):
    tm = zrow_ref.shape[0]
    n = zT_ref.shape[1]
    row0 = pl.multiple_of(pl.program_id(0) * tm, tm)

    # (TM, N) similarity blocks.  The column operands were transposed once in the wrapper,
    # so these are canonical (TM, K) x (K, N) contractions with f32 accumulation.
    logits = jnp.dot(zrow_ref[...], zT_ref[...], preferred_element_type=jnp.float32)
    sim_clip = jnp.dot(zcrow_ref[...], zcT_ref[...], preferred_element_type=jnp.float32)

    col = lax.broadcasted_iota(jnp.int32, (tm, n), 1)
    rowg = row0 + lax.broadcasted_iota(jnp.int32, (tm, 1), 0)        # global row index
    label_col = rowg + half
    label_col = jnp.where(label_col >= n, label_col - n, label_col)  # (i + n/2) % n
    pos = col == label_col                                           # positive-pair column

    logits = jnp.where(col == rowg, -LARGE_NUMBER, logits)           # mask the diagonal
    # Exactly one positive per row (multiplier == 2): extract its logit directly, the full
    # logprob matrix is never materialized.
    pos_logit = jnp.sum(jnp.where(pos, logits, 0.0), axis=1, keepdims=True)   # (TM, 1)

    # ---- per-row k-th largest CLIP similarity == torch.topk(sim_clip, k).values[:, -1] ----
    if k_top == 1:
        dup = sim_clip >= jnp.max(sim_clip, axis=1, keepdims=True)
    elif small_k:
        # Small-k fast path: unrolled O(k) remove-max.  Each step removes exactly one
        # occurrence (the first column) of the current row max, so ties are handled exactly
        # like topk; after k-1 removals the remaining row max is the k-th largest value.
        s = sim_clip
        for _ in range(k_top - 1):
            mx = jnp.max(s, axis=1, keepdims=True)
            first = jnp.min(jnp.where(s == mx, col, n), axis=1, keepdims=True)
            s = jnp.where(col == first, -jnp.inf, s)
        dup = sim_clip >= jnp.max(s, axis=1, keepdims=True)
    else:
        # Exact 31-step binary search on the monotone int32 key of the f32 bit pattern.
        # Fully unrolled (static Python loop) so each iteration's cmp/cast/reduce chain can
        # overlap the next iteration's key loads.  The final compare stays in key space so
        # sim_clip goes dead here (one live (TM,N) matrix instead of two).
        bits = pltpu.bitcast(sim_clip, jnp.int32)
        key = jnp.where(bits < 0, bits ^ jnp.int32(0x7FFFFFFF), bits)
        # TODO(synk): NaN sim_clip entries map above _KEY_HI and are treated as "largest",
        # which differs from torch.topk NaN handling; fine for finite inputs.
        lo = jnp.full((tm, 1), _KEY_LO, jnp.int32)
        hi = jnp.full((tm, 1), _KEY_HI, jnp.int32)
        for _ in range(_BSEARCH_ITERS):
            mid = lo + (hi - lo + 1) // 2
            cnt = jnp.sum((key >= mid).astype(jnp.int32), axis=1, keepdims=True)
            ok = cnt >= k_top
            lo = jnp.where(ok, mid, lo)
            hi = jnp.where(ok, hi, mid - 1)
        dup = key >= lo                                   # == (sim_clip >= k-th largest)

    # Near-duplicate masking; positives always kept; diagonal is already -LARGE either way.
    final = jnp.where(pos | jnp.logical_not(dup), logits, -LARGE_NUMBER)

    # ---- row-wise log-softmax statistics (logprob never materialized) ----
    row_max = jnp.max(final, axis=1, keepdims=True)
    lse = row_max + jnp.log(jnp.sum(jnp.exp(final - row_max), axis=1, keepdims=True))
    nlp_ref[...] = lse - pos_logit                        # per-row -logprob[i, labels[i]]

    # ---- top-1 accuracy: argmax(logprob) == argmax(final); reuse row_max, first-match ties.
    amax = jnp.min(jnp.where(final == row_max, col, n), axis=1, keepdims=True)
    acc_ref[...] = (amax == label_col).astype(jnp.float32)


def _l2_normalize(x):
    # F.normalize(x, p=2, dim=1): x / max(||x||_2, 1e-12), computed in f32 (wrapper-side).
    x = x.astype(jnp.float32)
    nrm = jnp.sqrt(jnp.sum(x * x, axis=1, keepdims=True))
    return x / jnp.maximum(nrm, 1e-12)


def _vmem_capacity_bytes():
    try:
        return int(pltpu.get_tpu_info().vmem_capacity_bytes)
    except Exception:
        return 64 * 1024 * 1024        # conservative (v7x per-core) fallback


def _estimate_vmem_bytes(n, d, dc, tm, itemsize):
    resident = 2 * itemsize * n * (d + dc)       # z^T / z_clip^T windows (assume 2 buffers)
    row_tiles = 2 * itemsize * tm * (d + dc)     # double-buffered (tm,d)/(tm,dc) row tiles
    working = 14 * 4 * tm * n                    # live (TM,N) f32/i32 temporaries
    return resident + row_tiles + working


def _pick_block_rows(n, d, dc, itemsize, budget_bytes):
    if n % 8 != 0:
        return n                                  # tiny / odd batch: single full block
    for tm in (1024, 512, 256, 128, 64, 32, 16, 8):
        if n % tm == 0 and _estimate_vmem_bytes(n, d, dc, tm, itemsize) <= budget_bytes:
            return tm
    return 8


def _make_call(kernel, n, d, dc, tm, vmem_limit, dim_sem, single_buffer_residents):
    def resident_spec(shape):
        if single_buffer_residents:
            # Constant index_map => the window never changes; one buffer suffices (halves
            # the resident VMEM footprint, the key enabler on v7x's 64 MiB).
            return pl.BlockSpec(shape, lambda i: (0, 0), pipeline_mode=pl.Buffered(1))
        return pl.BlockSpec(shape, lambda i: (0, 0))

    return pl.pallas_call(
        kernel,
        out_shape=(
            jax.ShapeDtypeStruct((n, 1), jnp.float32),   # per-row -logprob at the positive
            jax.ShapeDtypeStruct((n, 1), jnp.float32),   # per-row top-1 accuracy
        ),
        grid=(n // tm,),
        in_specs=[
            pl.BlockSpec((tm, d), lambda i: (i, 0)),     # normalized z, row tile
            resident_spec((d, n)),                       # normalized z^T, resident columns
            pl.BlockSpec((tm, dc), lambda i: (i, 0)),    # normalized z_clip, row tile
            resident_spec((dc, n)),                      # normalized z_clip^T, resident
        ],
        out_specs=(
            pl.BlockSpec((tm, 1), lambda i: (i, 0)),
            pl.BlockSpec((tm, 1), lambda i: (i, 0)),
        ),
        compiler_params=pltpu.CompilerParams(
            dimension_semantics=dim_sem,
            vmem_limit_bytes=vmem_limit,
        ),
    )


def ntxent_dfn_loss(z, z_clip, *, tau=1.0, multiplier=2, d_ratio=0.05, norm=1.0,
                    block_rows=None, use_bf16_matmul=True, core_parallel=False):
    """Forward pass of NTXent_dfn (distributed=False, get_map=False)."""
    # TODO(synk): distributed all_gather branch (torch.distributed / diffdist) not implemented.
    # TODO(synk): get_map / mean_average_precision branch not implemented (default False).
    n, d = z.shape
    dc = z_clip.shape[1]
    assert n % multiplier == 0
    assert multiplier == 2, "kernel is specialized for the default multiplier=2"
    k_top = int(n * d_ratio)
    assert k_top >= 1, "need int(n * d_ratio) >= 1, exactly as the PyTorch module requires"
    half = n // multiplier

    matmul_dtype = jnp.bfloat16 if use_bf16_matmul else jnp.float32
    itemsize = 2 if use_bf16_matmul else 4

    # Generation-aware VMEM budget: leave 16 MiB headroom for compiler-internal scratch and
    # cap at 3/4 of physical VMEM (v7x: 48 MiB scoped, v5e/v6e: 96 MiB scoped).
    cap = _vmem_capacity_bytes()
    usable = min(cap - 16 * 1024 * 1024, (3 * cap) // 4)
    tm = block_rows if block_rows is not None else _pick_block_rows(
        n, d, dc, itemsize, int(0.9 * usable))
    assert n % tm == 0 and (tm % 8 == 0 or tm == n), "row tile must divide N (and be 8-aligned)"
    vmem_limit = int(max(usable, 32 * 1024 * 1024))

    # Normalize / scale / cast ONCE in the wrapper (hoisted out of the per-step kernel), and
    # pre-transpose the resident column operands so the kernel does canonical contractions.
    zn = (_l2_normalize(z) * jnp.float32(1.0 / math.sqrt(tau))).astype(matmul_dtype)
    zcn = _l2_normalize(z_clip).astype(matmul_dtype)
    znT = zn.T
    zcnT = zcn.T

    kernel = functools.partial(_ntxent_kernel, half=half, k_top=k_top,
                               small_k=(k_top <= _SMALL_K_MAX))
    dim_sem = (pltpu.CORE_PARALLEL,) if core_parallel else ("parallel",)
    call_kwargs = dict(kernel=kernel, n=n, d=d, dc=dc, tm=tm,
                       vmem_limit=vmem_limit, dim_sem=dim_sem)

    try:
        nlp, acc = _make_call(single_buffer_residents=True, **call_kwargs)(zn, znT, zcn, zcnT)
    except Exception:
        # pl.Buffered(1) unsupported on this jax/Mosaic version: fall back to default
        # double-buffered resident operands (costs one extra copy of z^T / z_clip^T in VMEM).
        nlp, acc = _make_call(single_buffer_residents=False, **call_kwargs)(zn, znT, zcn, zcnT)

    loss = jnp.sum(nlp[:, 0]) / (n * (multiplier - 1) * norm)
    return loss, acc[:, 0]


def _reference(z, z_clip, tau=1.0, multiplier=2, d_ratio=0.05, norm=1.0):
    """Pure-JAX transcription of the PyTorch forward (for verification)."""
    n, _ = z.shape
    m = multiplier
    hp = lax.Precision.HIGHEST
    zn = z / jnp.maximum(jnp.linalg.norm(z, axis=1, keepdims=True), 1e-12)
    zn = zn / jnp.sqrt(tau)
    logits = jnp.dot(zn, zn.T, precision=hp)
    logits = logits.at[jnp.arange(n), jnp.arange(n)].set(-LARGE_NUMBER)
    labels = (jnp.repeat(jnp.arange(n), m) + jnp.tile(jnp.arange(m) * n // m, n)) % n
    labels = labels.reshape(n, m)[:, 1:].reshape(-1)
    zc = z_clip / jnp.maximum(jnp.linalg.norm(z_clip, axis=1, keepdims=True), 1e-12)
    sim_clip = jnp.dot(zc, zc.T, precision=hp)
    k = int(n * d_ratio)
    thr = jax.lax.top_k(sim_clip, k)[0][:, -1:]
    rows = jnp.repeat(jnp.arange(n), m - 1)
    logits2 = jnp.where(sim_clip < thr, logits, -LARGE_NUMBER)
    logits2 = logits2.at[rows, labels].set(logits[rows, labels])
    logprob = jax.nn.log_softmax(logits2, axis=1)
    loss = -logprob[rows, labels].sum() / n / (m - 1) / norm
    pred = logprob.at[jnp.arange(n), jnp.arange(n)].set(-LARGE_NUMBER)
    acc = (jnp.argmax(pred, axis=1) == labels).astype(jnp.float32)
    return loss, acc


if __name__ == "__main__":
    key = jax.random.PRNGKey(0)
    k1, k2 = jax.random.split(key)
    # Small shapes: batch 128 (k_top = 6 exercises the small-k remove-max path),
    # feature dim 64, CLIP feature dim 32.
    n, d, dc = 128, 64, 32
    z = jax.random.normal(k1, (n, d), dtype=jnp.float32)
    z_clip = jax.random.normal(k2, (n, dc), dtype=jnp.float32)

    # f32 parity path, 2 row tiles, small-k selection (k_top = 6).
    loss, acc = ntxent_dfn_loss(z, z_clip, block_rows=64, use_bf16_matmul=False)
    jax.block_until_ready((loss, acc))
    ref_loss, ref_acc = _reference(z, z_clip)
    assert jnp.allclose(loss, ref_loss, rtol=1e-3, atol=1e-3), (loss, ref_loss)
    assert int(jnp.sum(acc != ref_acc)) <= 1, "per-row accuracy mismatch"

    # Binary-search selection path (d_ratio=0.25 -> k_top = 32 > small-k cutoff), auto tiles.
    loss_bs, acc_bs = ntxent_dfn_loss(z, z_clip, d_ratio=0.25, use_bf16_matmul=False)
    jax.block_until_ready((loss_bs, acc_bs))
    ref_loss_bs, ref_acc_bs = _reference(z, z_clip, d_ratio=0.25)
    assert jnp.allclose(loss_bs, ref_loss_bs, rtol=1e-3, atol=1e-3), (loss_bs, ref_loss_bs)
    assert int(jnp.sum(acc_bs != ref_acc_bs)) <= 1, "per-row accuracy mismatch (bsearch path)"

    # Default throughput path: bf16 MXU operands (f32 accumulate, f32 masking/softmax).
    # Looser tolerance because bf16 similarities can shift duplicate-threshold / argmax ties.
    loss_bf16, acc_bf16 = ntxent_dfn_loss(z, z_clip)
    jax.block_until_ready((loss_bf16, acc_bf16))
    assert jnp.allclose(loss_bf16, ref_loss, rtol=5e-2, atol=5e-2), (loss_bf16, ref_loss)

    print("KERNEL_OK")
</pallas_src>

<mosaic_0001>
module attributes {stable_mosaic.version = 11 : i64} {
  func.func @_ntxent_kernel(%arg0: i32, %arg1: memref<64x64xf32, #tpu.memory_space<vmem>>, %arg2: memref<64x128xf32, #tpu.memory_space<vmem>>, %arg3: memref<64x32xf32, #tpu.memory_space<vmem>>, %arg4: memref<32x128xf32, #tpu.memory_space<vmem>>, %arg5: memref<64x1xf32, #tpu.memory_space<vmem>>, %arg6: memref<64x1xf32, #tpu.memory_space<vmem>>) attributes {dimension_semantics = [#tpu.dimension_semantics<parallel>], iteration_bounds = array<i64: 2>, scalar_prefetch = 0 : i64, scratch_operands = 0 : i64, tpu.core_type = #tpu.core_type<tc>, window_params = [{transform_indices = @transform_0, window_bounds = array<i64: 64, 64>}, {pipeline_mode = #tpu.pipeline_mode<synchronous>, transform_indices = @transform_1, window_bounds = array<i64: 64, 128>}, {transform_indices = @transform_2, window_bounds = array<i64: 64, 32>}, {pipeline_mode = #tpu.pipeline_mode<synchronous>, transform_indices = @transform_3, window_bounds = array<i64: 32, 128>}, {transform_indices = @transform_4, window_bounds = array<i64: 64, 1>}, {transform_indices = @transform_5, window_bounds = array<i64: 64, 1>}]} {
    %c64_i32 = arith.constant 64 : i32
    %0 = arith.muli %arg0, %c64_i32 : i32
    %1 = tpu.assume_multiple %0, 64 : i32
    %c0 = arith.constant 0 : index
    %c0_0 = arith.constant 0 : index
    %2 = vector.load %arg1[%c0, %c0_0] : memref<64x64xf32, #tpu.memory_space<vmem>>, vector<64x64xf32>
    %c0_1 = arith.constant 0 : index
    %c0_2 = arith.constant 0 : index
    %3 = vector.load %arg2[%c0_1, %c0_2] : memref<64x128xf32, #tpu.memory_space<vmem>>, vector<64x128xf32>
    %cst = arith.constant dense<0.000000e+00> : vector<64x128xf32>
    %4 = tpu.matmul %2, %3, %cst {dimension_numbers = #tpu.dot_dimension_numbers<[1], [0], [0], [1], [0, 0, 1, 1], [], []>} : vector<64x64xf32>, vector<64x128xf32>, vector<64x128xf32> -> vector<64x128xf32>
    %c0_3 = arith.constant 0 : index
    %c0_4 = arith.constant 0 : index
    %5 = vector.load %arg3[%c0_3, %c0_4] : memref<64x32xf32, #tpu.memory_space<vmem>>, vector<64x32xf32>
    %c0_5 = arith.constant 0 : index
    %c0_6 = arith.constant 0 : index
    %6 = vector.load %arg4[%c0_5, %c0_6] : memref<32x128xf32, #tpu.memory_space<vmem>>, vector<32x128xf32>
    %cst_7 = arith.constant dense<0.000000e+00> : vector<64x128xf32>
    %7 = tpu.matmul %5, %6, %cst_7 {dimension_numbers = #tpu.dot_dimension_numbers<[1], [0], [0], [1], [0, 0, 1, 1], [], []>} : vector<64x32xf32>, vector<32x128xf32>, vector<64x128xf32> -> vector<64x128xf32>
    %8 = tpu.iota {dimensions = array<i32: 1>} : vector<64x128xi32>
    %9 = tpu.iota {dimensions = array<i32: 0>} : vector<64x1xi32>
    %10 = vector.broadcast %1 : i32 to vector<64x1xi32>
    %11 = arith.addi %10, %9 : vector<64x1xi32>
    %c64_i32_8 = arith.constant 64 : i32
    %12 = vector.broadcast %c64_i32_8 : i32 to vector<64x1xi32>
    %13 = arith.addi %11, %12 : vector<64x1xi32>
    %c128_i32 = arith.constant 128 : i32
    %14 = vector.broadcast %c128_i32 : i32 to vector<64x1xi32>
    %15 = arith.cmpi sge, %13, %14 : vector<64x1xi32>
    %c128_i32_9 = arith.constant 128 : i32
    %16 = vector.broadcast %c128_i32_9 : i32 to vector<64x1xi32>
    %17 = arith.subi %13, %16 : vector<64x1xi32>
    %18 = arith.select %15, %17, %13 : vector<64x1xi1>, vector<64x1xi32>
    %19 = vector.broadcast %18 : vector<64x1xi32> to vector<64x128xi32>
    %20 = arith.cmpi eq, %8, %19 : vector<64x128xi32>
    %21 = vector.broadcast %11 : vector<64x1xi32> to vector<64x128xi32>
    %22 = arith.cmpi eq, %8, %21 : vector<64x128xi32>
    %cst_10 = arith.constant -1.000000e+09 : f32
    %23 = vector.broadcast %cst_10 : f32 to vector<64x128xf32>
    %24 = arith.select %22, %23, %4 : vector<64x128xi1>, vector<64x128xf32>
    %cst_11 = arith.constant 0.000000e+00 : f32
    %25 = vector.broadcast %cst_11 : f32 to vector<64x128xf32>
    %26 = arith.select %20, %24, %25 : vector<64x128xi1>, vector<64x128xf32>
    %cst_12 = arith.constant dense<0.000000e+00> : vector<64xf32>
    %27 = vector.multi_reduction <add>, %26, %cst_12 [1] : vector<64x128xf32> to vector<64xf32>
    %28 = vector.shape_cast %27 : vector<64xf32> to vector<64x1xf32>
    %cst_13 = arith.constant dense<0xFF800000> : vector<64xf32>
    %29 = vector.multi_reduction <maximumf>, %7, %cst_13 [1] : vector<64x128xf32> to vector<64xf32>
    %30 = vector.shape_cast %29 : vector<64xf32> to vector<64x1xf32>
    %31 = vector.broadcast %30 : vector<64x1xf32> to vector<64x128xf32>
    %32 = arith.cmpf oeq, %7, %31 : vector<64x128xf32>
    %c128_i32_14 = arith.constant 128 : i32
    %33 = vector.broadcast %c128_i32_14 : i32 to vector<64x128xi32>
    %34 = arith.select %32, %8, %33 : vector<64x128xi1>, vector<64x128xi32>
    %cst_15 = arith.constant dense<2147483647> : vector<64xi32>
    %35 = vector.multi_reduction <minsi>, %34, %cst_15 [1] : vector<64x128xi32> to vector<64xi32>
    %36 = vector.shape_cast %35 : vector<64xi32> to vector<64x1xi32>
    %37 = vector.broadcast %36 : vector<64x1xi32> to vector<64x128xi32>
    %38 = arith.cmpi eq, %8, %37 : vector<64x128xi32>
    %cst_16 = arith.constant 0xFF800000 : f32
    %39 = vector.broadcast %cst_16 : f32 to vector<64x128xf32>
    %40 = arith.select %38, %39, %7 : vector<64x128xi1>, vector<64x128xf32>
    %cst_17 = arith.constant dense<0xFF800000> : vector<64xf32>
    %41 = vector.multi_reduction <maximumf>, %40, %cst_17 [1] : vector<64x128xf32> to vector<64xf32>
    %42 = vector.shape_cast %41 : vector<64xf32> to vector<64x1xf32>
    %43 = vector.broadcast %42 : vector<64x1xf32> to vector<64x128xf32>
    %44 = arith.cmpf oeq, %40, %43 : vector<64x128xf32>
    %c128_i32_18 = arith.constant 128 : i32
    %45 = vector.broadcast %c128_i32_18 : i32 to vector<64x128xi32>
    %46 = arith.select %44, %8, %45 : vector<64x128xi1>, vector<64x128xi32>
    %cst_19 = arith.constant dense<2147483647> : vector<64xi32>
    %47 = vector.multi_reduction <minsi>, %46, %cst_19 [1] : vector<64x128xi32> to vector<64xi32>
    %48 = vector.shape_cast %47 : vector<64xi32> to vector<64x1xi32>
    %49 = vector.broadcast %48 : vector<64x1xi32> to vector<64x128xi32>
    %50 = arith.cmpi eq, %8, %49 : vector<64x128xi32>
    %cst_20 = arith.constant 0xFF800000 : f32
    %51 = vector.broadcast %cst_20 : f32 to vector<64x128xf32>
    %52 = arith.select %50, %51, %40 : vector<64x128xi1>, vector<64x128xf32>
    %cst_21 = arith.constant dense<0xFF800000> : vector<64xf32>
    %53 = vector.multi_reduction <maximumf>, %52, %cst_21 [1] : vector<64x128xf32> to vector<64xf32>
    %54 = vector.shape_cast %53 : vector<64xf32> to vector<64x1xf32>
    %55 = vector.broadcast %54 : vector<64x1xf32> to vector<64x128xf32>
    %56 = arith.cmpf oeq, %52, %55 : vector<64x128xf32>
    %c128_i32_22 = arith.constant 128 : i32
    %57 = vector.broadcast %c128_i32_22 : i32 to vector<64x128xi32>
    %58 = arith.select %56, %8, %57 : vector<64x128xi1>, vector<64x128xi32>
    %cst_23 = arith.constant dense<2147483647> : vector<64xi32>
    %59 = vector.multi_reduction <minsi>, %58, %cst_23 [1] : vector<64x128xi32> to vector<64xi32>
    %60 = vector.shape_cast %59 : vector<64xi32> to vector<64x1xi32>
    %61 = vector.broadcast %60 : vector<64x1xi32> to vector<64x128xi32>
    %62 = arith.cmpi eq, %8, %61 : vector<64x128xi32>
    %cst_24 = arith.constant 0xFF800000 : f32
    %63 = vector.broadcast %cst_24 : f32 to vector<64x128xf32>
    %64 = arith.select %62, %63, %52 : vector<64x128xi1>, vector<64x128xf32>
    %cst_25 = arith.constant dense<0xFF800000> : vector<64xf32>
    %65 = vector.multi_reduction <maximumf>, %64, %cst_25 [1] : vector<64x128xf32> to vector<64xf32>
    %66 = vector.shape_cast %65 : vector<64xf32> to vector<64x1xf32>
    %67 = vector.broadcast %66 : vector<64x1xf32> to vector<64x128xf32>
    %68 = arith.cmpf oeq, %64, %67 : vector<64x128xf32>
    %c128_i32_26 = arith.constant 128 : i32
    %69 = vector.broadcast %c128_i32_26 : i32 to vector<64x128xi32>
    %70 = arith.select %68, %8, %69 : vector<64x128xi1>, vector<64x128xi32>
    %cst_27 = arith.constant dense<2147483647> : vector<64xi32>
    %71 = vector.multi_reduction <minsi>, %70, %cst_27 [1] : vector<64x128xi32> to vector<64xi32>
    %72 = vector.shape_cast %71 : vector<64xi32> to vector<64x1xi32>
    %73 = vector.broadcast %72 : vector<64x1xi32> to vector<64x128xi32>
    %74 = arith.cmpi eq, %8, %73 : vector<64x128xi32>
    %cst_28 = arith.constant 0xFF800000 : f32
    %75 = vector.broadcast %cst_28 : f32 to vector<64x128xf32>
    %76 = arith.select %74, %75, %64 : vector<64x128xi1>, vector<64x128xf32>
    %cst_29 = arith.constant dense<0xFF800000> : vector<64xf32>
    %77 = vector.multi_reduction <maximumf>, %76, %cst_29 [1] : vector<64x128xf32> to vector<64xf32>
    %78 = vector.shape_cast %77 : vector<64xf32> to vector<64x1xf32>
    %79 = vector.broadcast %78 : vector<64x1xf32> to vector<64x128xf32>
    %80 = arith.cmpf oeq, %76, %79 : vector<64x128xf32>
    %c128_i32_30 = arith.constant 128 : i32
    %81 = vector.broadcast %c128_i32_30 : i32 to vector<64x128xi32>
    %82 = arith.select %80, %8, %81 : vector<64x128xi1>, vector<64x128xi32>
    %cst_31 = arith.constant dense<2147483647> : vector<64xi32>
    %83 = vector.multi_reduction <minsi>, %82, %cst_31 [1] : vector<64x128xi32> to vector<64xi32>
    %84 = vector.shape_cast %83 : vector<64xi32> to vector<64x1xi32>
    %85 = vector.broadcast %84 : vector<64x1xi32> to vector<64x128xi32>
    %86 = arith.cmpi eq, %8, %85 : vector<64x128xi32>
    %cst_32 = arith.constant 0xFF800000 : f32
    %87 = vector.broadcast %cst_32 : f32 to vector<64x128xf32>
    %88 = arith.select %86, %87, %76 : vector<64x128xi1>, vector<64x128xf32>
    %cst_33 = arith.constant dense<0xFF800000> : vector<64xf32>
    %89 = vector.multi_reduction <maximumf>, %88, %cst_33 [1] : vector<64x128xf32> to vector<64xf32>
    %90 = vector.shape_cast %89 : vector<64xf32> to vector<64x1xf32>
    %91 = vector.broadcast %90 : vector<64x1xf32> to vector<64x128xf32>
    %92 = arith.cmpf oge, %7, %91 : vector<64x128xf32>
    %cst_34 = arith.constant dense<true> : vector<64x128xi1>
    %93 = arith.xori %92, %cst_34 : vector<64x128xi1>
    %94 = arith.ori %20, %93 : vector<64x128xi1>
    %cst_35 = arith.constant -1.000000e+09 : f32
    %95 = vector.broadcast %cst_35 : f32 to vector<64x128xf32>
    %96 = arith.select %94, %24, %95 : vector<64x128xi1>, vector<64x128xf32>
    %cst_36 = arith.constant dense<0xFF800000> : vector<64xf32>
    %97 = vector.multi_reduction <maximumf>, %96, %cst_36 [1] : vector<64x128xf32> to vector<64xf32>
    %98 = vector.shape_cast %97 : vector<64xf32> to vector<64x1xf32>
    %99 = vector.broadcast %98 : vector<64x1xf32> to vector<64x128xf32>
    %100 = arith.subf %96, %99 : vector<64x128xf32>
    %101 = math.exp %100 : vector<64x128xf32>
    %cst_37 = arith.constant dense<0.000000e+00> : vector<64xf32>
    %102 = vector.multi_reduction <add>, %101, %cst_37 [1] : vector<64x128xf32> to vector<64xf32>
    %103 = vector.shape_cast %102 : vector<64xf32> to vector<64x1xf32>
    %104 = math.log %103 : vector<64x1xf32>
    %105 = arith.addf %98, %104 : vector<64x1xf32>
    %106 = arith.subf %105, %28 : vector<64x1xf32>
    %c0_38 = arith.constant 0 : index
    %c0_39 = arith.constant 0 : index
    %107 = vector.load %arg5[%c0_38, %c0_39] : memref<64x1xf32, #tpu.memory_space<vmem>>, vector<64x1xf32>
    tpu.vector_store %arg5[%c0_38, %c0_39], %106 {strides = array<i32>} : memref<64x1xf32, #tpu.memory_space<vmem>>, vector<64x1xf32>,
    %108 = vector.broadcast %98 : vector<64x1xf32> to vector<64x128xf32>
    %109 = arith.cmpf oeq, %96, %108 : vector<64x128xf32>
    %c128_i32_40 = arith.constant 128 : i32
    %110 = vector.broadcast %c128_i32_40 : i32 to vector<64x128xi32>
    %111 = arith.select %109, %8, %110 : vector<64x128xi1>, vector<64x128xi32>
    %cst_41 = arith.constant dense<2147483647> : vector<64xi32>
    %112 = vector.multi_reduction <minsi>, %111, %cst_41 [1] : vector<64x128xi32> to vector<64xi32>
    %113 = vector.shape_cast %112 : vector<64xi32> to vector<64x1xi32>
    %114 = arith.cmpi eq, %113, %18 : vector<64x1xi32>
    %115 = arith.extui %114 : vector<64x1xi1> to vector<64x1xi32>
    %116 = arith.sitofp %115 : vector<64x1xi32> to vector<64x1xf32>
    %c0_42 = arith.constant 0 : index
    %c0_43 = arith.constant 0 : index
    %117 = vector.load %arg6[%c0_42, %c0_43] : memref<64x1xf32, #tpu.memory_space<vmem>>, vector<64x1xf32>
    tpu.vector_store %arg6[%c0_42, %c0_43], %116 {strides = array<i32>} : memref<64x1xf32, #tpu.memory_space<vmem>>, vector<64x1xf32>,
    return
  }
  func.func @transform_0(%arg0: i32) -> (i32, i32) {
    %c0_i32 = arith.constant 0 : i32
    %c0_i32_0 = arith.constant 0 : i32
    return %arg0, %c0_i32 : i32, i32
  }
  func.func @transform_1(%arg0: i32) -> (i32, i32) {
    %c0_i32 = arith.constant 0 : i32
    %c0_i32_0 = arith.constant 0 : i32
    %c0_i32_1 = arith.constant 0 : i32
    return %c0_i32, %c0_i32_0 : i32, i32
  }
  func.func @transform_2(%arg0: i32) -> (i32, i32) {
    %c0_i32 = arith.constant 0 : i32
    %c0_i32_0 = arith.constant 0 : i32
    return %arg0, %c0_i32 : i32, i32
  }
  func.func @transform_3(%arg0: i32) -> (i32, i32) {
    %c0_i32 = arith.constant 0 : i32
    %c0_i32_0 = arith.constant 0 : i32
    %c0_i32_1 = arith.constant 0 : i32
    return %c0_i32, %c0_i32_0 : i32, i32
  }
  func.func @transform_4(%arg0: i32) -> (i32, i32) {
    %c0_i32 = arith.constant 0 : i32
    %c0_i32_0 = arith.constant 0 : i32
    return %arg0, %c0_i32 : i32, i32
  }
  func.func @transform_5(%arg0: i32) -> (i32, i32) {
    %c0_i32 = arith.constant 0 : i32
    %c0_i32_0 = arith.constant 0 : i32
    return %arg0, %c0_i32 : i32, i32
  }
}

module attributes {stable_mosaic.version = 11 : i64} {
  func.func @_ntxent_kernel(%arg0: i32, %arg1: memref<64x64xf32, #tpu.memory_space<vmem>>, %arg2: memref<64x128xf32, #tpu.memory_space<vmem>>, %arg3: memref<64x32xf32, #tpu.memory_space<vmem>>, %arg4: memref<32x128xf32, #tpu.memory_space<vmem>>, %arg5: memref<64x1xf32, #tpu.memory_space<vmem>>, %arg6: memref<64x1xf32, #tpu.memory_space<vmem>>) attributes {dimension_semantics = [#tpu.dimension_semantics<parallel>], iteration_bounds = array<i64: 2>, scalar_prefetch = 0 : i64, scratch_operands = 0 : i64, tpu.core_type = #tpu.core_type<tc>, window_params = [{transform_indices = @transform_0, window_bounds = array<i64: 64, 64>}, {pipeline_mode = #tpu.pipeline_mode<synchronous>, transform_indices = @transform_1, window_bounds = array<i64: 64, 128>}, {transform_indices = @transform_2, window_bounds = array<i64: 64, 32>}, {pipeline_mode = #tpu.pipeline_mode<synchronous>, transform_indices = @transform_3, window_bounds = array<i64: 32, 128>}, {transform_indices = @transform_4, window_bounds = array<i64: 64, 1>}, {transform_indices = @transform_5, window_bounds = array<i64: 64, 1>}]} {
    %c64_i32 = arith.constant 64 : i32
    %0 = arith.muli %arg0, %c64_i32 : i32
    %1 = tpu.assume_multiple %0, 64 : i32
    %c0 = arith.constant 0 : index
    %c0_0 = arith.constant 0 : index
    %2 = vector.load %arg1[%c0, %c0_0] : memref<64x64xf32, #tpu.memory_space<vmem>>, vector<64x64xf32>
    %c0_1 = arith.constant 0 : index
    %c0_2 = arith.constant 0 : index
    %3 = vector.load %arg2[%c0_1, %c0_2] : memref<64x128xf32, #tpu.memory_space<vmem>>, vector<64x128xf32>
    %cst = arith.constant dense<0.000000e+00> : vector<64x128xf32>
    %4 = tpu.matmul %2, %3, %cst {dimension_numbers = #tpu.dot_dimension_numbers<[1], [0], [0], [1], [0, 0, 1, 1], [], []>} : vector<64x64xf32>, vector<64x128xf32>, vector<64x128xf32> -> vector<64x128xf32>
    %c0_3 = arith.constant 0 : index
    %c0_4 = arith.constant 0 : index
    %5 = vector.load %arg3[%c0_3, %c0_4] : memref<64x32xf32, #tpu.memory_space<vmem>>, vector<64x32xf32>
    %c0_5 = arith.constant 0 : index
    %c0_6 = arith.constant 0 : index
    %6 = vector.load %arg4[%c0_5, %c0_6] : memref<32x128xf32, #tpu.memory_space<vmem>>, vector<32x128xf32>
    %cst_7 = arith.constant dense<0.000000e+00> : vector<64x128xf32>
    %7 = tpu.matmul %5, %6, %cst_7 {dimension_numbers = #tpu.dot_dimension_numbers<[1], [0], [0], [1], [0, 0, 1, 1], [], []>} : vector<64x32xf32>, vector<32x128xf32>, vector<64x128xf32> -> vector<64x128xf32>
    %8 = tpu.iota {dimensions = array<i32: 1>} : vector<64x128xi32>
    %9 = tpu.iota {dimensions = array<i32: 0>} : vector<64x1xi32>
    %10 = vector.broadcast %1 : i32 to vector<64x1xi32>
    %11 = arith.addi %10, %9 : vector<64x1xi32>
    %c64_i32_8 = arith.constant 64 : i32
    %12 = vector.broadcast %c64_i32_8 : i32 to vector<64x1xi32>
    %13 = arith.addi %11, %12 : vector<64x1xi32>
    %c128_i32 = arith.constant 128 : i32
    %14 = vector.broadcast %c128_i32 : i32 to vector<64x1xi32>
    %15 = arith.cmpi sge, %13, %14 : vector<64x1xi32>
    %c128_i32_9 = arith.constant 128 : i32
    %16 = vector.broadcast %c128_i32_9 : i32 to vector<64x1xi32>
    %17 = arith.subi %13, %16 : vector<64x1xi32>
    %18 = arith.select %15, %17, %13 : vector<64x1xi1>, vector<64x1xi32>
    %19 = vector.broadcast %18 : vector<64x1xi32> to vector<64x128xi32>
    %20 = arith.cmpi eq, %8, %19 : vector<64x128xi32>
    %21 = vector.broadcast %11 : vector<64x1xi32> to vector<64x128xi32>
    %22 = arith.cmpi eq, %8, %21 : vector<64x128xi32>
    %cst_10 = arith.constant -1.000000e+09 : f32
    %23 = vector.broadcast %cst_10 : f32 to vector<64x128xf32>
    %24 = arith.select %22, %23, %4 : vector<64x128xi1>, vector<64x128xf32>
    %cst_11 = arith.constant 0.000000e+00 : f32
    %25 = vector.broadcast %cst_11 : f32 to vector<64x128xf32>
    %26 = arith.select %20, %24, %25 : vector<64x128xi1>, vector<64x128xf32>
    %cst_12 = arith.constant dense<0.000000e+00> : vector<64xf32>
    %27 = vector.multi_reduction <add>, %26, %cst_12 [1] : vector<64x128xf32> to vector<64xf32>
    %28 = vector.shape_cast %27 : vector<64xf32> to vector<64x1xf32>
    %cst_13 = arith.constant dense<0xFF800000> : vector<64xf32>
    %29 = vector.multi_reduction <maximumf>, %7, %cst_13 [1] : vector<64x128xf32> to vector<64xf32>
    %30 = vector.shape_cast %29 : vector<64xf32> to vector<64x1xf32>
    %31 = vector.broadcast %30 : vector<64x1xf32> to vector<64x128xf32>
    %32 = arith.cmpf oeq, %7, %31 : vector<64x128xf32>
    %c128_i32_14 = arith.constant 128 : i32
    %33 = vector.broadcast %c128_i32_14 : i32 to vector<64x128xi32>
    %34 = arith.select %32, %8, %33 : vector<64x128xi1>, vector<64x128xi32>
    %cst_15 = arith.constant dense<2147483647> : vector<64xi32>
    %35 = vector.multi_reduction <minsi>, %34, %cst_15 [1] : vector<64x128xi32> to vector<64xi32>
    %36 = vector.shape_cast %35 : vector<64xi32> to vector<64x1xi32>
    %37 = vector.broadcast %36 : vector<64x1xi32> to vector<64x128xi32>
    %38 = arith.cmpi eq, %8, %37 : vector<64x128xi32>
    %cst_16 = arith.constant 0xFF800000 : f32
    %39 = vector.broadcast %cst_16 : f32 to vector<64x128xf32>
    %40 = arith.select %38, %39, %7 : vector<64x128xi1>, vector<64x128xf32>
    %cst_17 = arith.constant dense<0xFF800000> : vector<64xf32>
    %41 = vector.multi_reduction <maximumf>, %40, %cst_17 [1] : vector<64x128xf32> to vector<64xf32>
    %42 = vector.shape_cast %41 : vector<64xf32> to vector<64x1xf32>
    %43 = vector.broadcast %42 : vector<64x1xf32> to vector<64x128xf32>
    %44 = arith.cmpf oeq, %40, %43 : vector<64x128xf32>
    %c128_i32_18 = arith.constant 128 : i32
    %45 = vector.broadcast %c128_i32_18 : i32 to vector<64x128xi32>
    %46 = arith.select %44, %8, %45 : vector<64x128xi1>, vector<64x128xi32>
    %cst_19 = arith.constant dense<2147483647> : vector<64xi32>
    %47 = vector.multi_reduction <minsi>, %46, %cst_19 [1] : vector<64x128xi32> to vector<64xi32>
    %48 = vector.shape_cast %47 : vector<64xi32> to vector<64x1xi32>
    %49 = vector.broadcast %48 : vector<64x1xi32> to vector<64x128xi32>
    %50 = arith.cmpi eq, %8, %49 : vector<64x128xi32>
    %cst_20 = arith.constant 0xFF800000 : f32
    %51 = vector.broadcast %cst_20 : f32 to vector<64x128xf32>
    %52 = arith.select %50, %51, %40 : vector<64x128xi1>, vector<64x128xf32>
    %cst_21 = arith.constant dense<0xFF800000> : vector<64xf32>
    %53 = vector.multi_reduction <maximumf>, %52, %cst_21 [1] : vector<64x128xf32> to vector<64xf32>
    %54 = vector.shape_cast %53 : vector<64xf32> to vector<64x1xf32>
    %55 = vector.broadcast %54 : vector<64x1xf32> to vector<64x128xf32>
    %56 = arith.cmpf oeq, %52, %55 : vector<64x128xf32>
    %c128_i32_22 = arith.constant 128 : i32
    %57 = vector.broadcast %c128_i32_22 : i32 to vector<64x128xi32>
    %58 = arith.select %56, %8, %57 : vector<64x128xi1>, vector<64x128xi32>
    %cst_23 = arith.constant dense<2147483647> : vector<64xi32>
    %59 = vector.multi_reduction <minsi>, %58, %cst_23 [1] : vector<64x128xi32> to vector<64xi32>
    %60 = vector.shape_cast %59 : vector<64xi32> to vector<64x1xi32>
    %61 = vector.broadcast %60 : vector<64x1xi32> to vector<64x128xi32>
    %62 = arith.cmpi eq, %8, %61 : vector<64x128xi32>
    %cst_24 = arith.constant 0xFF800000 : f32
    %63 = vector.broadcast %cst_24 : f32 to vector<64x128xf32>
    %64 = arith.select %62, %63, %52 : vector<64x128xi1>, vector<64x128xf32>
    %cst_25 = arith.constant dense<0xFF800000> : vector<64xf32>
    %65 = vector.multi_reduction <maximumf>, %64, %cst_25 [1] : vector<64x128xf32> to vector<64xf32>
    %66 = vector.shape_cast %65 : vector<64xf32> to vector<64x1xf32>
    %67 = vector.broadcast %66 : vector<64x1xf32> to vector<64x128xf32>
    %68 = arith.cmpf oeq, %64, %67 : vector<64x128xf32>
    %c128_i32_26 = arith.constant 128 : i32
    %69 = vector.broadcast %c128_i32_26 : i32 to vector<64x128xi32>
    %70 = arith.select %68, %8, %69 : vector<64x128xi1>, vector<64x128xi32>
    %cst_27 = arith.constant dense<2147483647> : vector<64xi32>
    %71 = vector.multi_reduction <minsi>, %70, %cst_27 [1] : vector<64x128xi32> to vector<64xi32>
    %72 = vector.shape_cast %71 : vector<64xi32> to vector<64x1xi32>
    %73 = vector.broadcast %72 : vector<64x1xi32> to vector<64x128xi32>
    %74 = arith.cmpi eq, %8, %73 : vector<64x128xi32>
    %cst_28 = arith.constant 0xFF800000 : f32
    %75 = vector.broadcast %cst_28 : f32 to vector<64x128xf32>
    %76 = arith.select %74, %75, %64 : vector<64x128xi1>, vector<64x128xf32>
    %cst_29 = arith.constant dense<0xFF800000> : vector<64xf32>
    %77 = vector.multi_reduction <maximumf>, %76, %cst_29 [1] : vector<64x128xf32> to vector<64xf32>
    %78 = vector.shape_cast %77 : vector<64xf32> to vector<64x1xf32>
    %79 = vector.broadcast %78 : vector<64x1xf32> to vector<64x128xf32>
    %80 = arith.cmpf oeq, %76, %79 : vector<64x128xf32>
    %c128_i32_30 = arith.constant 128 : i32
    %81 = vector.broadcast %c128_i32_30 : i32 to vector<64x128xi32>
    %82 = arith.select %80, %8, %81 : vector<64x128xi1>, vector<64x128xi32>
    %cst_31 = arith.constant dense<2147483647> : vector<64xi32>
    %83 = vector.multi_reduction <minsi>, %82, %cst_31 [1] : vector<64x128xi32> to vector<64xi32>
    %84 = vector.shape_cast %83 : vector<64xi32> to vector<64x1xi32>
    %85 = vector.broadcast %84 : vector<64x1xi32> to vector<64x128xi32>
    %86 = arith.cmpi eq, %8, %85 : vector<64x128xi32>
    %cst_32 = arith.constant 0xFF800000 : f32
    %87 = vector.broadcast %cst_32 : f32 to vector<64x128xf32>
    %88 = arith.select %86, %87, %76 : vector<64x128xi1>, vector<64x128xf32>
    %cst_33 = arith.constant dense<0xFF800000> : vector<64xf32>
    %89 = vector.multi_reduction <maximumf>, %88, %cst_33 [1] : vector<64x128xf32> to vector<64xf32>
    %90 = vector.shape_cast %89 : vector<64xf32> to vector<64x1xf32>
    %91 = vector.broadcast %90 : vector<64x1xf32> to vector<64x128xf32>
    %92 = arith.cmpf oge, %7, %91 : vector<64x128xf32>
    %cst_34 = arith.constant dense<true> : vector<64x128xi1>
    %93 = arith.xori %92, %cst_34 : vector<64x128xi1>
    %94 = arith.ori %20, %93 : vector<64x128xi1>
    %cst_35 = arith.constant -1.000000e+09 : f32
    %95 = vector.broadcast %cst_35 : f32 to vector<64x128xf32>
    %96 = arith.select %94, %24, %95 : vector<64x128xi1>, vector<64x128xf32>
    %cst_36 = arith.constant dense<0xFF800000> : vector<64xf32>
    %97 = vector.multi_reduction <maximumf>, %96, %cst_36 [1] : vector<64x128xf32> to vector<64xf32>
    %98 = vector.shape_cast %97 : vector<64xf32> to vector<64x1xf32>
    %99 = vector.broadcast %98 : vector<64x1xf32> to vector<64x128xf32>
    %100 = arith.subf %96, %99 : vector<64x128xf32>
    %101 = math.exp %100 : vector<64x128xf32>
    %cst_37 = arith.constant dense<0.000000e+00> : vector<64xf32>
    %102 = vector.multi_reduction <add>, %101, %cst_37 [1] : vector<64x128xf32> to vector<64xf32>
    %103 = vector.shape_cast %102 : vector<64xf32> to vector<64x1xf32>
    %104 = math.log %103 : vector<64x1xf32>
    %105 = arith.addf %98, %104 : vector<64x1xf32>
    %106 = arith.subf %105, %28 : vector<64x1xf32>
    %c0_38 = arith.constant 0 : index
    %c0_39 = arith.constant 0 : index
    %107 = vector.load %arg5[%c0_38, %c0_39] : memref<64x1xf32, #tpu.memory_space<vmem>>, vector<64x1xf32>
    tpu.vector_store %arg5[%c0_38, %c0_39], %106 {strides = array<i32>} : memref<64x1xf32, #tpu.memory_space<vmem>>, vector<64x1xf32>,
    %108 = vector.broadcast %98 : vector<64x1xf32> to vector<64x128xf32>
    %109 = arith.cmpf oeq, %96, %108 : vector<64x128xf32>
    %c128_i32_40 = arith.constant 128 : i32
    %110 = vector.broadcast %c128_i32_40 : i32 to vector<64x128xi32>
    %111 = arith.select %109, %8, %110 : vector<64x128xi1>, vector<64x128xi32>
    %cst_41 = arith.constant dense<2147483647> : vector<64xi32>
    %112 = vector.multi_reduction <minsi>, %111, %cst_41 [1] : vector<64x128xi32> to vector<64xi32>
    %113 = vector.shape_cast %112 : vector<64xi32> to vector<64x1xi32>
    %114 = arith.cmpi eq, %113, %18 : vector<64x1xi32>
    %115 = arith.extui %114 : vector<64x1xi1> to vector<64x1xi32>
    %116 = arith.sitofp %115 : vector<64x1xi32> to vector<64x1xf32>
    %c0_42 = arith.constant 0 : index
    %c0_43 = arith.constant 0 : index
    %117 = vector.load %arg6[%c0_42, %c0_43] : memref<64x1xf32, #tpu.memory_space<vmem>>, vector<64x1xf32>
    tpu.vector_store %arg6[%c0_42, %c0_43], %116 {strides = array<i32>} : memref<64x1xf32, #tpu.memory_space<vmem>>, vector<64x1xf32>,
    return
  }
  func.func @transform_0(%arg0: i32) -> (i32, i32) {
    %c0_i32 = arith.constant 0 : i32
    %c0_i32_0 = arith.constant 0 : i32
    return %arg0, %c0_i32 : i32, i32
  }
  func.func @transform_1(%arg0: i32) -> (i32, i32) {
    %c0_i32 = arith.constant 0 : i32
    %c0_i32_0 = arith.constant 0 : i32
    %c0_i32_1 = arith.constant 0 : i32
    return %c0_i32, %c0_i32_0 : i32, i32
  }
  func.func @transform_2(%arg0: i32) -> (i32, i32) {
    %c0_i32 = arith.constant 0 : i32
    %c0_i32_0 = arith.constant 0 : i32
    return %arg0, %c0_i32 : i32, i32
  }
  func.func @transform_3(%arg0: i32) -> (i32, i32) {
    %c0_i32 = arith.constant 0 : i32
    %c0_i32_0 = arith.constant 0 : i32
    %c0_i32_1 = arith.constant 0 : i32
    return %c0_i32, %c0_i32_0 : i32, i32
  }
  func.func @transform_4(%arg0: i32) -> (i32, i32) {
    %c0_i32 = arith.constant 0 : i32
    %c0_i32_0 = arith.constant 0 : i32
    return %arg0, %c0_i32 : i32, i32
  }
  func.func @transform_5(%arg0: i32) -> (i32, i32) {
    %c0_i32 = arith.constant 0 : i32
    %c0_i32_0 = arith.constant 0 : i32
    return %arg0, %c0_i32 : i32, i32
  }
}

</mosaic_0001>

<llo_original>
// kernel: tpu_custom_call.1
$region0: #{tpu_custom_call.1}
  #allocation0 [shape = 'u32[]', space=smem, size = 0x4, offset = 0x4, fixed_abs, tag = 'smem constant byte address 0x4 - core index']
  #allocation1 [shape = 'u32[144,128]{1,0:T(1,128)}', space=vmem, size = 0x12000, scoped, tag = 'internal scratch']
  %s0 = inlined_call_operand.vmem [shape: f32[128,64], index: 0, kind: input, shape index: {}]
  %s1 = inlined_call_operand.vmem [shape: f32[64,128], index: 1, kind: input, shape index: {}]
  %s2 = inlined_call_operand.vmem [shape: f32[128,32], index: 2, kind: input, shape index: {}]
  %s3 = inlined_call_operand.vmem [shape: f32[32,128], index: 3, kind: input, shape index: {}]
  %s4 = inlined_call_operand.vmem [shape: f32[128,1], index: 4, kind: output, shape index: {0}]
  %s5 = inlined_call_operand.vmem [shape: f32[128,1], index: 5, kind: output, shape index: {1}]
  %6 = xla_tuple %s4, %s5
  %s7 = sld [smem:[#allocation0]]
  $region57: #{tpu_custom_call.1} parent=0
    _
  %s9 = ssub.s32 1, %s7
  %s10 = scalar_select 0, %s9, %s7
  loop: start=0, step=1, limit=4
  $region2: #{tpu_custom_call.1} parent=0 // loop_pre_header
    _
  $region3: #{tpu_custom_call.1} parent=0 // loop_header
    %s12 = sphi 0, %s16
    %p13 = scmp.ge.s32.totalorder %s12, 4
    %s22 = sphi 0, %s24
    %s25 = sphi 0, %s22
    %s26 = sphi 0, %s25
    %s42 = sphi 0, %s26
    %s46 = sphi 0, %s46
    %s48 = sphi 0, %s46
    %s49 = sphi 0, %s48
    %s63 = sphi 0, %s49
    %s69 = sphi 0, %s71
    %s72 = sphi 0, %s69
    %s73 = sphi 0, %s72
    %s89 = sphi 0, %s73
    %s93 = sphi 0, %s93
    %s95 = sphi 0, %s93
    %s96 = sphi 0, %s95
    %s110 = sphi 0, %s96
    %s116 = sphi 0, %s118
    %s119 = sphi 0, %s116
    %s120 = sphi 0, %s119
    %s136 = sphi 0, %s120
    %s142 = sphi 0, %s144
    %s145 = sphi 0, %s142
    %s146 = sphi 0, %s145
    %s162 = sphi 0, %s146
  $region4: #{tpu_custom_call.1} parent=0 // loop_header_branch
    %15 = sbr.rel (%p13) target = $region8
  $region5: #{tpu_custom_call.1} parent=0 // loop_body
    %s17 = ssub.s32 %s12, 1
    %s18 = ssub.s32 %s12, 2
    %s19 = sadd.s32 %s12, 1
    %s20 = ssub.s32 %s12, %s19
    %p21 = scmp.eq.s32.totalorder %s20, 0
    %s23 = sadd.s32 %s22, 1
    %s24 = scalar_select %p21, %s22, %s23
    %p27 = pneg %p21
    %p28 = scmp.eq.s32.totalorder %s12, 1
    %p29 = por %p27, %p28
    %p30 = scmp.ne.s32.totalorder %s22, %s25
    %p31 = scmp.eq.s32.totalorder %s12, 0
    %p32 = por %p30, %p31
    %p33 = scmp.ne.s32.totalorder %s22, %s25
    %p34 = scmp.eq.s32.totalorder %s17, 1
    %p35 = por %p33, %p34
    %p36 = scmp.ne.s32.totalorder %s25, %s26
    %p37 = scmp.eq.s32.totalorder %s17, 0
    %p38 = por %p36, %p37
    %p39 = scmp.ne.s32.totalorder %s25, %s26
    %p40 = scmp.eq.s32.totalorder %s18, 1
    %p41 = por %p39, %p40
    %p43 = scmp.ne.s32.totalorder %s26, %s42
    %p44 = scmp.eq.s32.totalorder %s18, 0
    %p45 = por %p43, %p44
    %s47 = sadd.s32 %s46, 1
    %p50 = scmp.eq.s32.totalorder %s12, 1
    %p51 = scmp.ne.s32.totalorder %s46, %s48
    %p52 = scmp.eq.s32.totalorder %s12, 0
    %p53 = por %p51, %p52
    %p54 = scmp.ne.s32.totalorder %s46, %s48
    %p55 = scmp.eq.s32.totalorder %s17, 1
    %p56 = por %p54, %p55
    %p57 = scmp.ne.s32.totalorder %s48, %s49
    %p58 = scmp.eq.s32.totalorder %s17, 0
    %p59 = por %p57, %p58
    %p60 = scmp.ne.s32.totalorder %s48, %s49
    %p61 = scmp.eq.s32.totalorder %s18, 1
    %p62 = por %p60, %p61
    %p64 = scmp.ne.s32.totalorder %s49, %s63
    %p65 = scmp.eq.s32.totalorder %s18, 0
    %p66 = por %p64, %p65
    %s67 = ssub.s32 %s12, %s19
    %p68 = scmp.eq.s32.totalorder %s67, 0
    %s70 = sadd.s32 %s69, 1
    %s71 = scalar_select %p68, %s69, %s70
    %p74 = pneg %p68
    %p75 = scmp.eq.s32.totalorder %s12, 1
    %p76 = por %p74, %p75
    %p77 = scmp.ne.s32.totalorder %s69, %s72
    %p78 = scmp.eq.s32.totalorder %s12, 0
    %p79 = por %p77, %p78
    %p80 = scmp.ne.s32.totalorder %s69, %s72
    %p81 = scmp.eq.s32.totalorder %s17, 1
    %p82 = por %p80, %p81
    %p83 = scmp.ne.s32.totalorder %s72, %s73
    %p84 = scmp.eq.s32.totalorder %s17, 0
    %p85 = por %p83, %p84
    %p86 = scmp.ne.s32.totalorder %s72, %s73
    %p87 = scmp.eq.s32.totalorder %s18, 1
    %p88 = por %p86, %p87
    %p90 = scmp.ne.s32.totalorder %s73, %s89
    %p91 = scmp.eq.s32.totalorder %s18, 0
    %p92 = por %p90, %p91
    %s94 = sadd.s32 %s93, 1
    %p97 = scmp.eq.s32.totalorder %s12, 1
    %p98 = scmp.ne.s32.totalorder %s93, %s95
    %p99 = scmp.eq.s32.totalorder %s12, 0
    %p100 = por %p98, %p99
    %p101 = scmp.ne.s32.totalorder %s93, %s95
    %p102 = scmp.eq.s32.totalorder %s17, 1
    %p103 = por %p101, %p102
    %p104 = scmp.ne.s32.totalorder %s95, %s96
    %p105 = scmp.eq.s32.totalorder %s17, 0
    %p106 = por %p104, %p105
    %p107 = scmp.ne.s32.totalorder %s95, %s96
    %p108 = scmp.eq.s32.totalorder %s18, 1
    %p109 = por %p107, %p108
    %p111 = scmp.ne.s32.totalorder %s96, %s110
    %p112 = scmp.eq.s32.totalorder %s18, 0
    %p113 = por %p111, %p112
    %s114 = ssub.s32 %s12, %s19
    %p115 = scmp.eq.s32.totalorder %s114, 0
    %s117 = sadd.s32 %s116, 1
    %s118 = scalar_select %p115, %s116, %s117
    %p121 = pneg %p115
    %p122 = scmp.eq.s32.totalorder %s12, 1
    %p123 = por %p121, %p122
    %p124 = scmp.ne.s32.totalorder %s116, %s119
    %p125 = scmp.eq.s32.totalorder %s12, 0
    %p126 = por %p124, %p125
    %p127 = scmp.ne.s32.totalorder %s116, %s119
    %p128 = scmp.eq.s32.totalorder %s17, 1
    %p129 = por %p127, %p128
    %p130 = scmp.ne.s32.totalorder %s119, %s120
    %p131 = scmp.eq.s32.totalorder %s17, 0
    %p132 = por %p130, %p131
    %p133 = scmp.ne.s32.totalorder %s119, %s120
    %p134 = scmp.eq.s32.totalorder %s18, 1
    %p135 = por %p133, %p134
    %p137 = scmp.ne.s32.totalorder %s120, %s136
    %p138 = scmp.eq.s32.totalorder %s18, 0
    %p139 = por %p137, %p138
    %s140 = ssub.s32 %s12, %s19
    %p141 = scmp.eq.s32.totalorder %s140, 0
    %s143 = sadd.s32 %s142, 1
    %s144 = scalar_select %p141, %s142, %s143
    %p147 = pneg %p141
    %p148 = scmp.eq.s32.totalorder %s12, 1
    %p149 = por %p147, %p148
    %p150 = scmp.ne.s32.totalorder %s142, %s145
    %p151 = scmp.eq.s32.totalorder %s12, 0
    %p152 = por %p150, %p151
    %p153 = scmp.ne.s32.totalorder %s142, %s145
    %p154 = scmp.eq.s32.totalorder %s17, 1
    %p155 = por %p153, %p154
    %p156 = scmp.ne.s32.totalorder %s145, %s146
    %p157 = scmp.eq.s32.totalorder %s17, 0
    %p158 = por %p156, %p157
    %p159 = scmp.ne.s32.totalorder %s145, %s146
    %p160 = scmp.eq.s32.totalorder %s18, 1
    %p161 = por %p159, %p160
    %p163 = scmp.ne.s32.totalorder %s146, %s162
    %p164 = scmp.eq.s32.totalorder %s18, 0
    %p165 = por %p163, %p164
    %p166 = scmp.le.s32.totalorder 1, %s12
    %p167 = scmp.lt.s32.totalorder %s12, 3
    %p168 = pnand %p166, %p167
    %p169 = pneg %p168
    // Predicated region
    $region9: #{tpu_custom_call.1} parent=5 // pred_check
      _
    $region10: #{tpu_custom_call.1} parent=5 // pred_check_branch
      %171 = sbr.rel (%p168) target = $region12
    $region11: #{tpu_custom_call.1} parent=5 // pred_region
      %s172 = ssub.s32 %s12, 1
      // Predicated region
      $region13: #{tpu_custom_call.1} parent=11 // pred_check
        %p173 = pneg %p59
      $region14: #{tpu_custom_call.1} parent=11 // pred_check_branch
        %175 = sbr.rel (%p173) target = $region16
      $region15: #{tpu_custom_call.1} parent=11 // pred_region
        _
      $region16: #{tpu_custom_call.1} parent=11 // pred_fallthru
        _
      // Predicated region
      $region17: #{tpu_custom_call.1} parent=11 // pred_check
        %p176 = pneg %p106
      $region18: #{tpu_custom_call.1} parent=11 // pred_check_branch
        %178 = sbr.rel (%p176) target = $region20
      $region19: #{tpu_custom_call.1} parent=11 // pred_region
        _
      $region20: #{tpu_custom_call.1} parent=11 // pred_fallthru
        _
    $region12: #{tpu_custom_call.1} parent=5 // pred_fallthru
      _
    %p179 = scmp.lt.s32.totalorder %s12, 2
    // Predicated region
    $region21: #{tpu_custom_call.1} parent=5 // pred_check
      %p180 = pneg %p179
    $region22: #{tpu_custom_call.1} parent=5 // pred_check_branch
      %182 = sbr.rel (%p180) target = $region24
    $region23: #{tpu_custom_call.1} parent=5 // pred_region
      // Predicated region
      $region25: #{tpu_custom_call.1} parent=23 // pred_check
        %p183 = pneg %p32
      $region26: #{tpu_custom_call.1} parent=23 // pred_check_branch
        %185 = sbr.rel (%p183) target = $region28
      $region27: #{tpu_custom_call.1} parent=23 // pred_region
        %s186 = smul.u32 8, %s12
        %p187 = scmp.lt.s32.totalorder %s186, 15
        %s188 = scalar_select %p187, %s186, 15
        %s189 = smul.addr %s188, 8
        %s190 = scalar_lea.vmem %s0, %s189
        %s191 = smul.u32 8, %s12
      $region28: #{tpu_custom_call.1} parent=23 // pred_fallthru
        _
      // Predicated region
      $region29: #{tpu_custom_call.1} parent=23 // pred_check
        %p192 = pneg %p79
      $region30: #{tpu_custom_call.1} parent=23 // pred_check_branch
        %194 = sbr.rel (%p192) target = $region32
      $region31: #{tpu_custom_call.1} parent=23 // pred_region
        %s195 = smul.u32 8, %s12
        %p196 = scmp.lt.s32.totalorder %s195, 15
        %s197 = scalar_select %p196, %s195, 15
        %s198 = smul.addr %s197, 8
        %s199 = scalar_lea.vmem %s2, %s198
        %s200 = smul.u32 8, %s12
      $region32: #{tpu_custom_call.1} parent=23 // pred_fallthru
        _
    $region24: #{tpu_custom_call.1} parent=5 // pred_fallthru
      _
    %p201 = scmp.le.s32.totalorder 1, %s12
    %p202 = scmp.lt.s32.totalorder %s12, 3
    %p203 = pnand %p201, %p202
    %p204 = pneg %p203
    // Predicated region
    $region33: #{tpu_custom_call.1} parent=5 // pred_check
      _
    $region34: #{tpu_custom_call.1} parent=5 // pred_check_branch
      %206 = sbr.rel (%p203) target = $region36
    $region35: #{tpu_custom_call.1} parent=5 // pred_region
      %s207 = ssub.s32 %s12, 1
      %s208 = smul.u32 8, %s17
      %p209 = scmp.lt.s32.totalorder %s208, 15
      %s210 = scalar_select %p209, %s208, 15
      %s211 = smul.addr %s210, 8
      %s212 = scalar_lea.vmem %s0, %s211
      %p213 = pneg %p38
      %p214 = pneg %p35
      %p215 = pneg %p59
      %p216 = pneg %p56
      %s217 = smul.u32 8, %s17
      %p218 = scmp.lt.s32.totalorder %s217, 15
      %s219 = scalar_select %p218, %s217, 15
      %s220 = smul.addr %s219, 8
      %s221 = scalar_lea.vmem %s2, %s220
      %p222 = pneg %p85
      %p223 = pneg %p82
      %p224 = pneg %p106
      %p225 = pneg %p103
      %p226 = pneg %p132
      %p227 = pneg %p129
      %s228 = smul.u32 8, %s17
      %p229 = scmp.lt.s32.totalorder %s228, 15
      %s230 = scalar_select %p229, %s228, 15
      %s231 = smul.addr %s230, 8
      %s232 = scalar_lea.vmem %s4, %s231
      %p233 = pneg %p158
      %p234 = pneg %p155
      %s235 = smul.u32 8, %s17
      %p236 = scmp.lt.s32.totalorder %s235, 15
      %s237 = scalar_select %p236, %s235, 15
      %s238 = smul.addr %s237, 8
      %s239 = scalar_lea.vmem %s5, %s238
      %s240 = smul.u32 8, %s17
      %p241 = scmp.lt.s32.totalorder %s240, 15
      %s242 = scalar_select %p241, %s240, 15
      %s243 = smul.addr %s242, 8
      %s244 = scalar_lea.vmem %s0, %s243
      %s245 = smul.u32 8, %s17
      %s246 = smul.u32 8, %s17
      %p247 = scmp.lt.s32.totalorder %s246, 15
      %s248 = scalar_select %p247, %s246, 15
      %s249 = smul.addr %s248, 8
      %s250 = scalar_lea.vmem %s2, %s249
      %s251 = smul.u32 8, %s17
      %s252 = smul.u32 8, %s17
      %p253 = scmp.lt.s32.totalorder %s252, 15
      %s254 = scalar_select %p253, %s252, 15
      %s255 = smul.addr %s254, 8
      %s256 = scalar_lea.vmem %s4, %s255
      %s257 = smul.u32 8, %s17
      %s258 = smul.u32 8, %s17
      %p259 = scmp.lt.s32.totalorder %s258, 15
      %s260 = scalar_select %p259, %s258, 15
      %s261 = smul.addr %s260, 8
      %s262 = scalar_lea.vmem %s5, %s261
      %s263 = smul.u32 8, %s17
      %s264 = smul.u32 %s17, 64
      %v265 = vld [vmem:[%s244] sm:$0xff]
      %v266 = vld [vmem:[%s244 + $0x8] sm:$0xff]
      %v267 = vld [vmem:[%s244 + $0x10] sm:$0xff]
      %v268 = vld [vmem:[%s244 + $0x18] sm:$0xff]
      %v269 = vld [vmem:[%s244 + $0x20] sm:$0xff]
      %v270 = vld [vmem:[%s244 + $0x28] sm:$0xff]
      %v271 = vld [vmem:[%s244 + $0x30] sm:$0xff]
      %v272 = vld [vmem:[%s244 + $0x38] sm:$0xff]
      %v273 = vld [vmem:[%s1] sm:$0xff]
      %v274 = vld [vmem:[%s1 + $0x8] sm:$0xff]
      %v275 = vld [vmem:[%s1 + $0x10] sm:$0xff]
      %v276 = vld [vmem:[%s1 + $0x18] sm:$0xff]
      %v277 = vld [vmem:[%s1 + $0x20] sm:$0xff]
      %v278 = vld [vmem:[%s1 + $0x28] sm:$0xff]
      %v279 = vld [vmem:[%s1 + $0x30] sm:$0xff]
      %v280 = vld [vmem:[%s1 + $0x38] sm:$0xff]
      %vm281 = vcmask 523264
      %v283 = vsel %vm281, %v265, 0
      %v286 = vsel %vm281, %v266, 0
      %v289 = vsel %vm281, %v267, 0
      %v292 = vsel %vm281, %v268, 0
      %v295 = vsel %vm281, %v269, 0
      %v298 = vsel %vm281, %v270, 0
      %v301 = vsel %vm281, %v271, 0
      %v304 = vsel %vm281, %v272, 0
      %306 = vmatprep.subr.mxu0 0.0
      %307 = vmatpush1.msra.mxu0 %v273
      %308 = vmatprep.subr.mxu0 0.0
      %309 = vmatpush1.msra.mxu0 %v274
      %310 = vmatprep.subr.mxu0 0.0
      %311 = vmatpush1.msra.mxu0 %v275
      %312 = vmatprep.subr.mxu0 0.0
      %313 = vmatpush1.msra.mxu0 %v276
      %314 = vmatprep.subr.mxu0 0.0
      %315 = vmatpush1.msra.mxu0 %v277
      %316 = vmatprep.subr.mxu0 0.0
      %317 = vmatpush1.msra.mxu0 %v278
      %318 = vmatprep.subr.mxu0 0.0
      %319 = vmatpush1.msra.mxu0 %v279
      %320 = vmatprep.subr.mxu0 0.0
      %321 = vmatpush1.msra.mxu0 %v280
      %322 = vmatprep.subr.mxu0 0.0
      %323 = vmatpush1.msra.mxu0 0.0
      %324 = vmatprep.subr.mxu0 0.0
      %325 = vmatpush1.msra.mxu0 0.0
      %326 = vmatprep.subr.mxu0 0.0
      %327 = vmatpush1.msra.mxu0 0.0
      %328 = vmatprep.subr.mxu0 0.0
      %329 = vmatpush1.msra.mxu0 0.0
      %330 = vmatprep.subr.mxu0 0.0
      %331 = vmatpush1.msra.mxu0 0.0
      %332 = vmatprep.subr.mxu0 0.0
      %333 = vmatpush1.msra.mxu0 0.0
      %334 = vmatprep.subr.mxu0 0.0
      %335 = vmatpush1.msra.mxu0 0.0
      %336 = vmatprep.subr.mxu0 0.0
      %337 = vmatpush1.msra.mxu0 0.0
      %338 = vmatprep.subr.mxu0 0.0
      %339 = vmatpush1.msra.mxu0 0.0
      %340 = vmatprep.subr.mxu0 0.0
      %341 = vmatpush1.msra.mxu0 0.0
      %342 = vmatprep.subr.mxu0 0.0
      %343 = vmatpush1.msra.mxu0 0.0
      %344 = vmatprep.subr.mxu0 0.0
      %345 = vmatpush1.msra.mxu0 0.0
      %346 = vmatprep.subr.mxu0 0.0
      %347 = vmatpush1.msra.mxu0 0.0
      %348 = vmatprep.subr.mxu0 0.0
      %349 = vmatpush1.msra.mxu0 0.0
      %350 = vmatprep.subr.mxu0 0.0
      %351 = vmatpush1.msra.mxu0 0.0
      %352 = vmatprep.subr.mxu0 0.0
      %353 = vmatpush1.msra.mxu0 0.0
      %354 = vmatprep.subr.mxu0 0.0
      %355 = vmatpush1.msra.mxu0 0.0
      %356 = vmatprep.subr.mxu0 0.0
      %357 = vmatpush1.msra.mxu0 0.0
      %358 = vmatprep.subr.mxu0 0.0
      %359 = vmatpush1.msra.mxu0 0.0
      %360 = vmatprep.subr.mxu0 0.0
      %361 = vmatpush1.msra.mxu0 0.0
      %362 = vmatprep.subr.mxu0 0.0
      %363 = vmatpush1.msra.mxu0 0.0
      %364 = vmatprep.subr.mxu0 0.0
      %365 = vmatpush1.msra.mxu0 0.0
      %366 = vmatprep.subr.mxu0 0.0
      %367 = vmatpush1.msra.mxu0 0.0
      %368 = vmatprep.subr.mxu0 0.0
      %369 = vmatpush1.msra.mxu0 0.0
      %370 = vmatprep.mubr.f32.mxu0 0.0
      %371 = vmatmul.mubr.f32.gmra.mrb[0].mxu0 %v283
      %v372 = vpop.f32.mrb[0].mxu0
      %v373 = vadd.f32 0.0, %v372
      %v374 = vpop.f32.mrb[0].mxu0
      %375 = vmatprep.mubr.f32.mxu0 0.0
      %376 = vmatmul.mubr.f32.gmra.mrb[0].mxu0 %v286
      %v377 = vpop.f32.mrb[0].mxu0
      %v378 = vadd.f32 0.0, %v377
      %v379 = vpop.f32.mrb[0].mxu0
      %380 = vmatprep.mubr.f32.mxu0 0.0
      %381 = vmatmul.mubr.f32.gmra.mrb[0].mxu0 %v289
      %v382 = vpop.f32.mrb[0].mxu0
      %v383 = vadd.f32 0.0, %v382
      %v384 = vpop.f32.mrb[0].mxu0
      %385 = vmatprep.mubr.f32.mxu0 0.0
      %386 = vmatmul.mubr.f32.gmra.mrb[0].mxu0 %v292
      %v387 = vpop.f32.mrb[0].mxu0
      %v388 = vadd.f32 0.0, %v387
      %v389 = vpop.f32.mrb[0].mxu0
      %390 = vmatprep.mubr.f32.mxu0 0.0
      %391 = vmatmul.mubr.f32.gmra.mrb[0].mxu0 %v295
      %v392 = vpop.f32.mrb[0].mxu0
      %v393 = vadd.f32 0.0, %v392
      %v394 = vpop.f32.mrb[0].mxu0
      %395 = vmatprep.mubr.f32.mxu0 0.0
      %396 = vmatmul.mubr.f32.gmra.mrb[0].mxu0 %v298
      %v397 = vpop.f32.mrb[0].mxu0
      %v398 = vadd.f32 0.0, %v397
      %v399 = vpop.f32.mrb[0].mxu0
      %400 = vmatprep.mubr.f32.mxu0 0.0
      %401 = vmatmul.mubr.f32.gmra.mrb[0].mxu0 %v301
      %v402 = vpop.f32.mrb[0].mxu0
      %v403 = vadd.f32 0.0, %v402
      %v404 = vpop.f32.mrb[0].mxu0
      %405 = vmatprep.mubr.f32.mxu0 0.0
      %406 = vmatmul.mubr.f32.gmra.mrb[0].mxu0 %v304
      %v407 = vpop.f32.mrb[0].mxu0
      %v408 = vadd.f32 0.0, %v407
      %v409 = vpop.f32.mrb[0].mxu0
      %410 = vdwg.mxu0
      %v411 = vld [vmem:[%s250] sm:$0xff]
      %v412 = vld [vmem:[%s250 + $0x8] sm:$0xff]
      %v413 = vld [vmem:[%s250 + $0x10] sm:$0xff]
      %v414 = vld [vmem:[%s250 + $0x18] sm:$0xff]
      %v415 = vld [vmem:[%s250 + $0x20] sm:$0xff]
      %v416 = vld [vmem:[%s250 + $0x28] sm:$0xff]
      %v417 = vld [vmem:[%s250 + $0x30] sm:$0xff]
      %v418 = vld [vmem:[%s250 + $0x38] sm:$0xff]
      %v419 = vld [vmem:[%s3] sm:$0xff]
      %v420 = vld [vmem:[%s3 + $0x8] sm:$0xff]
      %v421 = vld [vmem:[%s3 + $0x10] sm:$0xff]
      %v422 = vld [vmem:[%s3 + $0x18] sm:$0xff]
      %vm423 = vcmask 261120
      %v425 = vsel %vm423, %v411, 0
      %v428 = vsel %vm423, %v412, 0
      %v431 = vsel %vm423, %v413, 0
      %v434 = vsel %vm423, %v414, 0
      %v437 = vsel %vm423, %v415, 0
      %v440 = vsel %vm423, %v416, 0
      %v443 = vsel %vm423, %v417, 0
      %v446 = vsel %vm423, %v418, 0
      %448 = vmatprep.subr.mxu0 0.0
      %449 = vmatpush1.msra.mxu0 %v419
      %450 = vmatprep.subr.mxu0 0.0
      %451 = vmatpush1.msra.mxu0 %v420
      %452 = vmatprep.subr.mxu0 0.0
      %453 = vmatpush1.msra.mxu0 %v421
      %454 = vmatprep.subr.mxu0 0.0
      %455 = vmatpush1.msra.mxu0 %v422
      %456 = vmatprep.subr.mxu0 0.0
      %457 = vmatpush1.msra.mxu0 0.0
      %458 = vmatprep.subr.mxu0 0.0
      %459 = vmatpush1.msra.mxu0 0.0
      %460 = vmatprep.subr.mxu0 0.0
      %461 = vmatpush1.msra.mxu0 0.0
      %462 = vmatprep.subr.mxu0 0.0
      %463 = vmatpush1.msra.mxu0 0.0
      %464 = vmatprep.subr.mxu0 0.0
      %465 = vmatpush1.msra.mxu0 0.0
      %466 = vmatprep.subr.mxu0 0.0
      %467 = vmatpush1.msra.mxu0 0.0
      %468 = vmatprep.subr.mxu0 0.0
      %469 = vmatpush1.msra.mxu0 0.0
      %470 = vmatprep.subr.mxu0 0.0
      %471 = vmatpush1.msra.mxu0 0.0
      %472 = vmatprep.subr.mxu0 0.0
      %473 = vmatpush1.msra.mxu0 0.0
      %474 = vmatprep.subr.mxu0 0.0
      %475 = vmatpush1.msra.mxu0 0.0
      %476 = vmatprep.subr.mxu0 0.0
      %477 = vmatpush1.msra.mxu0 0.0
      %478 = vmatprep.subr.mxu0 0.0
      %479 = vmatpush1.msra.mxu0 0.0
      %480 = vmatprep.subr.mxu0 0.0
      %481 = vmatpush1.msra.mxu0 0.0
      %482 = vmatprep.subr.mxu0 0.0
      %483 = vmatpush1.msra.mxu0 0.0
      %484 = vmatprep.subr.mxu0 0.0
      %485 = vmatpush1.msra.mxu0 0.0
      %486 = vmatprep.subr.mxu0 0.0
      %487 = vmatpush1.msra.mxu0 0.0
      %488 = vmatprep.subr.mxu0 0.0
      %489 = vmatpush1.msra.mxu0 0.0
      %490 = vmatprep.subr.mxu0 0.0
      %491 = vmatpush1.msra.mxu0 0.0
      %492 = vmatprep.subr.mxu0 0.0
      %493 = vmatpush1.msra.mxu0 0.0
      %494 = vmatprep.subr.mxu0 0.0
      %495 = vmatpush1.msra.mxu0 0.0
      %496 = vmatprep.subr.mxu0 0.0
      %497 = vmatpush1.msra.mxu0 0.0
      %498 = vmatprep.subr.mxu0 0.0
      %499 = vmatpush1.msra.mxu0 0.0
      %500 = vmatprep.subr.mxu0 0.0
      %501 = vmatpush1.msra.mxu0 0.0
      %502 = vmatprep.subr.mxu0 0.0
      %503 = vmatpush1.msra.mxu0 0.0
      %504 = vmatprep.subr.mxu0 0.0
      %505 = vmatpush1.msra.mxu0 0.0
      %506 = vmatprep.subr.mxu0 0.0
      %507 = vmatpush1.msra.mxu0 0.0
      %508 = vmatprep.subr.mxu0 0.0
      %509 = vmatpush1.msra.mxu0 0.0
      %510 = vmatprep.subr.mxu0 0.0
      %511 = vmatpush1.msra.mxu0 0.0
      %512 = vmatprep.mubr.f32.mxu0 0.0
      %513 = vmatmul.mubr.f32.gmra.mrb[0].mxu0 %v425
      %v514 = vpop.f32.mrb[0].mxu0
      %v515 = vadd.f32 0.0, %v514
      %v516 = vpop.f32.mrb[0].mxu0
      %517 = vmatprep.mubr.f32.mxu0 0.0
      %518 = vmatmul.mubr.f32.gmra.mrb[0].mxu0 %v428
      %v519 = vpop.f32.mrb[0].mxu0
      %v520 = vadd.f32 0.0, %v519
      %v521 = vpop.f32.mrb[0].mxu0
      %522 = vmatprep.mubr.f32.mxu0 0.0
      %523 = vmatmul.mubr.f32.gmra.mrb[0].mxu0 %v431
      %v524 = vpop.f32.mrb[0].mxu0
      %v525 = vadd.f32 0.0, %v524
      %v526 = vpop.f32.mrb[0].mxu0
      %527 = vmatprep.mubr.f32.mxu0 0.0
      %528 = vmatmul.mubr.f32.gmra.mrb[0].mxu0 %v434
      %v529 = vpop.f32.mrb[0].mxu0
      %v530 = vadd.f32 0.0, %v529
      %v531 = vpop.f32.mrb[0].mxu0
      %532 = vmatprep.mubr.f32.mxu0 0.0
      %533 = vmatmul.mubr.f32.gmra.mrb[0].mxu0 %v437
      %v534 = vpop.f32.mrb[0].mxu0
      %v535 = vadd.f32 0.0, %v534
      %v536 = vpop.f32.mrb[0].mxu0
      %537 = vmatprep.mubr.f32.mxu0 0.0
      %538 = vmatmul.mubr.f32.gmra.mrb[0].mxu0 %v440
      %v539 = vpop.f32.mrb[0].mxu0
      %v540 = vadd.f32 0.0, %v539
      %v541 = vpop.f32.mrb[0].mxu0
      %542 = vmatprep.mubr.f32.mxu0 0.0
      %543 = vmatmul.mubr.f32.gmra.mrb[0].mxu0 %v443
      %v544 = vpop.f32.mrb[0].mxu0
      %v545 = vadd.f32 0.0, %v544
      %v546 = vpop.f32.mrb[0].mxu0
      %547 = vmatprep.mubr.f32.mxu0 0.0
      %548 = vmatmul.mubr.f32.gmra.mrb[0].mxu0 %v446
      %v549 = vpop.f32.mrb[0].mxu0
      %v550 = vadd.f32 0.0, %v549
      %v551 = vpop.f32.mrb[0].mxu0
      %552 = vdwg.mxu0
      %v553 = vlaneseq
      %v554 = vand.u32 %v553, 127
      %v555 = vlaneseq
      %v556 = vshrl.u32 %v555, 7
      %v557 = vadd.s32 %v556, 8
      %v558 = vadd.s32 %v556, 16
      %v559 = vadd.s32 %v556, 24
      %v560 = vadd.s32 %v556, 32
      %v561 = vadd.s32 %v556, 40
      %v562 = vadd.s32 %v556, 48
      %v563 = vadd.s32 %v556, 56
      %v564 = vstv %s264
      %v565 = vadd.s32 %v564, %v556
      %v566 = vadd.s32 %v564, %v557
      %v567 = vadd.s32 %v564, %v558
      %v568 = vadd.s32 %v564, %v559
      %v569 = vadd.s32 %v564, %v560
      %v570 = vadd.s32 %v564, %v561
      %v571 = vadd.s32 %v564, %v562
      %v572 = vadd.s32 %v564, %v563
      %v573 = vadd.s32 %v565, 64
      %v574 = vadd.s32 %v566, 64
      %v575 = vadd.s32 %v567, 64
      %v576 = vadd.s32 %v568, 64
      %v577 = vadd.s32 %v569, 64
      %v578 = vadd.s32 %v570, 64
      %v579 = vadd.s32 %v571, 64
      %v580 = vadd.s32 %v572, 64
      %vm581 = vcmp.ge.s32.totalorder %v573, 128
      %vm582 = vcmp.ge.s32.totalorder %v574, 128
      %vm583 = vcmp.ge.s32.totalorder %v575, 128
      %vm584 = vcmp.ge.s32.totalorder %v576, 128
      %vm585 = vcmp.ge.s32.totalorder %v577, 128
      %vm586 = vcmp.ge.s32.totalorder %v578, 128
      %vm587 = vcmp.ge.s32.totalorder %v579, 128
      %vm588 = vcmp.ge.s32.totalorder %v580, 128
      %v589 = vsub.s32 %v573, 128
      %v590 = vsub.s32 %v574, 128
      %v591 = vsub.s32 %v575, 128
      %v592 = vsub.s32 %v576, 128
      %v593 = vsub.s32 %v577, 128
      %v594 = vsub.s32 %v578, 128
      %v595 = vsub.s32 %v579, 128
      %v596 = vsub.s32 %v580, 128
      %v597 = vsel %vm581, %v589, %v573
      %v598 = vsel %vm582, %v590, %v574
      %v599 = vsel %vm583, %v591, %v575
      %v600 = vsel %vm584, %v592, %v576
      %v601 = vsel %vm585, %v593, %v577
      %v602 = vsel %vm586, %v594, %v578
      %v603 = vsel %vm587, %v595, %v579
      %v604 = vsel %vm588, %v596, %v580
      %vm605 = vcmp.eq.s32.totalorder %v554, %v597
      %vm606 = vcmp.eq.s32.totalorder %v554, %v598
      %vm607 = vcmp.eq.s32.totalorder %v554, %v599
      %vm608 = vcmp.eq.s32.totalorder %v554, %v600
      %vm609 = vcmp.eq.s32.totalorder %v554, %v601
      %vm610 = vcmp.eq.s32.totalorder %v554, %v602
      %vm611 = vcmp.eq.s32.totalorder %v554, %v603
      %vm612 = vcmp.eq.s32.totalorder %v554, %v604
      %vm613 = vcmp.eq.s32.totalorder %v554, %v565
      %vm614 = vcmp.eq.s32.totalorder %v554, %v566
      %vm615 = vcmp.eq.s32.totalorder %v554, %v567
      %vm616 = vcmp.eq.s32.totalorder %v554, %v568
      %vm617 = vcmp.eq.s32.totalorder %v554, %v569
      %vm618 = vcmp.eq.s32.totalorder %v554, %v570
      %vm619 = vcmp.eq.s32.totalorder %v554, %v571
      %vm620 = vcmp.eq.s32.totalorder %v554, %v572
      %v621 = vsel %vm613, -1e+09, %v373
      %v622 = vsel %vm614, -1e+09, %v378
      %v623 = vsel %vm615, -1e+09, %v383
      %v624 = vsel %vm616, -1e+09, %v388
      %v625 = vsel %vm617, -1e+09, %v393
      %v626 = vsel %vm618, -1e+09, %v398
      %v627 = vsel %vm619, -1e+09, %v403
      %v628 = vsel %vm620, -1e+09, %v408
      %v629 = vsel %vm605, %v621, 0.0
      %v630 = vsel %vm606, %v622, 0.0
      %v631 = vsel %vm607, %v623, 0.0
      %v632 = vsel %vm608, %v624, 0.0
      %v633 = vsel %vm609, %v625, 0.0
      %v634 = vsel %vm610, %v626, 0.0
      %v635 = vsel %vm611, %v627, 0.0
      %v636 = vsel %vm612, %v628, 0.0
      %637 = vadd.xlane.f32.xlu0 %v629
      %v638 = vpop.xlane.xlu0 %637
      %639 = vadd.xlane.f32.xlu0 %v630
      %v640 = vpop.xlane.xlu0 %639
      %641 = vadd.xlane.f32.xlu0 %v631
      %v642 = vpop.xlane.xlu0 %641
      %643 = vadd.xlane.f32.xlu0 %v632
      %v644 = vpop.xlane.xlu0 %643
      %645 = vadd.xlane.f32.xlu0 %v633
      %v646 = vpop.xlane.xlu0 %645
      %647 = vadd.xlane.f32.xlu0 %v634
      %v648 = vpop.xlane.xlu0 %647
      %649 = vadd.xlane.f32.xlu0 %v635
      %v650 = vpop.xlane.xlu0 %649
      %651 = vadd.xlane.f32.xlu0 %v636
      %v652 = vpop.xlane.xlu0 %651
      %653 = vmax.xlane.f32.xlu0 %v515
      %v654 = vpop.xlane.xlu0 %653
      %655 = vmax.xlane.f32.xlu0 %v520
      %v656 = vpop.xlane.xlu0 %655
      %657 = vmax.xlane.f32.xlu0 %v525
      %v658 = vpop.xlane.xlu0 %657
      %659 = vmax.xlane.f32.xlu0 %v530
      %v660 = vpop.xlane.xlu0 %659
      %661 = vmax.xlane.f32.xlu0 %v535
      %v662 = vpop.xlane.xlu0 %661
      %663 = vmax.xlane.f32.xlu0 %v540
      %v664 = vpop.xlane.xlu0 %663
      %665 = vmax.xlane.f32.xlu0 %v545
      %v666 = vpop.xlane.xlu0 %665
      %667 = vmax.xlane.f32.xlu0 %v550
      %v668 = vpop.xlane.xlu0 %667
      %vm669 = vcmp.eq.f32.partialorder %v515, %v654
      %vm670 = vcmp.eq.f32.partialorder %v520, %v656
      %vm671 = vcmp.eq.f32.partialorder %v525, %v658
      %vm672 = vcmp.eq.f32.partialorder %v530, %v660
      %vm673 = vcmp.eq.f32.partialorder %v535, %v662
      %vm674 = vcmp.eq.f32.partialorder %v540, %v664
      %vm675 = vcmp.eq.f32.partialorder %v545, %v666
      %vm676 = vcmp.eq.f32.partialorder %v550, %v668
      %v677 = vsel %vm669, %v554, 128
      %v678 = vsel %vm670, %v554, 128
      %v679 = vsel %vm671, %v554, 128
      %v680 = vsel %vm672, %v554, 128
      %v681 = vsel %vm673, %v554, 128
      %v682 = vsel %vm674, %v554, 128
      %v683 = vsel %vm675, %v554, 128
      %v684 = vsel %vm676, %v554, 128
      %v685 = vand.u32 %v677, 65535
      %v686 = vshra.s32 %v677, 16
      %v687 = vcvt.s32.f32 %v685
      %v688 = vcvt.s32.f32 %v686
      %689 = vmin.xlane.f32.xlu0 %v688
      %v690 = vpop.xlane.xlu0 %689
      %vm691 = vcmp.eq.f32.partialorder %v688, %v690
      %v692 = vsel %vm691, %v687, inf
      %693 = vmin.xlane.f32.xlu0 %v692
      %v694 = vpop.xlane.xlu0 %693
      %v695 = vcvt.f32.s32 %v694
      %v696 = vcvt.f32.s32 %v690
      %v697 = vshll.u32 %v696, 16
      %v698 = vadd.s32 %v697, %v695
      %v699 = vand.u32 %v678, 65535
      %v700 = vshra.s32 %v678, 16
      %v701 = vcvt.s32.f32 %v699
      %v702 = vcvt.s32.f32 %v700
      %703 = vmin.xlane.f32.xlu0 %v702
      %v704 = vpop.xlane.xlu0 %703
      %vm705 = vcmp.eq.f32.partialorder %v702, %v704
      %v706 = vsel %vm705, %v701, inf
      %707 = vmin.xlane.f32.xlu0 %v706
      %v708 = vpop.xlane.xlu0 %707
      %v709 = vcvt.f32.s32 %v708
      %v710 = vcvt.f32.s32 %v704
      %v711 = vshll.u32 %v710, 16
      %v712 = vadd.s32 %v711, %v709
      %v713 = vand.u32 %v679, 65535
      %v714 = vshra.s32 %v679, 16
      %v715 = vcvt.s32.f32 %v713
      %v716 = vcvt.s32.f32 %v714
      %717 = vmin.xlane.f32.xlu0 %v716
      %v718 = vpop.xlane.xlu0 %717
      %vm719 = vcmp.eq.f32.partialorder %v716, %v718
      %v720 = vsel %vm719, %v715, inf
      %721 = vmin.xlane.f32.xlu0 %v720
      %v722 = vpop.xlane.xlu0 %721
      %v723 = vcvt.f32.s32 %v722
      %v724 = vcvt.f32.s32 %v718
      %v725 = vshll.u32 %v724, 16
      %v726 = vadd.s32 %v725, %v723
      %v727 = vand.u32 %v680, 65535
      %v728 = vshra.s32 %v680, 16
      %v729 = vcvt.s32.f32 %v727
      %v730 = vcvt.s32.f32 %v728
      %731 = vmin.xlane.f32.xlu0 %v730
      %v732 = vpop.xlane.xlu0 %731
      %vm733 = vcmp.eq.f32.partialorder %v730, %v732
      %v734 = vsel %vm733, %v729, inf
      %735 = vmin.xlane.f32.xlu0 %v734
      %v736 = vpop.xlane.xlu0 %735
      %v737 = vcvt.f32.s32 %v736
      %v738 = vcvt.f32.s32 %v732
      %v739 = vshll.u32 %v738, 16
      %v740 = vadd.s32 %v739, %v737
      %v741 = vand.u32 %v681, 65535
      %v742 = vshra.s32 %v681, 16
      %v743 = vcvt.s32.f32 %v741
      %v744 = vcvt.s32.f32 %v742
      %745 = vmin.xlane.f32.xlu0 %v744
      %v746 = vpop.xlane.xlu0 %745
      %vm747 = vcmp.eq.f32.partialorder %v744, %v746
      %v748 = vsel %vm747, %v743, inf
      %749 = vmin.xlane.f32.xlu0 %v748
      %v750 = vpop.xlane.xlu0 %749
      %v751 = vcvt.f32.s32 %v750
      %v752 = vcvt.f32.s32 %v746
      %v753 = vshll.u32 %v752, 16
      %v754 = vadd.s32 %v753, %v751
      %v755 = vand.u32 %v682, 65535
      %v756 = vshra.s32 %v682, 16
      %v757 = vcvt.s32.f32 %v755
      %v758 = vcvt.s32.f32 %v756
      %759 = vmin.xlane.f32.xlu0 %v758
      %v760 = vpop.xlane.xlu0 %759
      %vm761 = vcmp.eq.f32.partialorder %v758, %v760
      %v762 = vsel %vm761, %v757, inf
      %763 = vmin.xlane.f32.xlu0 %v762
      %v764 = vpop.xlane.xlu0 %763
      %v765 = vcvt.f32.s32 %v764
      %v766 = vcvt.f32.s32 %v760
      %v767 = vshll.u32 %v766, 16
      %v768 = vadd.s32 %v767, %v765
      %v769 = vand.u32 %v683, 65535
      %v770 = vshra.s32 %v683, 16
      %v771 = vcvt.s32.f32 %v769
      %v772 = vcvt.s32.f32 %v770
      %773 = vmin.xlane.f32.xlu0 %v772
      %v774 = vpop.xlane.xlu0 %773
      %vm775 = vcmp.eq.f32.partialorder %v772, %v774
      %v776 = vsel %vm775, %v771, inf
      %777 = vmin.xlane.f32.xlu0 %v776
      %v778 = vpop.xlane.xlu0 %777
      %v779 = vcvt.f32.s32 %v778
      %v780 = vcvt.f32.s32 %v774
      %v781 = vshll.u32 %v780, 16
      %v782 = vadd.s32 %v781, %v779
      %v783 = vand.u32 %v684, 65535
      %v784 = vshra.s32 %v684, 16
      %v785 = vcvt.s32.f32 %v783
      %v786 = vcvt.s32.f32 %v784
      %787 = vmin.xlane.f32.xlu0 %v786
      %v788 = vpop.xlane.xlu0 %787
      %vm789 = vcmp.eq.f32.partialorder %v786, %v788
      %v790 = vsel %vm789, %v785, inf
      %791 = vmin.xlane.f32.xlu0 %v790
      %v792 = vpop.xlane.xlu0 %791
      %v793 = vcvt.f32.s32 %v792
      %v794 = vcvt.f32.s32 %v788
      %v795 = vshll.u32 %v794, 16
      %v796 = vadd.s32 %v795, %v793
      %vm797 = vcmp.eq.s32.totalorder %v554, %v698
      %vm798 = vcmp.eq.s32.totalorder %v554, %v712
      %vm799 = vcmp.eq.s32.totalorder %v554, %v726
      %vm800 = vcmp.eq.s32.totalorder %v554, %v740
      %vm801 = vcmp.eq.s32.totalorder %v554, %v754
      %vm802 = vcmp.eq.s32.totalorder %v554, %v768
      %vm803 = vcmp.eq.s32.totalorder %v554, %v782
      %vm804 = vcmp.eq.s32.totalorder %v554, %v796
      %v805 = vsel %vm797, -inf, %v515
      %v806 = vsel %vm798, -inf, %v520
      %v807 = vsel %vm799, -inf, %v525
      %v808 = vsel %vm800, -inf, %v530
      %v809 = vsel %vm801, -inf, %v535
      %v810 = vsel %vm802, -inf, %v540
      %v811 = vsel %vm803, -inf, %v545
      %v812 = vsel %vm804, -inf, %v550
      %813 = vmax.xlane.f32.xlu0 %v805
      %v814 = vpop.xlane.xlu0 %813
      %815 = vmax.xlane.f32.xlu0 %v806
      %v816 = vpop.xlane.xlu0 %815
      %817 = vmax.xlane.f32.xlu0 %v807
      %v818 = vpop.xlane.xlu0 %817
      %819 = vmax.xlane.f32.xlu0 %v808
      %v820 = vpop.xlane.xlu0 %819
      %821 = vmax.xlane.f32.xlu0 %v809
      %v822 = vpop.xlane.xlu0 %821
      %823 = vmax.xlane.f32.xlu0 %v810
      %v824 = vpop.xlane.xlu0 %823
      %825 = vmax.xlane.f32.xlu0 %v811
      %v826 = vpop.xlane.xlu0 %825
      %827 = vmax.xlane.f32.xlu0 %v812
      %v828 = vpop.xlane.xlu0 %827
      %vm829 = vcmp.eq.f32.partialorder %v805, %v814
      %vm830 = vcmp.eq.f32.partialorder %v806, %v816
      %vm831 = vcmp.eq.f32.partialorder %v807, %v818
      %vm832 = vcmp.eq.f32.partialorder %v808, %v820
      %vm833 = vcmp.eq.f32.partialorder %v809, %v822
      %vm834 = vcmp.eq.f32.partialorder %v810, %v824
      %vm835 = vcmp.eq.f32.partialorder %v811, %v826
      %vm836 = vcmp.eq.f32.partialorder %v812, %v828
      %v837 = vsel %vm829, %v554, 128
      %v838 = vsel %vm830, %v554, 128
      %v839 = vsel %vm831, %v554, 128
      %v840 = vsel %vm832, %v554, 128
      %v841 = vsel %vm833, %v554, 128
      %v842 = vsel %vm834, %v554, 128
      %v843 = vsel %vm835, %v554, 128
      %v844 = vsel %vm836, %v554, 128
      %v845 = vand.u32 %v837, 65535
      %v846 = vshra.s32 %v837, 16
      %v847 = vcvt.s32.f32 %v845
      %v848 = vcvt.s32.f32 %v846
      %849 = vmin.xlane.f32.xlu0 %v848
      %v850 = vpop.xlane.xlu0 %849
      %vm851 = vcmp.eq.f32.partialorder %v848, %v850
      %v852 = vsel %vm851, %v847, inf
      %853 = vmin.xlane.f32.xlu0 %v852
      %v854 = vpop.xlane.xlu0 %853
      %v855 = vcvt.f32.s32 %v854
      %v856 = vcvt.f32.s32 %v850
      %v857 = vshll.u32 %v856, 16
      %v858 = vadd.s32 %v857, %v855
      %v859 = vand.u32 %v838, 65535
      %v860 = vshra.s32 %v838, 16
      %v861 = vcvt.s32.f32 %v859
      %v862 = vcvt.s32.f32 %v860
      %863 = vmin.xlane.f32.xlu0 %v862
      %v864 = vpop.xlane.xlu0 %863
      %vm865 = vcmp.eq.f32.partialorder %v862, %v864
      %v866 = vsel %vm865, %v861, inf
      %867 = vmin.xlane.f32.xlu0 %v866
      %v868 = vpop.xlane.xlu0 %867
      %v869 = vcvt.f32.s32 %v868
      %v870 = vcvt.f32.s32 %v864
      %v871 = vshll.u32 %v870, 16
      %v872 = vadd.s32 %v871, %v869
      %v873 = vand.u32 %v839, 65535
      %v874 = vshra.s32 %v839, 16
      %v875 = vcvt.s32.f32 %v873
      %v876 = vcvt.s32.f32 %v874
      %877 = vmin.xlane.f32.xlu0 %v876
      %v878 = vpop.xlane.xlu0 %877
      %vm879 = vcmp.eq.f32.partialorder %v876, %v878
      %v880 = vsel %vm879, %v875, inf
      %881 = vmin.xlane.f32.xlu0 %v880
      %v882 = vpop.xlane.xlu0 %881
      %v883 = vcvt.f32.s32 %v882
      %v884 = vcvt.f32.s32 %v878
      %v885 = vshll.u32 %v884, 16
      %v886 = vadd.s32 %v885, %v883
      %v887 = vand.u32 %v840, 65535
      %v888 = vshra.s32 %v840, 16
      %v889 = vcvt.s32.f32 %v887
      %v890 = vcvt.s32.f32 %v888
      %891 = vmin.xlane.f32.xlu0 %v890
      %v892 = vpop.xlane.xlu0 %891
      %vm893 = vcmp.eq.f32.partialorder %v890, %v892
      %v894 = vsel %vm893, %v889, inf
      %895 = vmin.xlane.f32.xlu0 %v894
      %v896 = vpop.xlane.xlu0 %895
      %v897 = vcvt.f32.s32 %v896
      %v898 = vcvt.f32.s32 %v892
      %v899 = vshll.u32 %v898, 16
      %v900 = vadd.s32 %v899, %v897
      %v901 = vand.u32 %v841, 65535
      %v902 = vshra.s32 %v841, 16
      %v903 = vcvt.s32.f32 %v901
      %v904 = vcvt.s32.f32 %v902
      %905 = vmin.xlane.f32.xlu0 %v904
      %v906 = vpop.xlane.xlu0 %905
      %vm907 = vcmp.eq.f32.partialorder %v904, %v906
      %v908 = vsel %vm907, %v903, inf
      %909 = vmin.xlane.f32.xlu0 %v908
      %v910 = vpop.xlane.xlu0 %909
      %v911 = vcvt.f32.s32 %v910
      %v912 = vcvt.f32.s32 %v906
      %v913 = vshll.u32 %v912, 16
      %v914 = vadd.s32 %v913, %v911
      %v915 = vand.u32 %v842, 65535
      %v916 = vshra.s32 %v842, 16
      %v917 = vcvt.s32.f32 %v915
      %v918 = vcvt.s32.f32 %v916
      %919 = vmin.xlane.f32.xlu0 %v918
      %v920 = vpop.xlane.xlu0 %919
      %vm921 = vcmp.eq.f32.partialorder %v918, %v920
      %v922 = vsel %vm921, %v917, inf
      %923 = vmin.xlane.f32.xlu0 %v922
      %v924 = vpop.xlane.xlu0 %923
      %v925 = vcvt.f32.s32 %v924
      %v926 = vcvt.f32.s32 %v920
      %v927 = vshll.u32 %v926, 16
      %v928 = vadd.s32 %v927, %v925
      %v929 = vand.u32 %v843, 65535
      %v930 = vshra.s32 %v843, 16
      %v931 = vcvt.s32.f32 %v929
      %v932 = vcvt.s32.f32 %v930
      %933 = vmin.xlane.f32.xlu0 %v932
      %v934 = vpop.xlane.xlu0 %933
      %vm935 = vcmp.eq.f32.partialorder %v932, %v934
      %v936 = vsel %vm935, %v931, inf
      %937 = vmin.xlane.f32.xlu0 %v936
      %v938 = vpop.xlane.xlu0 %937
      %v939 = vcvt.f32.s32 %v938
      %v940 = vcvt.f32.s32 %v934
      %v941 = vshll.u32 %v940, 16
      %v942 = vadd.s32 %v941, %v939
      %v943 = vand.u32 %v844, 65535
      %v944 = vshra.s32 %v844, 16
      %v945 = vcvt.s32.f32 %v943
      %v946 = vcvt.s32.f32 %v944
      %947 = vmin.xlane.f32.xlu0 %v946
      %v948 = vpop.xlane.xlu0 %947
      %vm949 = vcmp.eq.f32.partialorder %v946, %v948
      %v950 = vsel %vm949, %v945, inf
      %951 = vmin.xlane.f32.xlu0 %v950
      %v952 = vpop.xlane.xlu0 %951
      %v953 = vcvt.f32.s32 %v952
      %v954 = vcvt.f32.s32 %v948
      %v955 = vshll.u32 %v954, 16
      %v956 = vadd.s32 %v955, %v953
      %vm957 = vcmp.eq.s32.totalorder %v554, %v858
      %vm958 = vcmp.eq.s32.totalorder %v554, %v872
      %vm959 = vcmp.eq.s32.totalorder %v554, %v886
      %vm960 = vcmp.eq.s32.totalorder %v554, %v900
      %vm961 = vcmp.eq.s32.totalorder %v554, %v914
      %vm962 = vcmp.eq.s32.totalorder %v554, %v928
      %vm963 = vcmp.eq.s32.totalorder %v554, %v942
      %vm964 = vcmp.eq.s32.totalorder %v554, %v956
      %v965 = vsel %vm957, -inf, %v805
      %v966 = vsel %vm958, -inf, %v806
      %v967 = vsel %vm959, -inf, %v807
      %v968 = vsel %vm960, -inf, %v808
      %v969 = vsel %vm961, -inf, %v809
      %v970 = vsel %vm962, -inf, %v810
      %v971 = vsel %vm963, -inf, %v811
      %v972 = vsel %vm964, -inf, %v812
      %973 = vmax.xlane.f32.xlu0 %v965
      %v974 = vpop.xlane.xlu0 %973
      %975 = vmax.xlane.f32.xlu0 %v966
      %v976 = vpop.xlane.xlu0 %975
      %977 = vmax.xlane.f32.xlu0 %v967
      %v978 = vpop.xlane.xlu0 %977
      %979 = vmax.xlane.f32.xlu0 %v968
      %v980 = vpop.xlane.xlu0 %979
      %981 = vmax.xlane.f32.xlu0 %v969
      %v982 = vpop.xlane.xlu0 %981
      %983 = vmax.xlane.f32.xlu0 %v970
      %v984 = vpop.xlane.xlu0 %983
      %985 = vmax.xlane.f32.xlu0 %v971
      %v986 = vpop.xlane.xlu0 %985
      %987 = vmax.xlane.f32.xlu0 %v972
      %v988 = vpop.xlane.xlu0 %987
      %vm989 = vcmp.eq.f32.partialorder %v965, %v974
      %vm990 = vcmp.eq.f32.partialorder %v966, %v976
      %vm991 = vcmp.eq.f32.partialorder %v967, %v978
      %vm992 = vcmp.eq.f32.partialorder %v968, %v980
      %vm993 = vcmp.eq.f32.partialorder %v969, %v982
      %vm994 = vcmp.eq.f32.partialorder %v970, %v984
      %vm995 = vcmp.eq.f32.partialorder %v971, %v986
      %vm996 = vcmp.eq.f32.partialorder %v972, %v988
      %v997 = vsel %vm989, %v554, 128
      %v998 = vsel %vm990, %v554, 128
      %v999 = vsel %vm991, %v554, 128
      %v1000 = vsel %vm992, %v554, 128
      %v1001 = vsel %vm993, %v554, 128
      %v1002 = vsel %vm994, %v554, 128
      %v1003 = vsel %vm995, %v554, 128
      %v1004 = vsel %vm996, %v554, 128
      %v1005 = vand.u32 %v997, 65535
      %v1006 = vshra.s32 %v997, 16
      %v1007 = vcvt.s32.f32 %v1005
      %v1008 = vcvt.s32.f32 %v1006
      %1009 = vmin.xlane.f32.xlu0 %v1008
      %v1010 = vpop.xlane.xlu0 %1009
      %vm1011 = vcmp.eq.f32.partialorder %v1008, %v1010
      %v1012 = vsel %vm1011, %v1007, inf
      %1013 = vmin.xlane.f32.xlu0 %v1012
      %v1014 = vpop.xlane.xlu0 %1013
      %v1015 = vcvt.f32.s32 %v1014
      %v1016 = vcvt.f32.s32 %v1010
      %v1017 = vshll.u32 %v1016, 16
      %v1018 = vadd.s32 %v1017, %v1015
      %v1019 = vand.u32 %v998, 65535
      %v1020 = vshra.s32 %v998, 16
      %v1021 = vcvt.s32.f32 %v1019
      %v1022 = vcvt.s32.f32 %v1020
      %1023 = vmin.xlane.f32.xlu0 %v1022
      %v1024 = vpop.xlane.xlu0 %1023
      %vm1025 = vcmp.eq.f32.partialorder %v1022, %v1024
      %v1026 = vsel %vm1025, %v1021, inf
      %1027 = vmin.xlane.f32.xlu0 %v1026
      %v1028 = vpop.xlane.xlu0 %1027
      %v1029 = vcvt.f32.s32 %v1028
      %v1030 = vcvt.f32.s32 %v1024
      %v1031 = vshll.u32 %v1030, 16
      %v1032 = vadd.s32 %v1031, %v1029
      %v1033 = vand.u32 %v999, 65535
      %v1034 = vshra.s32 %v999, 16
      %v1035 = vcvt.s32.f32 %v1033
      %v1036 = vcvt.s32.f32 %v1034
      %1037 = vmin.xlane.f32.xlu0 %v1036
      %v1038 = vpop.xlane.xlu0 %1037
      %vm1039 = vcmp.eq.f32.partialorder %v1036, %v1038
      %v1040 = vsel %vm1039, %v1035, inf
      %1041 = vmin.xlane.f32.xlu0 %v1040
      %v1042 = vpop.xlane.xlu0 %1041
      %v1043 = vcvt.f32.s32 %v1042
      %v1044 = vcvt.f32.s32 %v1038
      %v1045 = vshll.u32 %v1044, 16
      %v1046 = vadd.s32 %v1045, %v1043
      %v1047 = vand.u32 %v1000, 65535
      %v1048 = vshra.s32 %v1000, 16
      %v1049 = vcvt.s32.f32 %v1047
      %v1050 = vcvt.s32.f32 %v1048
      %1051 = vmin.xlane.f32.xlu0 %v1050
      %v1052 = vpop.xlane.xlu0 %1051
      %vm1053 = vcmp.eq.f32.partialorder %v1050, %v1052
      %v1054 = vsel %vm1053, %v1049, inf
      %1055 = vmin.xlane.f32.xlu0 %v1054
      %v1056 = vpop.xlane.xlu0 %1055
      %v1057 = vcvt.f32.s32 %v1056
      %v1058 = vcvt.f32.s32 %v1052
      %v1059 = vshll.u32 %v1058, 16
      %v1060 = vadd.s32 %v1059, %v1057
      %v1061 = vand.u32 %v1001, 65535
      %v1062 = vshra.s32 %v1001, 16
      %v1063 = vcvt.s32.f32 %v1061
      %v1064 = vcvt.s32.f32 %v1062
      %1065 = vmin.xlane.f32.xlu0 %v1064
      %v1066 = vpop.xlane.xlu0 %1065
      %vm1067 = vcmp.eq.f32.partialorder %v1064, %v1066
      %v1068 = vsel %vm1067, %v1063, inf
      %1069 = vmin.xlane.f32.xlu0 %v1068
      %v1070 = vpop.xlane.xlu0 %1069
      %v1071 = vcvt.f32.s32 %v1070
      %v1072 = vcvt.f32.s32 %v1066
      %v1073 = vshll.u32 %v1072, 16
      %v1074 = vadd.s32 %v1073, %v1071
      %v1075 = vand.u32 %v1002, 65535
      %v1076 = vshra.s32 %v1002, 16
      %v1077 = vcvt.s32.f32 %v1075
      %v1078 = vcvt.s32.f32 %v1076
      %1079 = vmin.xlane.f32.xlu0 %v1078
      %v1080 = vpop.xlane.xlu0 %1079
      %vm1081 = vcmp.eq.f32.partialorder %v1078, %v1080
      %v1082 = vsel %vm1081, %v1077, inf
      %1083 = vmin.xlane.f32.xlu0 %v1082
      %v1084 = vpop.xlane.xlu0 %1083
      %v1085 = vcvt.f32.s32 %v1084
      %v1086 = vcvt.f32.s32 %v1080
      %v1087 = vshll.u32 %v1086, 16
      %v1088 = vadd.s32 %v1087, %v1085
      %v1089 = vand.u32 %v1003, 65535
      %v1090 = vshra.s32 %v1003, 16
      %v1091 = vcvt.s32.f32 %v1089
      %v1092 = vcvt.s32.f32 %v1090
      %1093 = vmin.xlane.f32.xlu0 %v1092
      %v1094 = vpop.xlane.xlu0 %1093
      %vm1095 = vcmp.eq.f32.partialorder %v1092, %v1094
      %v1096 = vsel %vm1095, %v1091, inf
      %1097 = vmin.xlane.f32.xlu0 %v1096
      %v1098 = vpop.xlane.xlu0 %1097
      %v1099 = vcvt.f32.s32 %v1098
      %v1100 = vcvt.f32.s32 %v1094
      %v1101 = vshll.u32 %v1100, 16
      %v1102 = vadd.s32 %v1101, %v1099
      %v1103 = vand.u32 %v1004, 65535
      %v1104 = vshra.s32 %v1004, 16
      %v1105 = vcvt.s32.f32 %v1103
      %v1106 = vcvt.s32.f32 %v1104
      %1107 = vmin.xlane.f32.xlu0 %v1106
      %v1108 = vpop.xlane.xlu0 %1107
      %vm1109 = vcmp.eq.f32.partialorder %v1106, %v1108
      %v1110 = vsel %vm1109, %v1105, inf
      %1111 = vmin.xlane.f32.xlu0 %v1110
      %v1112 = vpop.xlane.xlu0 %1111
      %v1113 = vcvt.f32.s32 %v1112
      %v1114 = vcvt.f32.s32 %v1108
      %v1115 = vshll.u32 %v1114, 16
      %v1116 = vadd.s32 %v1115, %v1113
      %vm1117 = vcmp.eq.s32.totalorder %v554, %v1018
      %vm1118 = vcmp.eq.s32.totalorder %v554, %v1032
      %vm1119 = vcmp.eq.s32.totalorder %v554, %v1046
      %vm1120 = vcmp.eq.s32.totalorder %v554, %v1060
      %vm1121 = vcmp.eq.s32.totalorder %v554, %v1074
      %vm1122 = vcmp.eq.s32.totalorder %v554, %v1088
      %vm1123 = vcmp.eq.s32.totalorder %v554, %v1102
      %vm1124 = vcmp.eq.s32.totalorder %v554, %v1116
      %v1125 = vsel %vm1117, -inf, %v965
      %v1126 = vsel %vm1118, -inf, %v966
      %v1127 = vsel %vm1119, -inf, %v967
      %v1128 = vsel %vm1120, -inf, %v968
      %v1129 = vsel %vm1121, -inf, %v969
      %v1130 = vsel %vm1122, -inf, %v970
      %v1131 = vsel %vm1123, -inf, %v971
      %v1132 = vsel %vm1124, -inf, %v972
      %1133 = vmax.xlane.f32.xlu0 %v1125
      %v1134 = vpop.xlane.xlu0 %1133
      %1135 = vmax.xlane.f32.xlu0 %v1126
      %v1136 = vpop.xlane.xlu0 %1135
      %1137 = vmax.xlane.f32.xlu0 %v1127
      %v1138 = vpop.xlane.xlu0 %1137
      %1139 = vmax.xlane.f32.xlu0 %v1128
      %v1140 = vpop.xlane.xlu0 %1139
      %1141 = vmax.xlane.f32.xlu0 %v1129
      %v1142 = vpop.xlane.xlu0 %1141
      %1143 = vmax.xlane.f32.xlu0 %v1130
      %v1144 = vpop.xlane.xlu0 %1143
      %1145 = vmax.xlane.f32.xlu0 %v1131
      %v1146 = vpop.xlane.xlu0 %1145
      %1147 = vmax.xlane.f32.xlu0 %v1132
      %v1148 = vpop.xlane.xlu0 %1147
      %vm1149 = vcmp.eq.f32.partialorder %v1125, %v1134
      %vm1150 = vcmp.eq.f32.partialorder %v1126, %v1136
      %vm1151 = vcmp.eq.f32.partialorder %v1127, %v1138
      %vm1152 = vcmp.eq.f32.partialorder %v1128, %v1140
      %vm1153 = vcmp.eq.f32.partialorder %v1129, %v1142
      %vm1154 = vcmp.eq.f32.partialorder %v1130, %v1144
      %vm1155 = vcmp.eq.f32.partialorder %v1131, %v1146
      %vm1156 = vcmp.eq.f32.partialorder %v1132, %v1148
      %v1157 = vsel %vm1149, %v554, 128
      %v1158 = vsel %vm1150, %v554, 128
      %v1159 = vsel %vm1151, %v554, 128
      %v1160 = vsel %vm1152, %v554, 128
      %v1161 = vsel %vm1153, %v554, 128
      %v1162 = vsel %vm1154, %v554, 128
      %v1163 = vsel %vm1155, %v554, 128
      %v1164 = vsel %vm1156, %v554, 128
      %v1165 = vand.u32 %v1157, 65535
      %v1166 = vshra.s32 %v1157, 16
      %v1167 = vcvt.s32.f32 %v1165
      %v1168 = vcvt.s32.f32 %v1166
      %1169 = vmin.xlane.f32.xlu0 %v1168
      %v1170 = vpop.xlane.xlu0 %1169
      %vm1171 = vcmp.eq.f32.partialorder %v1168, %v1170
      %v1172 = vsel %vm1171, %v1167, inf
      %1173 = vmin.xlane.f32.xlu0 %v1172
      %v1174 = vpop.xlane.xlu0 %1173
      %v1175 = vcvt.f32.s32 %v1174
      %v1176 = vcvt.f32.s32 %v1170
      %v1177 = vshll.u32 %v1176, 16
      %v1178 = vadd.s32 %v1177, %v1175
      %v1179 = vand.u32 %v1158, 65535
      %v1180 = vshra.s32 %v1158, 16
      %v1181 = vcvt.s32.f32 %v1179
      %v1182 = vcvt.s32.f32 %v1180
      %1183 = vmin.xlane.f32.xlu0 %v1182
      %v1184 = vpop.xlane.xlu0 %1183
      %vm1185 = vcmp.eq.f32.partialorder %v1182, %v1184
      %v1186 = vsel %vm1185, %v1181, inf
      %1187 = vmin.xlane.f32.xlu0 %v1186
      %v1188 = vpop.xlane.xlu0 %1187
      %v1189 = vcvt.f32.s32 %v1188
      %v1190 = vcvt.f32.s32 %v1184
      %v1191 = vshll.u32 %v1190, 16
      %v1192 = vadd.s32 %v1191, %v1189
      %v1193 = vand.u32 %v1159, 65535
      %v1194 = vshra.s32 %v1159, 16
      %v1195 = vcvt.s32.f32 %v1193
      %v1196 = vcvt.s32.f32 %v1194
      %1197 = vmin.xlane.f32.xlu0 %v1196
      %v1198 = vpop.xlane.xlu0 %1197
      %vm1199 = vcmp.eq.f32.partialorder %v1196, %v1198
      %v1200 = vsel %vm1199, %v1195, inf
      %1201 = vmin.xlane.f32.xlu0 %v1200
      %v1202 = vpop.xlane.xlu0 %1201
      %v1203 = vcvt.f32.s32 %v1202
      %v1204 = vcvt.f32.s32 %v1198
      %v1205 = vshll.u32 %v1204, 16
      %v1206 = vadd.s32 %v1205, %v1203
      %v1207 = vand.u32 %v1160, 65535
      %v1208 = vshra.s32 %v1160, 16
      %v1209 = vcvt.s32.f32 %v1207
      %v1210 = vcvt.s32.f32 %v1208
      %1211 = vmin.xlane.f32.xlu0 %v1210
      %v1212 = vpop.xlane.xlu0 %1211
      %vm1213 = vcmp.eq.f32.partialorder %v1210, %v1212
      %v1214 = vsel %vm1213, %v1209, inf
      %1215 = vmin.xlane.f32.xlu0 %v1214
      %v1216 = vpop.xlane.xlu0 %1215
      %v1217 = vcvt.f32.s32 %v1216
      %v1218 = vcvt.f32.s32 %v1212
      %v1219 = vshll.u32 %v1218, 16
      %v1220 = vadd.s32 %v1219, %v1217
      %v1221 = vand.u32 %v1161, 65535
      %v1222 = vshra.s32 %v1161, 16
      %v1223 = vcvt.s32.f32 %v1221
      %v1224 = vcvt.s32.f32 %v1222
      %1225 = vmin.xlane.f32.xlu0 %v1224
      %v1226 = vpop.xlane.xlu0 %1225
      %vm1227 = vcmp.eq.f32.partialorder %v1224, %v1226
      %v1228 = vsel %vm1227, %v1223, inf
      %1229 = vmin.xlane.f32.xlu0 %v1228
      %v1230 = vpop.xlane.xlu0 %1229
      %v1231 = vcvt.f32.s32 %v1230
      %v1232 = vcvt.f32.s32 %v1226
      %v1233 = vshll.u32 %v1232, 16
      %v1234 = vadd.s32 %v1233, %v1231
      %v1235 = vand.u32 %v1162, 65535
      %v1236 = vshra.s32 %v1162, 16
      %v1237 = vcvt.s32.f32 %v1235
      %v1238 = vcvt.s32.f32 %v1236
      %1239 = vmin.xlane.f32.xlu0 %v1238
      %v1240 = vpop.xlane.xlu0 %1239
      %vm1241 = vcmp.eq.f32.partialorder %v1238, %v1240
      %v1242 = vsel %vm1241, %v1237, inf
      %1243 = vmin.xlane.f32.xlu0 %v1242
      %v1244 = vpop.xlane.xlu0 %1243
      %v1245 = vcvt.f32.s32 %v1244
      %v1246 = vcvt.f32.s32 %v1240
      %v1247 = vshll.u32 %v1246, 16
      %v1248 = vadd.s32 %v1247, %v1245
      %v1249 = vand.u32 %v1163, 65535
      %v1250 = vshra.s32 %v1163, 16
      %v1251 = vcvt.s32.f32 %v1249
      %v1252 = vcvt.s32.f32 %v1250
      %1253 = vmin.xlane.f32.xlu0 %v1252
      %v1254 = vpop.xlane.xlu0 %1253
      %vm1255 = vcmp.eq.f32.partialorder %v1252, %v1254
      %v1256 = vsel %vm1255, %v1251, inf
      %1257 = vmin.xlane.f32.xlu0 %v1256
      %v1258 = vpop.xlane.xlu0 %1257
      %v1259 = vcvt.f32.s32 %v1258
      %v1260 = vcvt.f32.s32 %v1254
      %v1261 = vshll.u32 %v1260, 16
      %v1262 = vadd.s32 %v1261, %v1259
      %v1263 = vand.u32 %v1164, 65535
      %v1264 = vshra.s32 %v1164, 16
      %v1265 = vcvt.s32.f32 %v1263
      %v1266 = vcvt.s32.f32 %v1264
      %1267 = vmin.xlane.f32.xlu0 %v1266
      %v1268 = vpop.xlane.xlu0 %1267
      %vm1269 = vcmp.eq.f32.partialorder %v1266, %v1268
      %v1270 = vsel %vm1269, %v1265, inf
      %1271 = vmin.xlane.f32.xlu0 %v1270
      %v1272 = vpop.xlane.xlu0 %1271
      %v1273 = vcvt.f32.s32 %v1272
      %v1274 = vcvt.f32.s32 %v1268
      %v1275 = vshll.u32 %v1274, 16
      %v1276 = vadd.s32 %v1275, %v1273
      %vm1277 = vcmp.eq.s32.totalorder %v554, %v1178
      %vm1278 = vcmp.eq.s32.totalorder %v554, %v1192
      %vm1279 = vcmp.eq.s32.totalorder %v554, %v1206
      %vm1280 = vcmp.eq.s32.totalorder %v554, %v1220
      %vm1281 = vcmp.eq.s32.totalorder %v554, %v1234
      %vm1282 = vcmp.eq.s32.totalorder %v554, %v1248
      %vm1283 = vcmp.eq.s32.totalorder %v554, %v1262
      %vm1284 = vcmp.eq.s32.totalorder %v554, %v1276
      %v1285 = vsel %vm1277, -inf, %v1125
      %v1286 = vsel %vm1278, -inf, %v1126
      %v1287 = vsel %vm1279, -inf, %v1127
      %v1288 = vsel %vm1280, -inf, %v1128
      %v1289 = vsel %vm1281, -inf, %v1129
      %v1290 = vsel %vm1282, -inf, %v1130
      %v1291 = vsel %vm1283, -inf, %v1131
      %v1292 = vsel %vm1284, -inf, %v1132
      %1293 = vmax.xlane.f32.xlu0 %v1285
      %v1294 = vpop.xlane.xlu0 %1293
      %1295 = vmax.xlane.f32.xlu0 %v1286
      %v1296 = vpop.xlane.xlu0 %1295
      %1297 = vmax.xlane.f32.xlu0 %v1287
      %v1298 = vpop.xlane.xlu0 %1297
      %1299 = vmax.xlane.f32.xlu0 %v1288
      %v1300 = vpop.xlane.xlu0 %1299
      %1301 = vmax.xlane.f32.xlu0 %v1289
      %v1302 = vpop.xlane.xlu0 %1301
      %1303 = vmax.xlane.f32.xlu0 %v1290
      %v1304 = vpop.xlane.xlu0 %1303
      %1305 = vmax.xlane.f32.xlu0 %v1291
      %v1306 = vpop.xlane.xlu0 %1305
      %1307 = vmax.xlane.f32.xlu0 %v1292
      %v1308 = vpop.xlane.xlu0 %1307
      %vm1309 = vcmp.eq.f32.partialorder %v1285, %v1294
      %vm1310 = vcmp.eq.f32.partialorder %v1286, %v1296
      %vm1311 = vcmp.eq.f32.partialorder %v1287, %v1298
      %vm1312 = vcmp.eq.f32.partialorder %v1288, %v1300
      %vm1313 = vcmp.eq.f32.partialorder %v1289, %v1302
      %vm1314 = vcmp.eq.f32.partialorder %v1290, %v1304
      %vm1315 = vcmp.eq.f32.partialorder %v1291, %v1306
      %vm1316 = vcmp.eq.f32.partialorder %v1292, %v1308
      %v1317 = vsel %vm1309, %v554, 128
      %v1318 = vsel %vm1310, %v554, 128
      %v1319 = vsel %vm1311, %v554, 128
      %v1320 = vsel %vm1312, %v554, 128
      %v1321 = vsel %vm1313, %v554, 128
      %v1322 = vsel %vm1314, %v554, 128
      %v1323 = vsel %vm1315, %v554, 128
      %v1324 = vsel %vm1316, %v554, 128
      %v1325 = vand.u32 %v1317, 65535
      %v1326 = vshra.s32 %v1317, 16
      %v1327 = vcvt.s32.f32 %v1325
      %v1328 = vcvt.s32.f32 %v1326
      %1329 = vmin.xlane.f32.xlu0 %v1328
      %v1330 = vpop.xlane.xlu0 %1329
      %vm1331 = vcmp.eq.f32.partialorder %v1328, %v1330
      %v1332 = vsel %vm1331, %v1327, inf
      %1333 = vmin.xlane.f32.xlu0 %v1332
      %v1334 = vpop.xlane.xlu0 %1333
      %v1335 = vcvt.f32.s32 %v1334
      %v1336 = vcvt.f32.s32 %v1330
      %v1337 = vshll.u32 %v1336, 16
      %v1338 = vadd.s32 %v1337, %v1335
      %v1339 = vand.u32 %v1318, 65535
      %v1340 = vshra.s32 %v1318, 16
      %v1341 = vcvt.s32.f32 %v1339
      %v1342 = vcvt.s32.f32 %v1340
      %1343 = vmin.xlane.f32.xlu0 %v1342
      %v1344 = vpop.xlane.xlu0 %1343
      %vm1345 = vcmp.eq.f32.partialorder %v1342, %v1344
      %v1346 = vsel %vm1345, %v1341, inf
      %1347 = vmin.xlane.f32.xlu0 %v1346
      %v1348 = vpop.xlane.xlu0 %1347
      %v1349 = vcvt.f32.s32 %v1348
      %v1350 = vcvt.f32.s32 %v1344
      %v1351 = vshll.u32 %v1350, 16
      %v1352 = vadd.s32 %v1351, %v1349
      %v1353 = vand.u32 %v1319, 65535
      %v1354 = vshra.s32 %v1319, 16
      %v1355 = vcvt.s32.f32 %v1353
      %v1356 = vcvt.s32.f32 %v1354
      %1357 = vmin.xlane.f32.xlu0 %v1356
      %v1358 = vpop.xlane.xlu0 %1357
      %vm1359 = vcmp.eq.f32.partialorder %v1356, %v1358
      %v1360 = vsel %vm1359, %v1355, inf
      %1361 = vmin.xlane.f32.xlu0 %v1360
      %v1362 = vpop.xlane.xlu0 %1361
      %v1363 = vcvt.f32.s32 %v1362
      %v1364 = vcvt.f32.s32 %v1358
      %v1365 = vshll.u32 %v1364, 16
      %v1366 = vadd.s32 %v1365, %v1363
      %v1367 = vand.u32 %v1320, 65535
      %v1368 = vshra.s32 %v1320, 16
      %v1369 = vcvt.s32.f32 %v1367
      %v1370 = vcvt.s32.f32 %v1368
      %1371 = vmin.xlane.f32.xlu0 %v1370
      %v1372 = vpop.xlane.xlu0 %1371
      %vm1373 = vcmp.eq.f32.partialorder %v1370, %v1372
      %v1374 = vsel %vm1373, %v1369, inf
      %1375 = vmin.xlane.f32.xlu0 %v1374
      %v1376 = vpop.xlane.xlu0 %1375
      %v1377 = vcvt.f32.s32 %v1376
      %v1378 = vcvt.f32.s32 %v1372
      %v1379 = vshll.u32 %v1378, 16
      %v1380 = vadd.s32 %v1379, %v1377
      %v1381 = vand.u32 %v1321, 65535
      %v1382 = vshra.s32 %v1321, 16
      %v1383 = vcvt.s32.f32 %v1381
      %v1384 = vcvt.s32.f32 %v1382
      %1385 = vmin.xlane.f32.xlu0 %v1384
      %v1386 = vpop.xlane.xlu0 %1385
      %vm1387 = vcmp.eq.f32.partialorder %v1384, %v1386
      %v1388 = vsel %vm1387, %v1383, inf
      %1389 = vmin.xlane.f32.xlu0 %v1388
      %v1390 = vpop.xlane.xlu0 %1389
      %v1391 = vcvt.f32.s32 %v1390
      %v1392 = vcvt.f32.s32 %v1386
      %v1393 = vshll.u32 %v1392, 16
      %v1394 = vadd.s32 %v1393, %v1391
      %v1395 = vand.u32 %v1322, 65535
      %v1396 = vshra.s32 %v1322, 16
      %v1397 = vcvt.s32.f32 %v1395
      %v1398 = vcvt.s32.f32 %v1396
      %1399 = vmin.xlane.f32.xlu0 %v1398
      %v1400 = vpop.xlane.xlu0 %1399
      %vm1401 = vcmp.eq.f32.partialorder %v1398, %v1400
      %v1402 = vsel %vm1401, %v1397, inf
      %1403 = vmin.xlane.f32.xlu0 %v1402
      %v1404 = vpop.xlane.xlu0 %1403
      %v1405 = vcvt.f32.s32 %v1404
      %v1406 = vcvt.f32.s32 %v1400
      %v1407 = vshll.u32 %v1406, 16
      %v1408 = vadd.s32 %v1407, %v1405
      %v1409 = vand.u32 %v1323, 65535
      %v1410 = vshra.s32 %v1323, 16
      %v1411 = vcvt.s32.f32 %v1409
      %v1412 = vcvt.s32.f32 %v1410
      %1413 = vmin.xlane.f32.xlu0 %v1412
      %v1414 = vpop.xlane.xlu0 %1413
      %vm1415 = vcmp.eq.f32.partialorder %v1412, %v1414
      %v1416 = vsel %vm1415, %v1411, inf
      %1417 = vmin.xlane.f32.xlu0 %v1416
      %v1418 = vpop.xlane.xlu0 %1417
      %v1419 = vcvt.f32.s32 %v1418
      %v1420 = vcvt.f32.s32 %v1414
      %v1421 = vshll.u32 %v1420, 16
      %v1422 = vadd.s32 %v1421, %v1419
      %v1423 = vand.u32 %v1324, 65535
      %v1424 = vshra.s32 %v1324, 16
      %v1425 = vcvt.s32.f32 %v1423
      %v1426 = vcvt.s32.f32 %v1424
      %1427 = vmin.xlane.f32.xlu0 %v1426
      %v1428 = vpop.xlane.xlu0 %1427
      %vm1429 = vcmp.eq.f32.partialorder %v1426, %v1428
      %v1430 = vsel %vm1429, %v1425, inf
      %1431 = vmin.xlane.f32.xlu0 %v1430
      %v1432 = vpop.xlane.xlu0 %1431
      %v1433 = vcvt.f32.s32 %v1432
      %v1434 = vcvt.f32.s32 %v1428
      %v1435 = vshll.u32 %v1434, 16
      %v1436 = vadd.s32 %v1435, %v1433
      %vm1437 = vcmp.eq.s32.totalorder %v554, %v1338
      %vm1438 = vcmp.eq.s32.totalorder %v554, %v1352
      %vm1439 = vcmp.eq.s32.totalorder %v554, %v1366
      %vm1440 = vcmp.eq.s32.totalorder %v554, %v1380
      %vm1441 = vcmp.eq.s32.totalorder %v554, %v1394
      %vm1442 = vcmp.eq.s32.totalorder %v554, %v1408
      %vm1443 = vcmp.eq.s32.totalorder %v554, %v1422
      %vm1444 = vcmp.eq.s32.totalorder %v554, %v1436
      %v1445 = vsel %vm1437, -inf, %v1285
      %v1446 = vsel %vm1438, -inf, %v1286
      %v1447 = vsel %vm1439, -inf, %v1287
      %v1448 = vsel %vm1440, -inf, %v1288
      %v1449 = vsel %vm1441, -inf, %v1289
      %v1450 = vsel %vm1442, -inf, %v1290
      %v1451 = vsel %vm1443, -inf, %v1291
      %v1452 = vsel %vm1444, -inf, %v1292
      %1453 = vmax.xlane.f32.xlu0 %v1445
      %v1454 = vpop.xlane.xlu0 %1453
      %1455 = vmax.xlane.f32.xlu0 %v1446
      %v1456 = vpop.xlane.xlu0 %1455
      %1457 = vmax.xlane.f32.xlu0 %v1447
      %v1458 = vpop.xlane.xlu0 %1457
      %1459 = vmax.xlane.f32.xlu0 %v1448
      %v1460 = vpop.xlane.xlu0 %1459
      %1461 = vmax.xlane.f32.xlu0 %v1449
      %v1462 = vpop.xlane.xlu0 %1461
      %1463 = vmax.xlane.f32.xlu0 %v1450
      %v1464 = vpop.xlane.xlu0 %1463
      %1465 = vmax.xlane.f32.xlu0 %v1451
      %v1466 = vpop.xlane.xlu0 %1465
      %1467 = vmax.xlane.f32.xlu0 %v1452
      %v1468 = vpop.xlane.xlu0 %1467
      %vm1469 = vcmp.ge.f32.partialorder %v515, %v1454
      %vm1470 = vcmp.ge.f32.partialorder %v520, %v1456
      %vm1471 = vcmp.ge.f32.partialorder %v525, %v1458
      %vm1472 = vcmp.ge.f32.partialorder %v530, %v1460
      %vm1473 = vcmp.ge.f32.partialorder %v535, %v1462
      %vm1474 = vcmp.ge.f32.partialorder %v540, %v1464
      %vm1475 = vcmp.ge.f32.partialorder %v545, %v1466
      %vm1476 = vcmp.ge.f32.partialorder %v550, %v1468
      %vm1477 = vmxor %vm1469, 1
      %vm1478 = vmxor %vm1470, 1
      %vm1479 = vmxor %vm1471, 1
      %vm1480 = vmxor %vm1472, 1
      %vm1481 = vmxor %vm1473, 1
      %vm1482 = vmxor %vm1474, 1
      %vm1483 = vmxor %vm1475, 1
      %vm1484 = vmxor %vm1476, 1
      %vm1485 = vmor %vm605, %vm1477
      %vm1486 = vmor %vm606, %vm1478
      %vm1487 = vmor %vm607, %vm1479
      %vm1488 = vmor %vm608, %vm1480
      %vm1489 = vmor %vm609, %vm1481
      %vm1490 = vmor %vm610, %vm1482
      %vm1491 = vmor %vm611, %vm1483
      %vm1492 = vmor %vm612, %vm1484
      %v1493 = vsel %vm1485, %v621, -1e+09
      %v1494 = vsel %vm1486, %v622, -1e+09
      %v1495 = vsel %vm1487, %v623, -1e+09
      %v1496 = vsel %vm1488, %v624, -1e+09
      %v1497 = vsel %vm1489, %v625, -1e+09
      %v1498 = vsel %vm1490, %v626, -1e+09
      %v1499 = vsel %vm1491, %v627, -1e+09
      %v1500 = vsel %vm1492, %v628, -1e+09
      %1501 = vmax.xlane.f32.xlu0 %v1493
      %v1502 = vpop.xlane.xlu0 %1501
      %1503 = vmax.xlane.f32.xlu0 %v1494
      %v1504 = vpop.xlane.xlu0 %1503
      %1505 = vmax.xlane.f32.xlu0 %v1495
      %v1506 = vpop.xlane.xlu0 %1505
      %1507 = vmax.xlane.f32.xlu0 %v1496
      %v1508 = vpop.xlane.xlu0 %1507
      %1509 = vmax.xlane.f32.xlu0 %v1497
      %v1510 = vpop.xlane.xlu0 %1509
      %1511 = vmax.xlane.f32.xlu0 %v1498
      %v1512 = vpop.xlane.xlu0 %1511
      %1513 = vmax.xlane.f32.xlu0 %v1499
      %v1514 = vpop.xlane.xlu0 %1513
      %1515 = vmax.xlane.f32.xlu0 %v1500
      %v1516 = vpop.xlane.xlu0 %1515
      %v1517 = vsub.f32 %v1493, %v1502
      %v1518 = vsub.f32 %v1494, %v1504
      %v1519 = vsub.f32 %v1495, %v1506
      %v1520 = vsub.f32 %v1496, %v1508
      %v1521 = vsub.f32 %v1497, %v1510
      %v1522 = vsub.f32 %v1498, %v1512
      %v1523 = vsub.f32 %v1499, %v1514
      %v1524 = vsub.f32 %v1500, %v1516
      %v1525 = vmul.f32 %v1517, 1.442695
      %v1526 = vpow.pop %v1525
      %v1527 = vmul.f32 %v1518, 1.442695
      %v1528 = vpow.pop %v1527
      %v1529 = vmul.f32 %v1519, 1.442695
      %v1530 = vpow.pop %v1529
      %v1531 = vmul.f32 %v1520, 1.442695
      %v1532 = vpow.pop %v1531
      %v1533 = vmul.f32 %v1521, 1.442695
      %v1534 = vpow.pop %v1533
      %v1535 = vmul.f32 %v1522, 1.442695
      %v1536 = vpow.pop %v1535
      %v1537 = vmul.f32 %v1523, 1.442695
      %v1538 = vpow.pop %v1537
      %v1539 = vmul.f32 %v1524, 1.442695
      %v1540 = vpow.pop %v1539
      %1541 = vadd.xlane.f32.xlu0 %v1526
      %v1542 = vpop.xlane.xlu0 %1541
      %1543 = vadd.xlane.f32.xlu0 %v1528
      %v1544 = vpop.xlane.xlu0 %1543
      %1545 = vadd.xlane.f32.xlu0 %v1530
      %v1546 = vpop.xlane.xlu0 %1545
      %1547 = vadd.xlane.f32.xlu0 %v1532
      %v1548 = vpop.xlane.xlu0 %1547
      %1549 = vadd.xlane.f32.xlu0 %v1534
      %v1550 = vpop.xlane.xlu0 %1549
      %1551 = vadd.xlane.f32.xlu0 %v1536
      %v1552 = vpop.xlane.xlu0 %1551
      %1553 = vadd.xlane.f32.xlu0 %v1538
      %v1554 = vpop.xlane.xlu0 %1553
      %1555 = vadd.xlane.f32.xlu0 %v1540
      %v1556 = vpop.xlane.xlu0 %1555
      %v1557 = vlog2.pop %v1542
      %v1558 = vmul.f32 %v1557, 0.6931472
      %v1559 = vlog2.pop %v1544
      %v1560 = vmul.f32 %v1559, 0.6931472
      %v1561 = vlog2.pop %v1546
      %v1562 = vmul.f32 %v1561, 0.6931472
      %v1563 = vlog2.pop %v1548
      %v1564 = vmul.f32 %v1563, 0.6931472
      %v1565 = vlog2.pop %v1550
      %v1566 = vmul.f32 %v1565, 0.6931472
      %v1567 = vlog2.pop %v1552
      %v1568 = vmul.f32 %v1567, 0.6931472
      %v1569 = vlog2.pop %v1554
      %v1570 = vmul.f32 %v1569, 0.6931472
      %v1571 = vlog2.pop %v1556
      %v1572 = vmul.f32 %v1571, 0.6931472
      %v1573 = vadd.f32 %v1502, %v1558
      %v1574 = vadd.f32 %v1504, %v1560
      %v1575 = vadd.f32 %v1506, %v1562
      %v1576 = vadd.f32 %v1508, %v1564
      %v1577 = vadd.f32 %v1510, %v1566
      %v1578 = vadd.f32 %v1512, %v1568
      %v1579 = vadd.f32 %v1514, %v1570
      %v1580 = vadd.f32 %v1516, %v1572
      %v1581 = vsub.f32 %v1573, %v638
      %v1582 = vsub.f32 %v1574, %v640
      %v1583 = vsub.f32 %v1575, %v642
      %v1584 = vsub.f32 %v1576, %v644
      %v1585 = vsub.f32 %v1577, %v646
      %v1586 = vsub.f32 %v1578, %v648
      %v1587 = vsub.f32 %v1579, %v650
      %v1588 = vsub.f32 %v1580, %v652
      %vm1589 = vcmask 7168
      %1590 = vst.msk [vmem:[%s256] sm:$0xff] %vm1589, %v1581
      %1591 = vst.msk [vmem:[%s256 + $0x8] sm:$0xff] %vm1589, %v1582
      %1592 = vst.msk [vmem:[%s256 + $0x10] sm:$0xff] %vm1589, %v1583
      %1593 = vst.msk [vmem:[%s256 + $0x18] sm:$0xff] %vm1589, %v1584
      %1594 = vst.msk [vmem:[%s256 + $0x20] sm:$0xff] %vm1589, %v1585
      %1595 = vst.msk [vmem:[%s256 + $0x28] sm:$0xff] %vm1589, %v1586
      %1596 = vst.msk [vmem:[%s256 + $0x30] sm:$0xff] %vm1589, %v1587
      %1597 = vst.msk [vmem:[%s256 + $0x38] sm:$0xff] %vm1589, %v1588
      %vm1598 = vcmp.eq.f32.partialorder %v1493, %v1502
      %vm1599 = vcmp.eq.f32.partialorder %v1494, %v1504
      %vm1600 = vcmp.eq.f32.partialorder %v1495, %v1506
      %vm1601 = vcmp.eq.f32.partialorder %v1496, %v1508
      %vm1602 = vcmp.eq.f32.partialorder %v1497, %v1510
      %vm1603 = vcmp.eq.f32.partialorder %v1498, %v1512
      %vm1604 = vcmp.eq.f32.partialorder %v1499, %v1514
      %vm1605 = vcmp.eq.f32.partialorder %v1500, %v1516
      %v1606 = vsel %vm1598, %v554, 128
      %v1607 = vsel %vm1599, %v554, 128
      %v1608 = vsel %vm1600, %v554, 128
      %v1609 = vsel %vm1601, %v554, 128
      %v1610 = vsel %vm1602, %v554, 128
      %v1611 = vsel %vm1603, %v554, 128
      %v1612 = vsel %vm1604, %v554, 128
      %v1613 = vsel %vm1605, %v554, 128
      %v1614 = vand.u32 %v1606, 65535
      %v1615 = vshra.s32 %v1606, 16
      %v1616 = vcvt.s32.f32 %v1614
      %v1617 = vcvt.s32.f32 %v1615
      %1618 = vmin.xlane.f32.xlu0 %v1617
      %v1619 = vpop.xlane.xlu0 %1618
      %vm1620 = vcmp.eq.f32.partialorder %v1617, %v1619
      %v1621 = vsel %vm1620, %v1616, inf
      %1622 = vmin.xlane.f32.xlu0 %v1621
      %v1623 = vpop.xlane.xlu0 %1622
      %v1624 = vcvt.f32.s32 %v1623
      %v1625 = vcvt.f32.s32 %v1619
      %v1626 = vshll.u32 %v1625, 16
      %v1627 = vadd.s32 %v1626, %v1624
      %v1628 = vand.u32 %v1607, 65535
      %v1629 = vshra.s32 %v1607, 16
      %v1630 = vcvt.s32.f32 %v1628
      %v1631 = vcvt.s32.f32 %v1629
      %1632 = vmin.xlane.f32.xlu0 %v1631
      %v1633 = vpop.xlane.xlu0 %1632
      %vm1634 = vcmp.eq.f32.partialorder %v1631, %v1633
      %v1635 = vsel %vm1634, %v1630, inf
      %1636 = vmin.xlane.f32.xlu0 %v1635
      %v1637 = vpop.xlane.xlu0 %1636
      %v1638 = vcvt.f32.s32 %v1637
      %v1639 = vcvt.f32.s32 %v1633
      %v1640 = vshll.u32 %v1639, 16
      %v1641 = vadd.s32 %v1640, %v1638
      %v1642 = vand.u32 %v1608, 65535
      %v1643 = vshra.s32 %v1608, 16
      %v1644 = vcvt.s32.f32 %v1642
      %v1645 = vcvt.s32.f32 %v1643
      %1646 = vmin.xlane.f32.xlu0 %v1645
      %v1647 = vpop.xlane.xlu0 %1646
      %vm1648 = vcmp.eq.f32.partialorder %v1645, %v1647
      %v1649 = vsel %vm1648, %v1644, inf
      %1650 = vmin.xlane.f32.xlu0 %v1649
      %v1651 = vpop.xlane.xlu0 %1650
      %v1652 = vcvt.f32.s32 %v1651
      %v1653 = vcvt.f32.s32 %v1647
      %v1654 = vshll.u32 %v1653, 16
      %v1655 = vadd.s32 %v1654, %v1652
      %v1656 = vand.u32 %v1609, 65535
      %v1657 = vshra.s32 %v1609, 16
      %v1658 = vcvt.s32.f32 %v1656
      %v1659 = vcvt.s32.f32 %v1657
      %1660 = vmin.xlane.f32.xlu0 %v1659
      %v1661 = vpop.xlane.xlu0 %1660
      %vm1662 = vcmp.eq.f32.partialorder %v1659, %v1661
      %v1663 = vsel %vm1662, %v1658, inf
      %1664 = vmin.xlane.f32.xlu0 %v1663
      %v1665 = vpop.xlane.xlu0 %1664
      %v1666 = vcvt.f32.s32 %v1665
      %v1667 = vcvt.f32.s32 %v1661
      %v1668 = vshll.u32 %v1667, 16
      %v1669 = vadd.s32 %v1668, %v1666
      %v1670 = vand.u32 %v1610, 65535
      %v1671 = vshra.s32 %v1610, 16
      %v1672 = vcvt.s32.f32 %v1670
      %v1673 = vcvt.s32.f32 %v1671
      %1674 = vmin.xlane.f32.xlu0 %v1673
      %v1675 = vpop.xlane.xlu0 %1674
      %vm1676 = vcmp.eq.f32.partialorder %v1673, %v1675
      %v1677 = vsel %vm1676, %v1672, inf
      %1678 = vmin.xlane.f32.xlu0 %v1677
      %v1679 = vpop.xlane.xlu0 %1678
      %v1680 = vcvt.f32.s32 %v1679
      %v1681 = vcvt.f32.s32 %v1675
      %v1682 = vshll.u32 %v1681, 16
      %v1683 = vadd.s32 %v1682, %v1680
      %v1684 = vand.u32 %v1611, 65535
      %v1685 = vshra.s32 %v1611, 16
      %v1686 = vcvt.s32.f32 %v1684
      %v1687 = vcvt.s32.f32 %v1685
      %1688 = vmin.xlane.f32.xlu0 %v1687
      %v1689 = vpop.xlane.xlu0 %1688
      %vm1690 = vcmp.eq.f32.partialorder %v1687, %v1689
      %v1691 = vsel %vm1690, %v1686, inf
      %1692 = vmin.xlane.f32.xlu0 %v1691
      %v1693 = vpop.xlane.xlu0 %1692
      %v1694 = vcvt.f32.s32 %v1693
      %v1695 = vcvt.f32.s32 %v1689
      %v1696 = vshll.u32 %v1695, 16
      %v1697 = vadd.s32 %v1696, %v1694
      %v1698 = vand.u32 %v1612, 65535
      %v1699 = vshra.s32 %v1612, 16
      %v1700 = vcvt.s32.f32 %v1698
      %v1701 = vcvt.s32.f32 %v1699
      %1702 = vmin.xlane.f32.xlu0 %v1701
      %v1703 = vpop.xlane.xlu0 %1702
      %vm1704 = vcmp.eq.f32.partialorder %v1701, %v1703
      %v1705 = vsel %vm1704, %v1700, inf
      %1706 = vmin.xlane.f32.xlu0 %v1705
      %v1707 = vpop.xlane.xlu0 %1706
      %v1708 = vcvt.f32.s32 %v1707
      %v1709 = vcvt.f32.s32 %v1703
      %v1710 = vshll.u32 %v1709, 16
      %v1711 = vadd.s32 %v1710, %v1708
      %v1712 = vand.u32 %v1613, 65535
      %v1713 = vshra.s32 %v1613, 16
      %v1714 = vcvt.s32.f32 %v1712
      %v1715 = vcvt.s32.f32 %v1713
      %1716 = vmin.xlane.f32.xlu0 %v1715
      %v1717 = vpop.xlane.xlu0 %1716
      %vm1718 = vcmp.eq.f32.partialorder %v1715, %v1717
      %v1719 = vsel %vm1718, %v1714, inf
      %1720 = vmin.xlane.f32.xlu0 %v1719
      %v1721 = vpop.xlane.xlu0 %1720
      %v1722 = vcvt.f32.s32 %v1721
      %v1723 = vcvt.f32.s32 %v1717
      %v1724 = vshll.u32 %v1723, 16
      %v1725 = vadd.s32 %v1724, %v1722
      %vm1726 = vcmp.eq.s32.totalorder %v1627, %v597
      %vm1727 = vcmp.eq.s32.totalorder %v1641, %v598
      %vm1728 = vcmp.eq.s32.totalorder %v1655, %v599
      %vm1729 = vcmp.eq.s32.totalorder %v1669, %v600
      %vm1730 = vcmp.eq.s32.totalorder %v1683, %v601
      %vm1731 = vcmp.eq.s32.totalorder %v1697, %v602
      %vm1732 = vcmp.eq.s32.totalorder %v1711, %v603
      %vm1733 = vcmp.eq.s32.totalorder %v1725, %v604
      %v1734 = vsel %vm1726, 1, 0
      %v1735 = vsel %vm1727, 1, 0
      %v1736 = vsel %vm1728, 1, 0
      %v1737 = vsel %vm1729, 1, 0
      %v1738 = vsel %vm1730, 1, 0
      %v1739 = vsel %vm1731, 1, 0
      %v1740 = vsel %vm1732, 1, 0
      %v1741 = vsel %vm1733, 1, 0
      %v1742 = vcvt.s32.f32 %v1734
      %v1743 = vcvt.s32.f32 %v1735
      %v1744 = vcvt.s32.f32 %v1736
      %v1745 = vcvt.s32.f32 %v1737
      %v1746 = vcvt.s32.f32 %v1738
      %v1747 = vcvt.s32.f32 %v1739
      %v1748 = vcvt.s32.f32 %v1740
      %v1749 = vcvt.s32.f32 %v1741
      %1750 = vst.msk [vmem:[%s262] sm:$0xff] %vm1589, %v1742
      %1751 = vst.msk [vmem:[%s262 + $0x8] sm:$0xff] %vm1589, %v1743
      %1752 = vst.msk [vmem:[%s262 + $0x10] sm:$0xff] %vm1589, %v1744
      %1753 = vst.msk [vmem:[%s262 + $0x18] sm:$0xff] %vm1589, %v1745
      %1754 = vst.msk [vmem:[%s262 + $0x20] sm:$0xff] %vm1589, %v1746
      %1755 = vst.msk [vmem:[%s262 + $0x28] sm:$0xff] %vm1589, %v1747
      %1756 = vst.msk [vmem:[%s262 + $0x30] sm:$0xff] %vm1589, %v1748
      %1757 = vst.msk [vmem:[%s262 + $0x38] sm:$0xff] %vm1589, %v1749
      %s1758 = smul.u32 8, %s17
      %p1759 = scmp.lt.s32.totalorder %s1758, 15
      %s1760 = scalar_select %p1759, %s1758, 15
      %s1761 = smul.addr %s1760, 8
      %s1762 = scalar_lea.vmem %s4, %s1761
      %s1763 = smul.u32 8, %s17
      %p1764 = scmp.lt.s32.totalorder %s1763, 15
      %s1765 = scalar_select %p1764, %s1763, 15
      %s1766 = smul.addr %s1765, 8
      %s1767 = scalar_lea.vmem %s5, %s1766
      // Predicated region
      $region37: #{tpu_custom_call.1} parent=35 // pred_check
        %p1768 = pneg %p129
      $region38: #{tpu_custom_call.1} parent=35 // pred_check_branch
        %1770 = sbr.rel (%p1768) target = $region40
      $region39: #{tpu_custom_call.1} parent=35 // pred_region
        %s1771 = smul.u32 8, %s17
      $region40: #{tpu_custom_call.1} parent=35 // pred_fallthru
        _
      // Predicated region
      $region41: #{tpu_custom_call.1} parent=35 // pred_check
        %p1772 = pneg %p155
      $region42: #{tpu_custom_call.1} parent=35 // pred_check_branch
        %1774 = sbr.rel (%p1772) target = $region44
      $region43: #{tpu_custom_call.1} parent=35 // pred_region
        %s1775 = smul.u32 8, %s17
      $region44: #{tpu_custom_call.1} parent=35 // pred_fallthru
        _
    $region36: #{tpu_custom_call.1} parent=5 // pred_fallthru
      _
    %p1776 = scmp.le.s32.totalorder 2, %s12
    // Predicated region
    $region45: #{tpu_custom_call.1} parent=5 // pred_check
      %p1777 = pneg %p1776
    $region46: #{tpu_custom_call.1} parent=5 // pred_check_branch
      %1779 = sbr.rel (%p1777) target = $region48
    $region47: #{tpu_custom_call.1} parent=5 // pred_region
      %s1780 = ssub.s32 %s12, 2
      // Predicated region
      $region49: #{tpu_custom_call.1} parent=47 // pred_check
        %p1781 = pneg %p135
      $region50: #{tpu_custom_call.1} parent=47 // pred_check_branch
        %1783 = sbr.rel (%p1781) target = $region52
      $region51: #{tpu_custom_call.1} parent=47 // pred_region
        %s1784 = smul.u32 8, %s18
        %p1785 = scmp.lt.s32.totalorder %s1784, 15
        %s1786 = scalar_select %p1785, %s1784, 15
        %s1787 = smul.addr %s1786, 8
        %s1788 = scalar_lea.vmem %s4, %s1787
      $region52: #{tpu_custom_call.1} parent=47 // pred_fallthru
        _
      // Predicated region
      $region53: #{tpu_custom_call.1} parent=47 // pred_check
        %p1789 = pneg %p161
      $region54: #{tpu_custom_call.1} parent=47 // pred_check_branch
        %1791 = sbr.rel (%p1789) target = $region56
      $region55: #{tpu_custom_call.1} parent=47 // pred_region
        %s1792 = smul.u32 8, %s18
        %p1793 = scmp.lt.s32.totalorder %s1792, 15
        %s1794 = scalar_select %p1793, %s1792, 15
        %s1795 = smul.addr %s1794, 8
        %s1796 = scalar_lea.vmem %s5, %s1795
      $region56: #{tpu_custom_call.1} parent=47 // pred_fallthru
        _
    $region48: #{tpu_custom_call.1} parent=5 // pred_fallthru
      _
  $region6: #{tpu_custom_call.1} parent=0 // loop_footer
    %s16 = sadd.s32 1, %s12
  $region7: #{tpu_custom_call.1} parent=0 // loop_footer_branch
    %11 = sbr.rel target = $region3
  $region8: #{tpu_custom_call.1} parent=0 // loop_exit
    _

// kernel: tpu_custom_call.1
$region0: #{tpu_custom_call.1}
  #allocation0 [shape = 'u32[]', space=smem, size = 0x4, offset = 0x4, fixed_abs, tag = 'smem constant byte address 0x4 - core index']
  #allocation1 [shape = 'u32[144,128]{1,0:T(1,128)}', space=vmem, size = 0x12000, scoped, tag = 'internal scratch']
  %s0 = inlined_call_operand.vmem [shape: f32[128,64], index: 0, kind: input, shape index: {}]
  %s1 = inlined_call_operand.vmem [shape: f32[64,128], index: 1, kind: input, shape index: {}]
  %s2 = inlined_call_operand.vmem [shape: f32[128,32], index: 2, kind: input, shape index: {}]
  %s3 = inlined_call_operand.vmem [shape: f32[32,128], index: 3, kind: input, shape index: {}]
  %s4 = inlined_call_operand.vmem [shape: f32[128,1], index: 4, kind: output, shape index: {0}]
  %s5 = inlined_call_operand.vmem [shape: f32[128,1], index: 5, kind: output, shape index: {1}]
  %6 = xla_tuple %s4, %s5
  %s7 = sld [smem:[#allocation0]]
  $region57: #{tpu_custom_call.1} parent=0
    _
  %s9 = ssub.s32 1, %s7
  %s10 = scalar_select 0, %s9, %s7
  loop: start=0, step=1, limit=4
  $region2: #{tpu_custom_call.1} parent=0 // loop_pre_header
    _
  $region3: #{tpu_custom_call.1} parent=0 // loop_header
    %s12 = sphi 0, %s16
    %p13 = scmp.ge.s32.totalorder %s12, 4
    %s22 = sphi 0, %s24
    %s25 = sphi 0, %s22
    %s26 = sphi 0, %s25
    %s42 = sphi 0, %s26
    %s46 = sphi 0, %s46
    %s48 = sphi 0, %s46
    %s49 = sphi 0, %s48
    %s63 = sphi 0, %s49
    %s69 = sphi 0, %s71
    %s72 = sphi 0, %s69
    %s73 = sphi 0, %s72
    %s89 = sphi 0, %s73
    %s93 = sphi 0, %s93
    %s95 = sphi 0, %s93
    %s96 = sphi 0, %s95
    %s110 = sphi 0, %s96
    %s116 = sphi 0, %s118
    %s119 = sphi 0, %s116
    %s120 = sphi 0, %s119
    %s136 = sphi 0, %s120
    %s142 = sphi 0, %s144
    %s145 = sphi 0, %s142
    %s146 = sphi 0, %s145
    %s162 = sphi 0, %s146
  $region4: #{tpu_custom_call.1} parent=0 // loop_header_branch
    %15 = sbr.rel (%p13) target = $region8
  $region5: #{tpu_custom_call.1} parent=0 // loop_body
    %s17 = ssub.s32 %s12, 1
    %s18 = ssub.s32 %s12, 2
    %s19 = sadd.s32 %s12, 1
    %s20 = ssub.s32 %s12, %s19
    %p21 = scmp.eq.s32.totalorder %s20, 0
    %s23 = sadd.s32 %s22, 1
    %s24 = scalar_select %p21, %s22, %s23
    %p27 = pneg %p21
    %p28 = scmp.eq.s32.totalorder %s12, 1
    %p29 = por %p27, %p28
    %p30 = scmp.ne.s32.totalorder %s22, %s25
    %p31 = scmp.eq.s32.totalorder %s12, 0
    %p32 = por %p30, %p31
    %p33 = scmp.ne.s32.totalorder %s22, %s25
    %p34 = scmp.eq.s32.totalorder %s17, 1
    %p35 = por %p33, %p34
    %p36 = scmp.ne.s32.totalorder %s25, %s26
    %p37 = scmp.eq.s32.totalorder %s17, 0
    %p38 = por %p36, %p37
    %p39 = scmp.ne.s32.totalorder %s25, %s26
    %p40 = scmp.eq.s32.totalorder %s18, 1
    %p41 = por %p39, %p40
    %p43 = scmp.ne.s32.totalorder %s26, %s42
    %p44 = scmp.eq.s32.totalorder %s18, 0
    %p45 = por %p43, %p44
    %s47 = sadd.s32 %s46, 1
    %p50 = scmp.eq.s32.totalorder %s12, 1
    %p51 = scmp.ne.s32.totalorder %s46, %s48
    %p52 = scmp.eq.s32.totalorder %s12, 0
    %p53 = por %p51, %p52
    %p54 = scmp.ne.s32.totalorder %s46, %s48
    %p55 = scmp.eq.s32.totalorder %s17, 1
    %p56 = por %p54, %p55
    %p57 = scmp.ne.s32.totalorder %s48, %s49
    %p58 = scmp.eq.s32.totalorder %s17, 0
    %p59 = por %p57, %p58
    %p60 = scmp.ne.s32.totalorder %s48, %s49
    %p61 = scmp.eq.s32.totalorder %s18, 1
    %p62 = por %p60, %p61
    %p64 = scmp.ne.s32.totalorder %s49, %s63
    %p65 = scmp.eq.s32.totalorder %s18, 0
    %p66 = por %p64, %p65
    %s67 = ssub.s32 %s12, %s19
    %p68 = scmp.eq.s32.totalorder %s67, 0
    %s70 = sadd.s32 %s69, 1
    %s71 = scalar_select %p68, %s69, %s70
    %p74 = pneg %p68
    %p75 = scmp.eq.s32.totalorder %s12, 1
    %p76 = por %p74, %p75
    %p77 = scmp.ne.s32.totalorder %s69, %s72
    %p78 = scmp.eq.s32.totalorder %s12, 0
    %p79 = por %p77, %p78
    %p80 = scmp.ne.s32.totalorder %s69, %s72
    %p81 = scmp.eq.s32.totalorder %s17, 1
    %p82 = por %p80, %p81
    %p83 = scmp.ne.s32.totalorder %s72, %s73
    %p84 = scmp.eq.s32.totalorder %s17, 0
    %p85 = por %p83, %p84
    %p86 = scmp.ne.s32.totalorder %s72, %s73
    %p87 = scmp.eq.s32.totalorder %s18, 1
    %p88 = por %p86, %p87
    %p90 = scmp.ne.s32.totalorder %s73, %s89
    %p91 = scmp.eq.s32.totalorder %s18, 0
    %p92 = por %p90, %p91
    %s94 = sadd.s32 %s93, 1
    %p97 = scmp.eq.s32.totalorder %s12, 1
    %p98 = scmp.ne.s32.totalorder %s93, %s95
    %p99 = scmp.eq.s32.totalorder %s12, 0
    %p100 = por %p98, %p99
    %p101 = scmp.ne.s32.totalorder %s93, %s95
    %p102 = scmp.eq.s32.totalorder %s17, 1
    %p103 = por %p101, %p102
    %p104 = scmp.ne.s32.totalorder %s95, %s96
    %p105 = scmp.eq.s32.totalorder %s17, 0
    %p106 = por %p104, %p105
    %p107 = scmp.ne.s32.totalorder %s95, %s96
    %p108 = scmp.eq.s32.totalorder %s18, 1
    %p109 = por %p107, %p108
    %p111 = scmp.ne.s32.totalorder %s96, %s110
    %p112 = scmp.eq.s32.totalorder %s18, 0
    %p113 = por %p111, %p112
    %s114 = ssub.s32 %s12, %s19
    %p115 = scmp.eq.s32.totalorder %s114, 0
    %s117 = sadd.s32 %s116, 1
    %s118 = scalar_select %p115, %s116, %s117
    %p121 = pneg %p115
    %p122 = scmp.eq.s32.totalorder %s12, 1
    %p123 = por %p121, %p122
    %p124 = scmp.ne.s32.totalorder %s116, %s119
    %p125 = scmp.eq.s32.totalorder %s12, 0
    %p126 = por %p124, %p125
    %p127 = scmp.ne.s32.totalorder %s116, %s119
    %p128 = scmp.eq.s32.totalorder %s17, 1
    %p129 = por %p127, %p128
    %p130 = scmp.ne.s32.totalorder %s119, %s120
    %p131 = scmp.eq.s32.totalorder %s17, 0
    %p132 = por %p130, %p131
    %p133 = scmp.ne.s32.totalorder %s119, %s120
    %p134 = scmp.eq.s32.totalorder %s18, 1
    %p135 = por %p133, %p134
    %p137 = scmp.ne.s32.totalorder %s120, %s136
    %p138 = scmp.eq.s32.totalorder %s18, 0
    %p139 = por %p137, %p138
    %s140 = ssub.s32 %s12, %s19
    %p141 = scmp.eq.s32.totalorder %s140, 0
    %s143 = sadd.s32 %s142, 1
    %s144 = scalar_select %p141, %s142, %s143
    %p147 = pneg %p141
    %p148 = scmp.eq.s32.totalorder %s12, 1
    %p149 = por %p147, %p148
    %p150 = scmp.ne.s32.totalorder %s142, %s145
    %p151 = scmp.eq.s32.totalorder %s12, 0
    %p152 = por %p150, %p151
    %p153 = scmp.ne.s32.totalorder %s142, %s145
    %p154 = scmp.eq.s32.totalorder %s17, 1
    %p155 = por %p153, %p154
    %p156 = scmp.ne.s32.totalorder %s145, %s146
    %p157 = scmp.eq.s32.totalorder %s17, 0
    %p158 = por %p156, %p157
    %p159 = scmp.ne.s32.totalorder %s145, %s146
    %p160 = scmp.eq.s32.totalorder %s18, 1
    %p161 = por %p159, %p160
    %p163 = scmp.ne.s32.totalorder %s146, %s162
    %p164 = scmp.eq.s32.totalorder %s18, 0
    %p165 = por %p163, %p164
    %p166 = scmp.le.s32.totalorder 1, %s12
    %p167 = scmp.lt.s32.totalorder %s12, 3
    %p168 = pnand %p166, %p167
    %p169 = pneg %p168
    // Predicated region
    $region9: #{tpu_custom_call.1} parent=5 // pred_check
      _
    $region10: #{tpu_custom_call.1} parent=5 // pred_check_branch
      %171 = sbr.rel (%p168) target = $region12
    $region11: #{tpu_custom_call.1} parent=5 // pred_region
      %s172 = ssub.s32 %s12, 1
      // Predicated region
      $region13: #{tpu_custom_call.1} parent=11 // pred_check
        %p173 = pneg %p59
      $region14: #{tpu_custom_call.1} parent=11 // pred_check_branch
        %175 = sbr.rel (%p173) target = $region16
      $region15: #{tpu_custom_call.1} parent=11 // pred_region
        _
      $region16: #{tpu_custom_call.1} parent=11 // pred_fallthru
        _
      // Predicated region
      $region17: #{tpu_custom_call.1} parent=11 // pred_check
        %p176 = pneg %p106
      $region18: #{tpu_custom_call.1} parent=11 // pred_check_branch
        %178 = sbr.rel (%p176) target = $region20
      $region19: #{tpu_custom_call.1} parent=11 // pred_region
        _
      $region20: #{tpu_custom_call.1} parent=11 // pred_fallthru
        _
    $region12: #{tpu_custom_call.1} parent=5 // pred_fallthru
      _
    %p179 = scmp.lt.s32.totalorder %s12, 2
    // Predicated region
    $region21: #{tpu_custom_call.1} parent=5 // pred_check
      %p180 = pneg %p179
    $region22: #{tpu_custom_call.1} parent=5 // pred_check_branch
      %182 = sbr.rel (%p180) target = $region24
    $region23: #{tpu_custom_call.1} parent=5 // pred_region
      // Predicated region
      $region25: #{tpu_custom_call.1} parent=23 // pred_check
        %p183 = pneg %p32
      $region26: #{tpu_custom_call.1} parent=23 // pred_check_branch
        %185 = sbr.rel (%p183) target = $region28
      $region27: #{tpu_custom_call.1} parent=23 // pred_region
        %s186 = smul.u32 8, %s12
        %p187 = scmp.lt.s32.totalorder %s186, 15
        %s188 = scalar_select %p187, %s186, 15
        %s189 = smul.addr %s188, 8
        %s190 = scalar_lea.vmem %s0, %s189
        %s191 = smul.u32 8, %s12
      $region28: #{tpu_custom_call.1} parent=23 // pred_fallthru
        _
      // Predicated region
      $region29: #{tpu_custom_call.1} parent=23 // pred_check
        %p192 = pneg %p79
      $region30: #{tpu_custom_call.1} parent=23 // pred_check_branch
        %194 = sbr.rel (%p192) target = $region32
      $region31: #{tpu_custom_call.1} parent=23 // pred_region
        %s195 = smul.u32 8, %s12
        %p196 = scmp.lt.s32.totalorder %s195, 15
        %s197 = scalar_select %p196, %s195, 15
        %s198 = smul.addr %s197, 8
        %s199 = scalar_lea.vmem %s2, %s198
        %s200 = smul.u32 8, %s12
      $region32: #{tpu_custom_call.1} parent=23 // pred_fallthru
        _
    $region24: #{tpu_custom_call.1} parent=5 // pred_fallthru
      _
    %p201 = scmp.le.s32.totalorder 1, %s12
    %p202 = scmp.lt.s32.totalorder %s12, 3
    %p203 = pnand %p201, %p202
    %p204 = pneg %p203
    // Predicated region
    $region33: #{tpu_custom_call.1} parent=5 // pred_check
      _
    $region34: #{tpu_custom_call.1} parent=5 // pred_check_branch
      %206 = sbr.rel (%p203) target = $region36
    $region35: #{tpu_custom_call.1} parent=5 // pred_region
      %s207 = ssub.s32 %s12, 1
      %s208 = smul.u32 8, %s17
      %p209 = scmp.lt.s32.totalorder %s208, 15
      %s210 = scalar_select %p209, %s208, 15
      %s211 = smul.addr %s210, 8
      %s212 = scalar_lea.vmem %s0, %s211
      %p213 = pneg %p38
      %p214 = pneg %p35
      %p215 = pneg %p59
      %p216 = pneg %p56
      %s217 = smul.u32 8, %s17
      %p218 = scmp.lt.s32.totalorder %s217, 15
      %s219 = scalar_select %p218, %s217, 15
      %s220 = smul.addr %s219, 8
      %s221 = scalar_lea.vmem %s2, %s220
      %p222 = pneg %p85
      %p223 = pneg %p82
      %p224 = pneg %p106
      %p225 = pneg %p103
      %p226 = pneg %p132
      %p227 = pneg %p129
      %s228 = smul.u32 8, %s17
      %p229 = scmp.lt.s32.totalorder %s228, 15
      %s230 = scalar_select %p229, %s228, 15
      %s231 = smul.addr %s230, 8
      %s232 = scalar_lea.vmem %s4, %s231
      %p233 = pneg %p158
      %p234 = pneg %p155
      %s235 = smul.u32 8, %s17
      %p236 = scmp.lt.s32.totalorder %s235, 15
      %s237 = scalar_select %p236, %s235, 15
      %s238 = smul.addr %s237, 8
      %s239 = scalar_lea.vmem %s5, %s238
      %s240 = smul.u32 8, %s17
      %p241 = scmp.lt.s32.totalorder %s240, 15
      %s242 = scalar_select %p241, %s240, 15
      %s243 = smul.addr %s242, 8
      %s244 = scalar_lea.vmem %s0, %s243
      %s245 = smul.u32 8, %s17
      %s246 = smul.u32 8, %s17
      %p247 = scmp.lt.s32.totalorder %s246, 15
      %s248 = scalar_select %p247, %s246, 15
      %s249 = smul.addr %s248, 8
      %s250 = scalar_lea.vmem %s2, %s249
      %s251 = smul.u32 8, %s17
      %s252 = smul.u32 8, %s17
      %p253 = scmp.lt.s32.totalorder %s252, 15
      %s254 = scalar_select %p253, %s252, 15
      %s255 = smul.addr %s254, 8
      %s256 = scalar_lea.vmem %s4, %s255
      %s257 = smul.u32 8, %s17
      %s258 = smul.u32 8, %s17
      %p259 = scmp.lt.s32.totalorder %s258, 15
      %s260 = scalar_select %p259, %s258, 15
      %s261 = smul.addr %s260, 8
      %s262 = scalar_lea.vmem %s5, %s261
      %s263 = smul.u32 8, %s17
      %s264 = smul.u32 %s17, 64
      %v265 = vld [vmem:[%s244] sm:$0xff]
      %v266 = vld [vmem:[%s244 + $0x8] sm:$0xff]
      %v267 = vld [vmem:[%s244 + $0x10] sm:$0xff]
      %v268 = vld [vmem:[%s244 + $0x18] sm:$0xff]
      %v269 = vld [vmem:[%s244 + $0x20] sm:$0xff]
      %v270 = vld [vmem:[%s244 + $0x28] sm:$0xff]
      %v271 = vld [vmem:[%s244 + $0x30] sm:$0xff]
      %v272 = vld [vmem:[%s244 + $0x38] sm:$0xff]
      %v273 = vld [vmem:[%s1] sm:$0xff]
      %v274 = vld [vmem:[%s1 + $0x8] sm:$0xff]
      %v275 = vld [vmem:[%s1 + $0x10] sm:$0xff]
      %v276 = vld [vmem:[%s1 + $0x18] sm:$0xff]
      %v277 = vld [vmem:[%s1 + $0x20] sm:$0xff]
      %v278 = vld [vmem:[%s1 + $0x28] sm:$0xff]
      %v279 = vld [vmem:[%s1 + $0x30] sm:$0xff]
      %v280 = vld [vmem:[%s1 + $0x38] sm:$0xff]
      %vm281 = vcmask 523264
      %v283 = vsel %vm281, %v265, 0
      %v286 = vsel %vm281, %v266, 0
      %v289 = vsel %vm281, %v267, 0
      %v292 = vsel %vm281, %v268, 0
      %v295 = vsel %vm281, %v269, 0
      %v298 = vsel %vm281, %v270, 0
      %v301 = vsel %vm281, %v271, 0
      %v304 = vsel %vm281, %v272, 0
      %306 = vmatprep.subr.mxu0 0.0
      %307 = vmatpush1.msra.mxu0 %v273
      %308 = vmatprep.subr.mxu0 0.0
      %309 = vmatpush1.msra.mxu0 %v274
      %310 = vmatprep.subr.mxu0 0.0
      %311 = vmatpush1.msra.mxu0 %v275
      %312 = vmatprep.subr.mxu0 0.0
      %313 = vmatpush1.msra.mxu0 %v276
      %314 = vmatprep.subr.mxu0 0.0
      %315 = vmatpush1.msra.mxu0 %v277
      %316 = vmatprep.subr.mxu0 0.0
      %317 = vmatpush1.msra.mxu0 %v278
      %318 = vmatprep.subr.mxu0 0.0
      %319 = vmatpush1.msra.mxu0 %v279
      %320 = vmatprep.subr.mxu0 0.0
      %321 = vmatpush1.msra.mxu0 %v280
      %322 = vmatprep.subr.mxu0 0.0
      %323 = vmatpush1.msra.mxu0 0.0
      %324 = vmatprep.subr.mxu0 0.0
      %325 = vmatpush1.msra.mxu0 0.0
      %326 = vmatprep.subr.mxu0 0.0
      %327 = vmatpush1.msra.mxu0 0.0
      %328 = vmatprep.subr.mxu0 0.0
      %329 = vmatpush1.msra.mxu0 0.0
      %330 = vmatprep.subr.mxu0 0.0
      %331 = vmatpush1.msra.mxu0 0.0
      %332 = vmatprep.subr.mxu0 0.0
      %333 = vmatpush1.msra.mxu0 0.0
      %334 = vmatprep.subr.mxu0 0.0
      %335 = vmatpush1.msra.mxu0 0.0
      %336 = vmatprep.subr.mxu0 0.0
      %337 = vmatpush1.msra.mxu0 0.0
      %338 = vmatprep.subr.mxu0 0.0
      %339 = vmatpush1.msra.mxu0 0.0
      %340 = vmatprep.subr.mxu0 0.0
      %341 = vmatpush1.msra.mxu0 0.0
      %342 = vmatprep.subr.mxu0 0.0
      %343 = vmatpush1.msra.mxu0 0.0
      %344 = vmatprep.subr.mxu0 0.0
      %345 = vmatpush1.msra.mxu0 0.0
      %346 = vmatprep.subr.mxu0 0.0
      %347 = vmatpush1.msra.mxu0 0.0
      %348 = vmatprep.subr.mxu0 0.0
      %349 = vmatpush1.msra.mxu0 0.0
      %350 = vmatprep.subr.mxu0 0.0
      %351 = vmatpush1.msra.mxu0 0.0
      %352 = vmatprep.subr.mxu0 0.0
      %353 = vmatpush1.msra.mxu0 0.0
      %354 = vmatprep.subr.mxu0 0.0
      %355 = vmatpush1.msra.mxu0 0.0
      %356 = vmatprep.subr.mxu0 0.0
      %357 = vmatpush1.msra.mxu0 0.0
      %358 = vmatprep.subr.mxu0 0.0
      %359 = vmatpush1.msra.mxu0 0.0
      %360 = vmatprep.subr.mxu0 0.0
      %361 = vmatpush1.msra.mxu0 0.0
      %362 = vmatprep.subr.mxu0 0.0
      %363 = vmatpush1.msra.mxu0 0.0
      %364 = vmatprep.subr.mxu0 0.0
      %365 = vmatpush1.msra.mxu0 0.0
      %366 = vmatprep.subr.mxu0 0.0
      %367 = vmatpush1.msra.mxu0 0.0
      %368 = vmatprep.subr.mxu0 0.0
      %369 = vmatpush1.msra.mxu0 0.0
      %370 = vmatprep.mubr.f32.mxu0 0.0
      %371 = vmatmul.mubr.f32.gmra.mrb[0].mxu0 %v283
      %v372 = vpop.f32.mrb[0].mxu0
      %v373 = vadd.f32 0.0, %v372
      %v374 = vpop.f32.mrb[0].mxu0
      %375 = vmatprep.mubr.f32.mxu0 0.0
      %376 = vmatmul.mubr.f32.gmra.mrb[0].mxu0 %v286
      %v377 = vpop.f32.mrb[0].mxu0
      %v378 = vadd.f32 0.0, %v377
      %v379 = vpop.f32.mrb[0].mxu0
      %380 = vmatprep.mubr.f32.mxu0 0.0
      %381 = vmatmul.mubr.f32.gmra.mrb[0].mxu0 %v289
      %v382 = vpop.f32.mrb[0].mxu0
      %v383 = vadd.f32 0.0, %v382
      %v384 = vpop.f32.mrb[0].mxu0
      %385 = vmatprep.mubr.f32.mxu0 0.0
      %386 = vmatmul.mubr.f32.gmra.mrb[0].mxu0 %v292
      %v387 = vpop.f32.mrb[0].mxu0
      %v388 = vadd.f32 0.0, %v387
      %v389 = vpop.f32.mrb[0].mxu0
      %390 = vmatprep.mubr.f32.mxu0 0.0
      %391 = vmatmul.mubr.f32.gmra.mrb[0].mxu0 %v295
      %v392 = vpop.f32.mrb[0].mxu0
      %v393 = vadd.f32 0.0, %v392
      %v394 = vpop.f32.mrb[0].mxu0
      %395 = vmatprep.mubr.f32.mxu0 0.0
      %396 = vmatmul.mubr.f32.gmra.mrb[0].mxu0 %v298
      %v397 = vpop.f32.mrb[0].mxu0
      %v398 = vadd.f32 0.0, %v397
      %v399 = vpop.f32.mrb[0].mxu0
      %400 = vmatprep.mubr.f32.mxu0 0.0
      %401 = vmatmul.mubr.f32.gmra.mrb[0].mxu0 %v301
      %v402 = vpop.f32.mrb[0].mxu0
      %v403 = vadd.f32 0.0, %v402
      %v404 = vpop.f32.mrb[0].mxu0
      %405 = vmatprep.mubr.f32.mxu0 0.0
      %406 = vmatmul.mubr.f32.gmra.mrb[0].mxu0 %v304
      %v407 = vpop.f32.mrb[0].mxu0
      %v408 = vadd.f32 0.0, %v407
      %v409 = vpop.f32.mrb[0].mxu0
      %410 = vdwg.mxu0
      %v411 = vld [vmem:[%s250] sm:$0xff]
      %v412 = vld [vmem:[%s250 + $0x8] sm:$0xff]
      %v413 = vld [vmem:[%s250 + $0x10] sm:$0xff]
      %v414 = vld [vmem:[%s250 + $0x18] sm:$0xff]
      %v415 = vld [vmem:[%s250 + $0x20] sm:$0xff]
      %v416 = vld [vmem:[%s250 + $0x28] sm:$0xff]
      %v417 = vld [vmem:[%s250 + $0x30] sm:$0xff]
      %v418 = vld [vmem:[%s250 + $0x38] sm:$0xff]
      %v419 = vld [vmem:[%s3] sm:$0xff]
      %v420 = vld [vmem:[%s3 + $0x8] sm:$0xff]
      %v421 = vld [vmem:[%s3 + $0x10] sm:$0xff]
      %v422 = vld [vmem:[%s3 + $0x18] sm:$0xff]
      %vm423 = vcmask 261120
      %v425 = vsel %vm423, %v411, 0
      %v428 = vsel %vm423, %v412, 0
      %v431 = vsel %vm423, %v413, 0
      %v434 = vsel %vm423, %v414, 0
      %v437 = vsel %vm423, %v415, 0
      %v440 = vsel %vm423, %v416, 0
      %v443 = vsel %vm423, %v417, 0
      %v446 = vsel %vm423, %v418, 0
      %448 = vmatprep.subr.mxu0 0.0
      %449 = vmatpush1.msra.mxu0 %v419
      %450 = vmatprep.subr.mxu0 0.0
      %451 = vmatpush1.msra.mxu0 %v420
      %452 = vmatprep.subr.mxu0 0.0
      %453 = vmatpush1.msra.mxu0 %v421
      %454 = vmatprep.subr.mxu0 0.0
      %455 = vmatpush1.msra.mxu0 %v422
      %456 = vmatprep.subr.mxu0 0.0
      %457 = vmatpush1.msra.mxu0 0.0
      %458 = vmatprep.subr.mxu0 0.0
      %459 = vmatpush1.msra.mxu0 0.0
      %460 = vmatprep.subr.mxu0 0.0
      %461 = vmatpush1.msra.mxu0 0.0
      %462 = vmatprep.subr.mxu0 0.0
      %463 = vmatpush1.msra.mxu0 0.0
      %464 = vmatprep.subr.mxu0 0.0
      %465 = vmatpush1.msra.mxu0 0.0
      %466 = vmatprep.subr.mxu0 0.0
      %467 = vmatpush1.msra.mxu0 0.0
      %468 = vmatprep.subr.mxu0 0.0
      %469 = vmatpush1.msra.mxu0 0.0
      %470 = vmatprep.subr.mxu0 0.0
      %471 = vmatpush1.msra.mxu0 0.0
      %472 = vmatprep.subr.mxu0 0.0
      %473 = vmatpush1.msra.mxu0 0.0
      %474 = vmatprep.subr.mxu0 0.0
      %475 = vmatpush1.msra.mxu0 0.0
      %476 = vmatprep.subr.mxu0 0.0
      %477 = vmatpush1.msra.mxu0 0.0
      %478 = vmatprep.subr.mxu0 0.0
      %479 = vmatpush1.msra.mxu0 0.0
      %480 = vmatprep.subr.mxu0 0.0
      %481 = vmatpush1.msra.mxu0 0.0
      %482 = vmatprep.subr.mxu0 0.0
      %483 = vmatpush1.msra.mxu0 0.0
      %484 = vmatprep.subr.mxu0 0.0
      %485 = vmatpush1.msra.mxu0 0.0
      %486 = vmatprep.subr.mxu0 0.0
      %487 = vmatpush1.msra.mxu0 0.0
      %488 = vmatprep.subr.mxu0 0.0
      %489 = vmatpush1.msra.mxu0 0.0
      %490 = vmatprep.subr.mxu0 0.0
      %491 = vmatpush1.msra.mxu0 0.0
      %492 = vmatprep.subr.mxu0 0.0
      %493 = vmatpush1.msra.mxu0 0.0
      %494 = vmatprep.subr.mxu0 0.0
      %495 = vmatpush1.msra.mxu0 0.0
      %496 = vmatprep.subr.mxu0 0.0
      %497 = vmatpush1.msra.mxu0 0.0
      %498 = vmatprep.subr.mxu0 0.0
      %499 = vmatpush1.msra.mxu0 0.0
      %500 = vmatprep.subr.mxu0 0.0
      %501 = vmatpush1.msra.mxu0 0.0
      %502 = vmatprep.subr.mxu0 0.0
      %503 = vmatpush1.msra.mxu0 0.0
      %504 = vmatprep.subr.mxu0 0.0
      %505 = vmatpush1.msra.mxu0 0.0
      %506 = vmatprep.subr.mxu0 0.0
      %507 = vmatpush1.msra.mxu0 0.0
      %508 = vmatprep.subr.mxu0 0.0
      %509 = vmatpush1.msra.mxu0 0.0
      %510 = vmatprep.subr.mxu0 0.0
      %511 = vmatpush1.msra.mxu0 0.0
      %512 = vmatprep.mubr.f32.mxu0 0.0
      %513 = vmatmul.mubr.f32.gmra.mrb[0].mxu0 %v425
      %v514 = vpop.f32.mrb[0].mxu0
      %v515 = vadd.f32 0.0, %v514
      %v516 = vpop.f32.mrb[0].mxu0
      %517 = vmatprep.mubr.f32.mxu0 0.0
      %518 = vmatmul.mubr.f32.gmra.mrb[0].mxu0 %v428
      %v519 = vpop.f32.mrb[0].mxu0
      %v520 = vadd.f32 0.0, %v519
      %v521 = vpop.f32.mrb[0].mxu0
      %522 = vmatprep.mubr.f32.mxu0 0.0
      %523 = vmatmul.mubr.f32.gmra.mrb[0].mxu0 %v431
      %v524 = vpop.f32.mrb[0].mxu0
      %v525 = vadd.f32 0.0, %v524
      %v526 = vpop.f32.mrb[0].mxu0
      %527 = vmatprep.mubr.f32.mxu0 0.0
      %528 = vmatmul.mubr.f32.gmra.mrb[0].mxu0 %v434
      %v529 = vpop.f32.mrb[0].mxu0
      %v530 = vadd.f32 0.0, %v529
      %v531 = vpop.f32.mrb[0].mxu0
      %532 = vmatprep.mubr.f32.mxu0 0.0
      %533 = vmatmul.mubr.f32.gmra.mrb[0].mxu0 %v437
      %v534 = vpop.f32.mrb[0].mxu0
      %v535 = vadd.f32 0.0, %v534
      %v536 = vpop.f32.mrb[0].mxu0
      %537 = vmatprep.mubr.f32.mxu0 0.0
      %538 = vmatmul.mubr.f32.gmra.mrb[0].mxu0 %v440
      %v539 = vpop.f32.mrb[0].mxu0
      %v540 = vadd.f32 0.0, %v539
      %v541 = vpop.f32.mrb[0].mxu0
      %542 = vmatprep.mubr.f32.mxu0 0.0
      %543 = vmatmul.mubr.f32.gmra.mrb[0].mxu0 %v443
      %v544 = vpop.f32.mrb[0].mxu0
      %v545 = vadd.f32 0.0, %v544
      %v546 = vpop.f32.mrb[0].mxu0
      %547 = vmatprep.mubr.f32.mxu0 0.0
      %548 = vmatmul.mubr.f32.gmra.mrb[0].mxu0 %v446
      %v549 = vpop.f32.mrb[0].mxu0
      %v550 = vadd.f32 0.0, %v549
      %v551 = vpop.f32.mrb[0].mxu0
      %552 = vdwg.mxu0
      %v553 = vlaneseq
      %v554 = vand.u32 %v553, 127
      %v555 = vlaneseq
      %v556 = vshrl.u32 %v555, 7
      %v557 = vadd.s32 %v556, 8
      %v558 = vadd.s32 %v556, 16
      %v559 = vadd.s32 %v556, 24
      %v560 = vadd.s32 %v556, 32
      %v561 = vadd.s32 %v556, 40
      %v562 = vadd.s32 %v556, 48
      %v563 = vadd.s32 %v556, 56
      %v564 = vstv %s264
      %v565 = vadd.s32 %v564, %v556
      %v566 = vadd.s32 %v564, %v557
      %v567 = vadd.s32 %v564, %v558
      %v568 = vadd.s32 %v564, %v559
      %v569 = vadd.s32 %v564, %v560
      %v570 = vadd.s32 %v564, %v561
      %v571 = vadd.s32 %v564, %v562
      %v572 = vadd.s32 %v564, %v563
      %v573 = vadd.s32 %v565, 64
      %v574 = vadd.s32 %v566, 64
      %v575 = vadd.s32 %v567, 64
      %v576 = vadd.s32 %v568, 64
      %v577 = vadd.s32 %v569, 64
      %v578 = vadd.s32 %v570, 64
      %v579 = vadd.s32 %v571, 64
      %v580 = vadd.s32 %v572, 64
      %vm581 = vcmp.ge.s32.totalorder %v573, 128
      %vm582 = vcmp.ge.s32.totalorder %v574, 128
      %vm583 = vcmp.ge.s32.totalorder %v575, 128
      %vm584 = vcmp.ge.s32.totalorder %v576, 128
      %vm585 = vcmp.ge.s32.totalorder %v577, 128
      %vm586 = vcmp.ge.s32.totalorder %v578, 128
      %vm587 = vcmp.ge.s32.totalorder %v579, 128
      %vm588 = vcmp.ge.s32.totalorder %v580, 128
      %v589 = vsub.s32 %v573, 128
      %v590 = vsub.s32 %v574, 128
      %v591 = vsub.s32 %v575, 128
      %v592 = vsub.s32 %v576, 128
      %v593 = vsub.s32 %v577, 128
      %v594 = vsub.s32 %v578, 128
      %v595 = vsub.s32 %v579, 128
      %v596 = vsub.s32 %v580, 128
      %v597 = vsel %vm581, %v589, %v573
      %v598 = vsel %vm582, %v590, %v574
      %v599 = vsel %vm583, %v591, %v575
      %v600 = vsel %vm584, %v592, %v576
      %v601 = vsel %vm585, %v593, %v577
      %v602 = vsel %vm586, %v594, %v578
      %v603 = vsel %vm587, %v595, %v579
      %v604 = vsel %vm588, %v596, %v580
      %vm605 = vcmp.eq.s32.totalorder %v554, %v597
      %vm606 = vcmp.eq.s32.totalorder %v554, %v598
      %vm607 = vcmp.eq.s32.totalorder %v554, %v599
      %vm608 = vcmp.eq.s32.totalorder %v554, %v600
      %vm609 = vcmp.eq.s32.totalorder %v554, %v601
      %vm610 = vcmp.eq.s32.totalorder %v554, %v602
      %vm611 = vcmp.eq.s32.totalorder %v554, %v603
      %vm612 = vcmp.eq.s32.totalorder %v554, %v604
      %vm613 = vcmp.eq.s32.totalorder %v554, %v565
      %vm614 = vcmp.eq.s32.totalorder %v554, %v566
      %vm615 = vcmp.eq.s32.totalorder %v554, %v567
      %vm616 = vcmp.eq.s32.totalorder %v554, %v568
      %vm617 = vcmp.eq.s32.totalorder %v554, %v569
      %vm618 = vcmp.eq.s32.totalorder %v554, %v570
      %vm619 = vcmp.eq.s32.totalorder %v554, %v571
      %vm620 = vcmp.eq.s32.totalorder %v554, %v572
      %v621 = vsel %vm613, -1e+09, %v373
      %v622 = vsel %vm614, -1e+09, %v378
      %v623 = vsel %vm615, -1e+09, %v383
      %v624 = vsel %vm616, -1e+09, %v388
      %v625 = vsel %vm617, -1e+09, %v393
      %v626 = vsel %vm618, -1e+09, %v398
      %v627 = vsel %vm619, -1e+09, %v403
      %v628 = vsel %vm620, -1e+09, %v408
      %v629 = vsel %vm605, %v621, 0.0
      %v630 = vsel %vm606, %v622, 0.0
      %v631 = vsel %vm607, %v623, 0.0
      %v632 = vsel %vm608, %v624, 0.0
      %v633 = vsel %vm609, %v625, 0.0
      %v634 = vsel %vm610, %v626, 0.0
      %v635 = vsel %vm611, %v627, 0.0
      %v636 = vsel %vm612, %v628, 0.0
      %637 = vadd.xlane.f32.xlu0 %v629
      %v638 = vpop.xlane.xlu0 %637
      %639 = vadd.xlane.f32.xlu0 %v630
      %v640 = vpop.xlane.xlu0 %639
      %641 = vadd.xlane.f32.xlu0 %v631
      %v642 = vpop.xlane.xlu0 %641
      %643 = vadd.xlane.f32.xlu0 %v632
      %v644 = vpop.xlane.xlu0 %643
      %645 = vadd.xlane.f32.xlu0 %v633
      %v646 = vpop.xlane.xlu0 %645
      %647 = vadd.xlane.f32.xlu0 %v634
      %v648 = vpop.xlane.xlu0 %647
      %649 = vadd.xlane.f32.xlu0 %v635
      %v650 = vpop.xlane.xlu0 %649
      %651 = vadd.xlane.f32.xlu0 %v636
      %v652 = vpop.xlane.xlu0 %651
      %653 = vmax.xlane.f32.xlu0 %v515
      %v654 = vpop.xlane.xlu0 %653
      %655 = vmax.xlane.f32.xlu0 %v520
      %v656 = vpop.xlane.xlu0 %655
      %657 = vmax.xlane.f32.xlu0 %v525
      %v658 = vpop.xlane.xlu0 %657
      %659 = vmax.xlane.f32.xlu0 %v530
      %v660 = vpop.xlane.xlu0 %659
      %661 = vmax.xlane.f32.xlu0 %v535
      %v662 = vpop.xlane.xlu0 %661
      %663 = vmax.xlane.f32.xlu0 %v540
      %v664 = vpop.xlane.xlu0 %663
      %665 = vmax.xlane.f32.xlu0 %v545
      %v666 = vpop.xlane.xlu0 %665
      %667 = vmax.xlane.f32.xlu0 %v550
      %v668 = vpop.xlane.xlu0 %667
      %vm669 = vcmp.eq.f32.partialorder %v515, %v654
      %vm670 = vcmp.eq.f32.partialorder %v520, %v656
      %vm671 = vcmp.eq.f32.partialorder %v525, %v658
      %vm672 = vcmp.eq.f32.partialorder %v530, %v660
      %vm673 = vcmp.eq.f32.partialorder %v535, %v662
      %vm674 = vcmp.eq.f32.partialorder %v540, %v664
      %vm675 = vcmp.eq.f32.partialorder %v545, %v666
      %vm676 = vcmp.eq.f32.partialorder %v550, %v668
      %v677 = vsel %vm669, %v554, 128
      %v678 = vsel %vm670, %v554, 128
      %v679 = vsel %vm671, %v554, 128
      %v680 = vsel %vm672, %v554, 128
      %v681 = vsel %vm673, %v554, 128
      %v682 = vsel %vm674, %v554, 128
      %v683 = vsel %vm675, %v554, 128
      %v684 = vsel %vm676, %v554, 128
      %v685 = vand.u32 %v677, 65535
      %v686 = vshra.s32 %v677, 16
      %v687 = vcvt.s32.f32 %v685
      %v688 = vcvt.s32.f32 %v686
      %689 = vmin.xlane.f32.xlu0 %v688
      %v690 = vpop.xlane.xlu0 %689
      %vm691 = vcmp.eq.f32.partialorder %v688, %v690
      %v692 = vsel %vm691, %v687, inf
      %693 = vmin.xlane.f32.xlu0 %v692
      %v694 = vpop.xlane.xlu0 %693
      %v695 = vcvt.f32.s32 %v694
      %v696 = vcvt.f32.s32 %v690
      %v697 = vshll.u32 %v696, 16
      %v698 = vadd.s32 %v697, %v695
      %v699 = vand.u32 %v678, 65535
      %v700 = vshra.s32 %v678, 16
      %v701 = vcvt.s32.f32 %v699
      %v702 = vcvt.s32.f32 %v700
      %703 = vmin.xlane.f32.xlu0 %v702
      %v704 = vpop.xlane.xlu0 %703
      %vm705 = vcmp.eq.f32.partialorder %v702, %v704
      %v706 = vsel %vm705, %v701, inf
      %707 = vmin.xlane.f32.xlu0 %v706
      %v708 = vpop.xlane.xlu0 %707
      %v709 = vcvt.f32.s32 %v708
      %v710 = vcvt.f32.s32 %v704
      %v711 = vshll.u32 %v710, 16
      %v712 = vadd.s32 %v711, %v709
      %v713 = vand.u32 %v679, 65535
      %v714 = vshra.s32 %v679, 16
      %v715 = vcvt.s32.f32 %v713
      %v716 = vcvt.s32.f32 %v714
      %717 = vmin.xlane.f32.xlu0 %v716
      %v718 = vpop.xlane.xlu0 %717
      %vm719 = vcmp.eq.f32.partialorder %v716, %v718
      %v720 = vsel %vm719, %v715, inf
      %721 = vmin.xlane.f32.xlu0 %v720
      %v722 = vpop.xlane.xlu0 %721
      %v723 = vcvt.f32.s32 %v722
      %v724 = vcvt.f32.s32 %v718
      %v725 = vshll.u32 %v724, 16
      %v726 = vadd.s32 %v725, %v723
      %v727 = vand.u32 %v680, 65535
      %v728 = vshra.s32 %v680, 16
      %v729 = vcvt.s32.f32 %v727
      %v730 = vcvt.s32.f32 %v728
      %731 = vmin.xlane.f32.xlu0 %v730
      %v732 = vpop.xlane.xlu0 %731
      %vm733 = vcmp.eq.f32.partialorder %v730, %v732
      %v734 = vsel %vm733, %v729, inf
      %735 = vmin.xlane.f32.xlu0 %v734
      %v736 = vpop.xlane.xlu0 %735
      %v737 = vcvt.f32.s32 %v736
      %v738 = vcvt.f32.s32 %v732
      %v739 = vshll.u32 %v738, 16
      %v740 = vadd.s32 %v739, %v737
      %v741 = vand.u32 %v681, 65535
      %v742 = vshra.s32 %v681, 16
      %v743 = vcvt.s32.f32 %v741
      %v744 = vcvt.s32.f32 %v742
      %745 = vmin.xlane.f32.xlu0 %v744
      %v746 = vpop.xlane.xlu0 %745
      %vm747 = vcmp.eq.f32.partialorder %v744, %v746
      %v748 = vsel %vm747, %v743, inf
      %749 = vmin.xlane.f32.xlu0 %v748
      %v750 = vpop.xlane.xlu0 %749
      %v751 = vcvt.f32.s32 %v750
      %v752 = vcvt.f32.s32 %v746
      %v753 = vshll.u32 %v752, 16
      %v754 = vadd.s32 %v753, %v751
      %v755 = vand.u32 %v682, 65535
      %v756 = vshra.s32 %v682, 16
      %v757 = vcvt.s32.f32 %v755
      %v758 = vcvt.s32.f32 %v756
      %759 = vmin.xlane.f32.xlu0 %v758
      %v760 = vpop.xlane.xlu0 %759
      %vm761 = vcmp.eq.f32.partialorder %v758, %v760
      %v762 = vsel %vm761, %v757, inf
      %763 = vmin.xlane.f32.xlu0 %v762
      %v764 = vpop.xlane.xlu0 %763
      %v765 = vcvt.f32.s32 %v764
      %v766 = vcvt.f32.s32 %v760
      %v767 = vshll.u32 %v766, 16
      %v768 = vadd.s32 %v767, %v765
      %v769 = vand.u32 %v683, 65535
      %v770 = vshra.s32 %v683, 16
      %v771 = vcvt.s32.f32 %v769
      %v772 = vcvt.s32.f32 %v770
      %773 = vmin.xlane.f32.xlu0 %v772
      %v774 = vpop.xlane.xlu0 %773
      %vm775 = vcmp.eq.f32.partialorder %v772, %v774
      %v776 = vsel %vm775, %v771, inf
      %777 = vmin.xlane.f32.xlu0 %v776
      %v778 = vpop.xlane.xlu0 %777
      %v779 = vcvt.f32.s32 %v778
      %v780 = vcvt.f32.s32 %v774
      %v781 = vshll.u32 %v780, 16
      %v782 = vadd.s32 %v781, %v779
      %v783 = vand.u32 %v684, 65535
      %v784 = vshra.s32 %v684, 16
      %v785 = vcvt.s32.f32 %v783
      %v786 = vcvt.s32.f32 %v784
      %787 = vmin.xlane.f32.xlu0 %v786
      %v788 = vpop.xlane.xlu0 %787
      %vm789 = vcmp.eq.f32.partialorder %v786, %v788
      %v790 = vsel %vm789, %v785, inf
      %791 = vmin.xlane.f32.xlu0 %v790
      %v792 = vpop.xlane.xlu0 %791
      %v793 = vcvt.f32.s32 %v792
      %v794 = vcvt.f32.s32 %v788
      %v795 = vshll.u32 %v794, 16
      %v796 = vadd.s32 %v795, %v793
      %vm797 = vcmp.eq.s32.totalorder %v554, %v698
      %vm798 = vcmp.eq.s32.totalorder %v554, %v712
      %vm799 = vcmp.eq.s32.totalorder %v554, %v726
      %vm800 = vcmp.eq.s32.totalorder %v554, %v740
      %vm801 = vcmp.eq.s32.totalorder %v554, %v754
      %vm802 = vcmp.eq.s32.totalorder %v554, %v768
      %vm803 = vcmp.eq.s32.totalorder %v554, %v782
      %vm804 = vcmp.eq.s32.totalorder %v554, %v796
      %v805 = vsel %vm797, -inf, %v515
      %v806 = vsel %vm798, -inf, %v520
      %v807 = vsel %vm799, -inf, %v525
      %v808 = vsel %vm800, -inf, %v530
      %v809 = vsel %vm801, -inf, %v535
      %v810 = vsel %vm802, -inf, %v540
      %v811 = vsel %vm803, -inf, %v545
      %v812 = vsel %vm804, -inf, %v550
      %813 = vmax.xlane.f32.xlu0 %v805
      %v814 = vpop.xlane.xlu0 %813
      %815 = vmax.xlane.f32.xlu0 %v806
      %v816 = vpop.xlane.xlu0 %815
      %817 = vmax.xlane.f32.xlu0 %v807
      %v818 = vpop.xlane.xlu0 %817
      %819 = vmax.xlane.f32.xlu0 %v808
      %v820 = vpop.xlane.xlu0 %819
      %821 = vmax.xlane.f32.xlu0 %v809
      %v822 = vpop.xlane.xlu0 %821
      %823 = vmax.xlane.f32.xlu0 %v810
      %v824 = vpop.xlane.xlu0 %823
      %825 = vmax.xlane.f32.xlu0 %v811
      %v826 = vpop.xlane.xlu0 %825
      %827 = vmax.xlane.f32.xlu0 %v812
      %v828 = vpop.xlane.xlu0 %827
      %vm829 = vcmp.eq.f32.partialorder %v805, %v814
      %vm830 = vcmp.eq.f32.partialorder %v806, %v816
      %vm831 = vcmp.eq.f32.partialorder %v807, %v818
      %vm832 = vcmp.eq.f32.partialorder %v808, %v820
      %vm833 = vcmp.eq.f32.partialorder %v809, %v822
      %vm834 = vcmp.eq.f32.partialorder %v810, %v824
      %vm835 = vcmp.eq.f32.partialorder %v811, %v826
      %vm836 = vcmp.eq.f32.partialorder %v812, %v828
      %v837 = vsel %vm829, %v554, 128
      %v838 = vsel %vm830, %v554, 128
      %v839 = vsel %vm831, %v554, 128
      %v840 = vsel %vm832, %v554, 128
      %v841 = vsel %vm833, %v554, 128
      %v842 = vsel %vm834, %v554, 128
      %v843 = vsel %vm835, %v554, 128
      %v844 = vsel %vm836, %v554, 128
      %v845 = vand.u32 %v837, 65535
      %v846 = vshra.s32 %v837, 16
      %v847 = vcvt.s32.f32 %v845
      %v848 = vcvt.s32.f32 %v846
      %849 = vmin.xlane.f32.xlu0 %v848
      %v850 = vpop.xlane.xlu0 %849
      %vm851 = vcmp.eq.f32.partialorder %v848, %v850
      %v852 = vsel %vm851, %v847, inf
      %853 = vmin.xlane.f32.xlu0 %v852
      %v854 = vpop.xlane.xlu0 %853
      %v855 = vcvt.f32.s32 %v854
      %v856 = vcvt.f32.s32 %v850
      %v857 = vshll.u32 %v856, 16
      %v858 = vadd.s32 %v857, %v855
      %v859 = vand.u32 %v838, 65535
      %v860 = vshra.s32 %v838, 16
      %v861 = vcvt.s32.f32 %v859
      %v862 = vcvt.s32.f32 %v860
      %863 = vmin.xlane.f32.xlu0 %v862
      %v864 = vpop.xlane.xlu0 %863
      %vm865 = vcmp.eq.f32.partialorder %v862, %v864
      %v866 = vsel %vm865, %v861, inf
      %867 = vmin.xlane.f32.xlu0 %v866
      %v868 = vpop.xlane.xlu0 %867
      %v869 = vcvt.f32.s32 %v868
      %v870 = vcvt.f32.s32 %v864
      %v871 = vshll.u32 %v870, 16
      %v872 = vadd.s32 %v871, %v869
      %v873 = vand.u32 %v839, 65535
      %v874 = vshra.s32 %v839, 16
      %v875 = vcvt.s32.f32 %v873
      %v876 = vcvt.s32.f32 %v874
      %877 = vmin.xlane.f32.xlu0 %v876
      %v878 = vpop.xlane.xlu0 %877
      %vm879 = vcmp.eq.f32.partialorder %v876, %v878
      %v880 = vsel %vm879, %v875, inf
      %881 = vmin.xlane.f32.xlu0 %v880
      %v882 = vpop.xlane.xlu0 %881
      %v883 = vcvt.f32.s32 %v882
      %v884 = vcvt.f32.s32 %v878
      %v885 = vshll.u32 %v884, 16
      %v886 = vadd.s32 %v885, %v883
      %v887 = vand.u32 %v840, 65535
      %v888 = vshra.s32 %v840, 16
      %v889 = vcvt.s32.f32 %v887
      %v890 = vcvt.s32.f32 %v888
      %891 = vmin.xlane.f32.xlu0 %v890
      %v892 = vpop.xlane.xlu0 %891
      %vm893 = vcmp.eq.f32.partialorder %v890, %v892
      %v894 = vsel %vm893, %v889, inf
      %895 = vmin.xlane.f32.xlu0 %v894
      %v896 = vpop.xlane.xlu0 %895
      %v897 = vcvt.f32.s32 %v896
      %v898 = vcvt.f32.s32 %v892
      %v899 = vshll.u32 %v898, 16
      %v900 = vadd.s32 %v899, %v897
      %v901 = vand.u32 %v841, 65535
      %v902 = vshra.s32 %v841, 16
      %v903 = vcvt.s32.f32 %v901
      %v904 = vcvt.s32.f32 %v902
      %905 = vmin.xlane.f32.xlu0 %v904
      %v906 = vpop.xlane.xlu0 %905
      %vm907 = vcmp.eq.f32.partialorder %v904, %v906
      %v908 = vsel %vm907, %v903, inf
      %909 = vmin.xlane.f32.xlu0 %v908
      %v910 = vpop.xlane.xlu0 %909
      %v911 = vcvt.f32.s32 %v910
      %v912 = vcvt.f32.s32 %v906
      %v913 = vshll.u32 %v912, 16
      %v914 = vadd.s32 %v913, %v911
      %v915 = vand.u32 %v842, 65535
      %v916 = vshra.s32 %v842, 16
      %v917 = vcvt.s32.f32 %v915
      %v918 = vcvt.s32.f32 %v916
      %919 = vmin.xlane.f32.xlu0 %v918
      %v920 = vpop.xlane.xlu0 %919
      %vm921 = vcmp.eq.f32.partialorder %v918, %v920
      %v922 = vsel %vm921, %v917, inf
      %923 = vmin.xlane.f32.xlu0 %v922
      %v924 = vpop.xlane.xlu0 %923
      %v925 = vcvt.f32.s32 %v924
      %v926 = vcvt.f32.s32 %v920
      %v927 = vshll.u32 %v926, 16
      %v928 = vadd.s32 %v927, %v925
      %v929 = vand.u32 %v843, 65535
      %v930 = vshra.s32 %v843, 16
      %v931 = vcvt.s32.f32 %v929
      %v932 = vcvt.s32.f32 %v930
      %933 = vmin.xlane.f32.xlu0 %v932
      %v934 = vpop.xlane.xlu0 %933
      %vm935 = vcmp.eq.f32.partialorder %v932, %v934
      %v936 = vsel %vm935, %v931, inf
      %937 = vmin.xlane.f32.xlu0 %v936
      %v938 = vpop.xlane.xlu0 %937
      %v939 = vcvt.f32.s32 %v938
      %v940 = vcvt.f32.s32 %v934
      %v941 = vshll.u32 %v940, 16
      %v942 = vadd.s32 %v941, %v939
      %v943 = vand.u32 %v844, 65535
      %v944 = vshra.s32 %v844, 16
      %v945 = vcvt.s32.f32 %v943
      %v946 = vcvt.s32.f32 %v944
      %947 = vmin.xlane.f32.xlu0 %v946
      %v948 = vpop.xlane.xlu0 %947
      %vm949 = vcmp.eq.f32.partialorder %v946, %v948
      %v950 = vsel %vm949, %v945, inf
      %951 = vmin.xlane.f32.xlu0 %v950
      %v952 = vpop.xlane.xlu0 %951
      %v953 = vcvt.f32.s32 %v952
      %v954 = vcvt.f32.s32 %v948
      %v955 = vshll.u32 %v954, 16
      %v956 = vadd.s32 %v955, %v953
      %vm957 = vcmp.eq.s32.totalorder %v554, %v858
      %vm958 = vcmp.eq.s32.totalorder %v554, %v872
      %vm959 = vcmp.eq.s32.totalorder %v554, %v886
      %vm960 = vcmp.eq.s32.totalorder %v554, %v900
      %vm961 = vcmp.eq.s32.totalorder %v554, %v914
      %vm962 = vcmp.eq.s32.totalorder %v554, %v928
      %vm963 = vcmp.eq.s32.totalorder %v554, %v942
      %vm964 = vcmp.eq.s32.totalorder %v554, %v956
      %v965 = vsel %vm957, -inf, %v805
      %v966 = vsel %vm958, -inf, %v806
      %v967 = vsel %vm959, -inf, %v807
      %v968 = vsel %vm960, -inf, %v808
      %v969 = vsel %vm961, -inf, %v809
      %v970 = vsel %vm962, -inf, %v810
      %v971 = vsel %vm963, -inf, %v811
      %v972 = vsel %vm964, -inf, %v812
      %973 = vmax.xlane.f32.xlu0 %v965
      %v974 = vpop.xlane.xlu0 %973
      %975 = vmax.xlane.f32.xlu0 %v966
      %v976 = vpop.xlane.xlu0 %975
      %977 = vmax.xlane.f32.xlu0 %v967
      %v978 = vpop.xlane.xlu0 %977
      %979 = vmax.xlane.f32.xlu0 %v968
      %v980 = vpop.xlane.xlu0 %979
      %981 = vmax.xlane.f32.xlu0 %v969
      %v982 = vpop.xlane.xlu0 %981
      %983 = vmax.xlane.f32.xlu0 %v970
      %v984 = vpop.xlane.xlu0 %983
      %985 = vmax.xlane.f32.xlu0 %v971
      %v986 = vpop.xlane.xlu0 %985
      %987 = vmax.xlane.f32.xlu0 %v972
      %v988 = vpop.xlane.xlu0 %987
      %vm989 = vcmp.eq.f32.partialorder %v965, %v974
      %vm990 = vcmp.eq.f32.partialorder %v966, %v976
      %vm991 = vcmp.eq.f32.partialorder %v967, %v978
      %vm992 = vcmp.eq.f32.partialorder %v968, %v980
      %vm993 = vcmp.eq.f32.partialorder %v969, %v982
      %vm994 = vcmp.eq.f32.partialorder %v970, %v984
      %vm995 = vcmp.eq.f32.partialorder %v971, %v986
      %vm996 = vcmp.eq.f32.partialorder %v972, %v988
      %v997 = vsel %vm989, %v554, 128
      %v998 = vsel %vm990, %v554, 128
      %v999 = vsel %vm991, %v554, 128
      %v1000 = vsel %vm992, %v554, 128
      %v1001 = vsel %vm993, %v554, 128
      %v1002 = vsel %vm994, %v554, 128
      %v1003 = vsel %vm995, %v554, 128
      %v1004 = vsel %vm996, %v554, 128
      %v1005 = vand.u32 %v997, 65535
      %v1006 = vshra.s32 %v997, 16
      %v1007 = vcvt.s32.f32 %v1005
      %v1008 = vcvt.s32.f32 %v1006
      %1009 = vmin.xlane.f32.xlu0 %v1008
      %v1010 = vpop.xlane.xlu0 %1009
      %vm1011 = vcmp.eq.f32.partialorder %v1008, %v1010
      %v1012 = vsel %vm1011, %v1007, inf
      %1013 = vmin.xlane.f32.xlu0 %v1012
      %v1014 = vpop.xlane.xlu0 %1013
      %v1015 = vcvt.f32.s32 %v1014
      %v1016 = vcvt.f32.s32 %v1010
      %v1017 = vshll.u32 %v1016, 16
      %v1018 = vadd.s32 %v1017, %v1015
      %v1019 = vand.u32 %v998, 65535
      %v1020 = vshra.s32 %v998, 16
      %v1021 = vcvt.s32.f32 %v1019
      %v1022 = vcvt.s32.f32 %v1020
      %1023 = vmin.xlane.f32.xlu0 %v1022
      %v1024 = vpop.xlane.xlu0 %1023
      %vm1025 = vcmp.eq.f32.partialorder %v1022, %v1024
      %v1026 = vsel %vm1025, %v1021, inf
      %1027 = vmin.xlane.f32.xlu0 %v1026
      %v1028 = vpop.xlane.xlu0 %1027
      %v1029 = vcvt.f32.s32 %v1028
      %v1030 = vcvt.f32.s32 %v1024
      %v1031 = vshll.u32 %v1030, 16
      %v1032 = vadd.s32 %v1031, %v1029
      %v1033 = vand.u32 %v999, 65535
      %v1034 = vshra.s32 %v999, 16
      %v1035 = vcvt.s32.f32 %v1033
      %v1036 = vcvt.s32.f32 %v1034
      %1037 = vmin.xlane.f32.xlu0 %v1036
      %v1038 = vpop.xlane.xlu0 %1037
      %vm1039 = vcmp.eq.f32.partialorder %v1036, %v1038
      %v1040 = vsel %vm1039, %v1035, inf
      %1041 = vmin.xlane.f32.xlu0 %v1040
      %v1042 = vpop.xlane.xlu0 %1041
      %v1043 = vcvt.f32.s32 %v1042
      %v1044 = vcvt.f32.s32 %v1038
      %v1045 = vshll.u32 %v1044, 16
      %v1046 = vadd.s32 %v1045, %v1043
      %v1047 = vand.u32 %v1000, 65535
      %v1048 = vshra.s32 %v1000, 16
      %v1049 = vcvt.s32.f32 %v1047
      %v1050 = vcvt.s32.f32 %v1048
      %1051 = vmin.xlane.f32.xlu0 %v1050
      %v1052 = vpop.xlane.xlu0 %1051
      %vm1053 = vcmp.eq.f32.partialorder %v1050, %v1052
      %v1054 = vsel %vm1053, %v1049, inf
      %1055 = vmin.xlane.f32.xlu0 %v1054
      %v1056 = vpop.xlane.xlu0 %1055
      %v1057 = vcvt.f32.s32 %v1056
      %v1058 = vcvt.f32.s32 %v1052
      %v1059 = vshll.u32 %v1058, 16
      %v1060 = vadd.s32 %v1059, %v1057
      %v1061 = vand.u32 %v1001, 65535
      %v1062 = vshra.s32 %v1001, 16
      %v1063 = vcvt.s32.f32 %v1061
      %v1064 = vcvt.s32.f32 %v1062
      %1065 = vmin.xlane.f32.xlu0 %v1064
      %v1066 = vpop.xlane.xlu0 %1065
      %vm1067 = vcmp.eq.f32.partialorder %v1064, %v1066
      %v1068 = vsel %vm1067, %v1063, inf
      %1069 = vmin.xlane.f32.xlu0 %v1068
      %v1070 = vpop.xlane.xlu0 %1069
      %v1071 = vcvt.f32.s32 %v1070
      %v1072 = vcvt.f32.s32 %v1066
      %v1073 = vshll.u32 %v1072, 16
      %v1074 = vadd.s32 %v1073, %v1071
      %v1075 = vand.u32 %v1002, 65535
      %v1076 = vshra.s32 %v1002, 16
      %v1077 = vcvt.s32.f32 %v1075
      %v1078 = vcvt.s32.f32 %v1076
      %1079 = vmin.xlane.f32.xlu0 %v1078
      %v1080 = vpop.xlane.xlu0 %1079
      %vm1081 = vcmp.eq.f32.partialorder %v1078, %v1080
      %v1082 = vsel %vm1081, %v1077, inf
      %1083 = vmin.xlane.f32.xlu0 %v1082
      %v1084 = vpop.xlane.xlu0 %1083
      %v1085 = vcvt.f32.s32 %v1084
      %v1086 = vcvt.f32.s32 %v1080
      %v1087 = vshll.u32 %v1086, 16
      %v1088 = vadd.s32 %v1087, %v1085
      %v1089 = vand.u32 %v1003, 65535
      %v1090 = vshra.s32 %v1003, 16
      %v1091 = vcvt.s32.f32 %v1089
      %v1092 = vcvt.s32.f32 %v1090
      %1093 = vmin.xlane.f32.xlu0 %v1092
      %v1094 = vpop.xlane.xlu0 %1093
      %vm1095 = vcmp.eq.f32.partialorder %v1092, %v1094
      %v1096 = vsel %vm1095, %v1091, inf
      %1097 = vmin.xlane.f32.xlu0 %v1096
      %v1098 = vpop.xlane.xlu0 %1097
      %v1099 = vcvt.f32.s32 %v1098
      %v1100 = vcvt.f32.s32 %v1094
      %v1101 = vshll.u32 %v1100, 16
      %v1102 = vadd.s32 %v1101, %v1099
      %v1103 = vand.u32 %v1004, 65535
      %v1104 = vshra.s32 %v1004, 16
      %v1105 = vcvt.s32.f32 %v1103
      %v1106 = vcvt.s32.f32 %v1104
      %1107 = vmin.xlane.f32.xlu0 %v1106
      %v1108 = vpop.xlane.xlu0 %1107
      %vm1109 = vcmp.eq.f32.partialorder %v1106, %v1108
      %v1110 = vsel %vm1109, %v1105, inf
      %1111 = vmin.xlane.f32.xlu0 %v1110
      %v1112 = vpop.xlane.xlu0 %1111
      %v1113 = vcvt.f32.s32 %v1112
      %v1114 = vcvt.f32.s32 %v1108
      %v1115 = vshll.u32 %v1114, 16
      %v1116 = vadd.s32 %v1115, %v1113
      %vm1117 = vcmp.eq.s32.totalorder %v554, %v1018
      %vm1118 = vcmp.eq.s32.totalorder %v554, %v1032
      %vm1119 = vcmp.eq.s32.totalorder %v554, %v1046
      %vm1120 = vcmp.eq.s32.totalorder %v554, %v1060
      %vm1121 = vcmp.eq.s32.totalorder %v554, %v1074
      %vm1122 = vcmp.eq.s32.totalorder %v554, %v1088
      %vm1123 = vcmp.eq.s32.totalorder %v554, %v1102
      %vm1124 = vcmp.eq.s32.totalorder %v554, %v1116
      %v1125 = vsel %vm1117, -inf, %v965
      %v1126 = vsel %vm1118, -inf, %v966
      %v1127 = vsel %vm1119, -inf, %v967
      %v1128 = vsel %vm1120, -inf, %v968
      %v1129 = vsel %vm1121, -inf, %v969
      %v1130 = vsel %vm1122, -inf, %v970
      %v1131 = vsel %vm1123, -inf, %v971
      %v1132 = vsel %vm1124, -inf, %v972
      %1133 = vmax.xlane.f32.xlu0 %v1125
      %v1134 = vpop.xlane.xlu0 %1133
      %1135 = vmax.xlane.f32.xlu0 %v1126
      %v1136 = vpop.xlane.xlu0 %1135
      %1137 = vmax.xlane.f32.xlu0 %v1127
      %v1138 = vpop.xlane.xlu0 %1137
      %1139 = vmax.xlane.f32.xlu0 %v1128
      %v1140 = vpop.xlane.xlu0 %1139
      %1141 = vmax.xlane.f32.xlu0 %v1129
      %v1142 = vpop.xlane.xlu0 %1141
      %1143 = vmax.xlane.f32.xlu0 %v1130
      %v1144 = vpop.xlane.xlu0 %1143
      %1145 = vmax.xlane.f32.xlu0 %v1131
      %v1146 = vpop.xlane.xlu0 %1145
      %1147 = vmax.xlane.f32.xlu0 %v1132
      %v1148 = vpop.xlane.xlu0 %1147
      %vm1149 = vcmp.eq.f32.partialorder %v1125, %v1134
      %vm1150 = vcmp.eq.f32.partialorder %v1126, %v1136
      %vm1151 = vcmp.eq.f32.partialorder %v1127, %v1138
      %vm1152 = vcmp.eq.f32.partialorder %v1128, %v1140
      %vm1153 = vcmp.eq.f32.partialorder %v1129, %v1142
      %vm1154 = vcmp.eq.f32.partialorder %v1130, %v1144
      %vm1155 = vcmp.eq.f32.partialorder %v1131, %v1146
      %vm1156 = vcmp.eq.f32.partialorder %v1132, %v1148
      %v1157 = vsel %vm1149, %v554, 128
      %v1158 = vsel %vm1150, %v554, 128
      %v1159 = vsel %vm1151, %v554, 128
      %v1160 = vsel %vm1152, %v554, 128
      %v1161 = vsel %vm1153, %v554, 128
      %v1162 = vsel %vm1154, %v554, 128
      %v1163 = vsel %vm1155, %v554, 128
      %v1164 = vsel %vm1156, %v554, 128
      %v1165 = vand.u32 %v1157, 65535
      %v1166 = vshra.s32 %v1157, 16
      %v1167 = vcvt.s32.f32 %v1165
      %v1168 = vcvt.s32.f32 %v1166
      %1169 = vmin.xlane.f32.xlu0 %v1168
      %v1170 = vpop.xlane.xlu0 %1169
      %vm1171 = vcmp.eq.f32.partialorder %v1168, %v1170
      %v1172 = vsel %vm1171, %v1167, inf
      %1173 = vmin.xlane.f32.xlu0 %v1172
      %v1174 = vpop.xlane.xlu0 %1173
      %v1175 = vcvt.f32.s32 %v1174
      %v1176 = vcvt.f32.s32 %v1170
      %v1177 = vshll.u32 %v1176, 16
      %v1178 = vadd.s32 %v1177, %v1175
      %v1179 = vand.u32 %v1158, 65535
      %v1180 = vshra.s32 %v1158, 16
      %v1181 = vcvt.s32.f32 %v1179
      %v1182 = vcvt.s32.f32 %v1180
      %1183 = vmin.xlane.f32.xlu0 %v1182
      %v1184 = vpop.xlane.xlu0 %1183
      %vm1185 = vcmp.eq.f32.partialorder %v1182, %v1184
      %v1186 = vsel %vm1185, %v1181, inf
      %1187 = vmin.xlane.f32.xlu0 %v1186
      %v1188 = vpop.xlane.xlu0 %1187
      %v1189 = vcvt.f32.s32 %v1188
      %v1190 = vcvt.f32.s32 %v1184
      %v1191 = vshll.u32 %v1190, 16
      %v1192 = vadd.s32 %v1191, %v1189
      %v1193 = vand.u32 %v1159, 65535
      %v1194 = vshra.s32 %v1159, 16
      %v1195 = vcvt.s32.f32 %v1193
      %v1196 = vcvt.s32.f32 %v1194
      %1197 = vmin.xlane.f32.xlu0 %v1196
      %v1198 = vpop.xlane.xlu0 %1197
      %vm1199 = vcmp.eq.f32.partialorder %v1196, %v1198
      %v1200 = vsel %vm1199, %v1195, inf
      %1201 = vmin.xlane.f32.xlu0 %v1200
      %v1202 = vpop.xlane.xlu0 %1201
      %v1203 = vcvt.f32.s32 %v1202
      %v1204 = vcvt.f32.s32 %v1198
      %v1205 = vshll.u32 %v1204, 16
      %v1206 = vadd.s32 %v1205, %v1203
      %v1207 = vand.u32 %v1160, 65535
      %v1208 = vshra.s32 %v1160, 16
      %v1209 = vcvt.s32.f32 %v1207
      %v1210 = vcvt.s32.f32 %v1208
      %1211 = vmin.xlane.f32.xlu0 %v1210
      %v1212 = vpop.xlane.xlu0 %1211
      %vm1213 = vcmp.eq.f32.partialorder %v1210, %v1212
      %v1214 = vsel %vm1213, %v1209, inf
      %1215 = vmin.xlane.f32.xlu0 %v1214
      %v1216 = vpop.xlane.xlu0 %1215
      %v1217 = vcvt.f32.s32 %v1216
      %v1218 = vcvt.f32.s32 %v1212
      %v1219 = vshll.u32 %v1218, 16
      %v1220 = vadd.s32 %v1219, %v1217
      %v1221 = vand.u32 %v1161, 65535
      %v1222 = vshra.s32 %v1161, 16
      %v1223 = vcvt.s32.f32 %v1221
      %v1224 = vcvt.s32.f32 %v1222
      %1225 = vmin.xlane.f32.xlu0 %v1224
      %v1226 = vpop.xlane.xlu0 %1225
      %vm1227 = vcmp.eq.f32.partialorder %v1224, %v1226
      %v1228 = vsel %vm1227, %v1223, inf
      %1229 = vmin.xlane.f32.xlu0 %v1228
      %v1230 = vpop.xlane.xlu0 %1229
      %v1231 = vcvt.f32.s32 %v1230
      %v1232 = vcvt.f32.s32 %v1226
      %v1233 = vshll.u32 %v1232, 16
      %v1234 = vadd.s32 %v1233, %v1231
      %v1235 = vand.u32 %v1162, 65535
      %v1236 = vshra.s32 %v1162, 16
      %v1237 = vcvt.s32.f32 %v1235
      %v1238 = vcvt.s32.f32 %v1236
      %1239 = vmin.xlane.f32.xlu0 %v1238
      %v1240 = vpop.xlane.xlu0 %1239
      %vm1241 = vcmp.eq.f32.partialorder %v1238, %v1240
      %v1242 = vsel %vm1241, %v1237, inf
      %1243 = vmin.xlane.f32.xlu0 %v1242
      %v1244 = vpop.xlane.xlu0 %1243
      %v1245 = vcvt.f32.s32 %v1244
      %v1246 = vcvt.f32.s32 %v1240
      %v1247 = vshll.u32 %v1246, 16
      %v1248 = vadd.s32 %v1247, %v1245
      %v1249 = vand.u32 %v1163, 65535
      %v1250 = vshra.s32 %v1163, 16
      %v1251 = vcvt.s32.f32 %v1249
      %v1252 = vcvt.s32.f32 %v1250
      %1253 = vmin.xlane.f32.xlu0 %v1252
      %v1254 = vpop.xlane.xlu0 %1253
      %vm1255 = vcmp.eq.f32.partialorder %v1252, %v1254
      %v1256 = vsel %vm1255, %v1251, inf
      %1257 = vmin.xlane.f32.xlu0 %v1256
      %v1258 = vpop.xlane.xlu0 %1257
      %v1259 = vcvt.f32.s32 %v1258
      %v1260 = vcvt.f32.s32 %v1254
      %v1261 = vshll.u32 %v1260, 16
      %v1262 = vadd.s32 %v1261, %v1259
      %v1263 = vand.u32 %v1164, 65535
      %v1264 = vshra.s32 %v1164, 16
      %v1265 = vcvt.s32.f32 %v1263
      %v1266 = vcvt.s32.f32 %v1264
      %1267 = vmin.xlane.f32.xlu0 %v1266
      %v1268 = vpop.xlane.xlu0 %1267
      %vm1269 = vcmp.eq.f32.partialorder %v1266, %v1268
      %v1270 = vsel %vm1269, %v1265, inf
      %1271 = vmin.xlane.f32.xlu0 %v1270
      %v1272 = vpop.xlane.xlu0 %1271
      %v1273 = vcvt.f32.s32 %v1272
      %v1274 = vcvt.f32.s32 %v1268
      %v1275 = vshll.u32 %v1274, 16
      %v1276 = vadd.s32 %v1275, %v1273
      %vm1277 = vcmp.eq.s32.totalorder %v554, %v1178
      %vm1278 = vcmp.eq.s32.totalorder %v554, %v1192
      %vm1279 = vcmp.eq.s32.totalorder %v554, %v1206
      %vm1280 = vcmp.eq.s32.totalorder %v554, %v1220
      %vm1281 = vcmp.eq.s32.totalorder %v554, %v1234
      %vm1282 = vcmp.eq.s32.totalorder %v554, %v1248
      %vm1283 = vcmp.eq.s32.totalorder %v554, %v1262
      %vm1284 = vcmp.eq.s32.totalorder %v554, %v1276
      %v1285 = vsel %vm1277, -inf, %v1125
      %v1286 = vsel %vm1278, -inf, %v1126
      %v1287 = vsel %vm1279, -inf, %v1127
      %v1288 = vsel %vm1280, -inf, %v1128
      %v1289 = vsel %vm1281, -inf, %v1129
      %v1290 = vsel %vm1282, -inf, %v1130
      %v1291 = vsel %vm1283, -inf, %v1131
      %v1292 = vsel %vm1284, -inf, %v1132
      %1293 = vmax.xlane.f32.xlu0 %v1285
      %v1294 = vpop.xlane.xlu0 %1293
      %1295 = vmax.xlane.f32.xlu0 %v1286
      %v1296 = vpop.xlane.xlu0 %1295
      %1297 = vmax.xlane.f32.xlu0 %v1287
      %v1298 = vpop.xlane.xlu0 %1297
      %1299 = vmax.xlane.f32.xlu0 %v1288
      %v1300 = vpop.xlane.xlu0 %1299
      %1301 = vmax.xlane.f32.xlu0 %v1289
      %v1302 = vpop.xlane.xlu0 %1301
      %1303 = vmax.xlane.f32.xlu0 %v1290
      %v1304 = vpop.xlane.xlu0 %1303
      %1305 = vmax.xlane.f32.xlu0 %v1291
      %v1306 = vpop.xlane.xlu0 %1305
      %1307 = vmax.xlane.f32.xlu0 %v1292
      %v1308 = vpop.xlane.xlu0 %1307
      %vm1309 = vcmp.eq.f32.partialorder %v1285, %v1294
      %vm1310 = vcmp.eq.f32.partialorder %v1286, %v1296
      %vm1311 = vcmp.eq.f32.partialorder %v1287, %v1298
      %vm1312 = vcmp.eq.f32.partialorder %v1288, %v1300
      %vm1313 = vcmp.eq.f32.partialorder %v1289, %v1302
      %vm1314 = vcmp.eq.f32.partialorder %v1290, %v1304
      %vm1315 = vcmp.eq.f32.partialorder %v1291, %v1306
      %vm1316 = vcmp.eq.f32.partialorder %v1292, %v1308
      %v1317 = vsel %vm1309, %v554, 128
      %v1318 = vsel %vm1310, %v554, 128
      %v1319 = vsel %vm1311, %v554, 128
      %v1320 = vsel %vm1312, %v554, 128
      %v1321 = vsel %vm1313, %v554, 128
      %v1322 = vsel %vm1314, %v554, 128
      %v1323 = vsel %vm1315, %v554, 128
      %v1324 = vsel %vm1316, %v554, 128
      %v1325 = vand.u32 %v1317, 65535
      %v1326 = vshra.s32 %v1317, 16
      %v1327 = vcvt.s32.f32 %v1325
      %v1328 = vcvt.s32.f32 %v1326
      %1329 = vmin.xlane.f32.xlu0 %v1328
      %v1330 = vpop.xlane.xlu0 %1329
      %vm1331 = vcmp.eq.f32.partialorder %v1328, %v1330
      %v1332 = vsel %vm1331, %v1327, inf
      %1333 = vmin.xlane.f32.xlu0 %v1332
      %v1334 = vpop.xlane.xlu0 %1333
      %v1335 = vcvt.f32.s32 %v1334
      %v1336 = vcvt.f32.s32 %v1330
      %v1337 = vshll.u32 %v1336, 16
      %v1338 = vadd.s32 %v1337, %v1335
      %v1339 = vand.u32 %v1318, 65535
      %v1340 = vshra.s32 %v1318, 16
      %v1341 = vcvt.s32.f32 %v1339
      %v1342 = vcvt.s32.f32 %v1340
      %1343 = vmin.xlane.f32.xlu0 %v1342
      %v1344 = vpop.xlane.xlu0 %1343
      %vm1345 = vcmp.eq.f32.partialorder %v1342, %v1344
      %v1346 = vsel %vm1345, %v1341, inf
      %1347 = vmin.xlane.f32.xlu0 %v1346
      %v1348 = vpop.xlane.xlu0 %1347
      %v1349 = vcvt.f32.s32 %v1348
      %v1350 = vcvt.f32.s32 %v1344
      %v1351 = vshll.u32 %v1350, 16
      %v1352 = vadd.s32 %v1351, %v1349
      %v1353 = vand.u32 %v1319, 65535
      %v1354 = vshra.s32 %v1319, 16
      %v1355 = vcvt.s32.f32 %v1353
      %v1356 = vcvt.s32.f32 %v1354
      %1357 = vmin.xlane.f32.xlu0 %v1356
      %v1358 = vpop.xlane.xlu0 %1357
      %vm1359 = vcmp.eq.f32.partialorder %v1356, %v1358
      %v1360 = vsel %vm1359, %v1355, inf
      %1361 = vmin.xlane.f32.xlu0 %v1360
      %v1362 = vpop.xlane.xlu0 %1361
      %v1363 = vcvt.f32.s32 %v1362
      %v1364 = vcvt.f32.s32 %v1358
      %v1365 = vshll.u32 %v1364, 16
      %v1366 = vadd.s32 %v1365, %v1363
      %v1367 = vand.u32 %v1320, 65535
      %v1368 = vshra.s32 %v1320, 16
      %v1369 = vcvt.s32.f32 %v1367
      %v1370 = vcvt.s32.f32 %v1368
      %1371 = vmin.xlane.f32.xlu0 %v1370
      %v1372 = vpop.xlane.xlu0 %1371
      %vm1373 = vcmp.eq.f32.partialorder %v1370, %v1372
      %v1374 = vsel %vm1373, %v1369, inf
      %1375 = vmin.xlane.f32.xlu0 %v1374
      %v1376 = vpop.xlane.xlu0 %1375
      %v1377 = vcvt.f32.s32 %v1376
      %v1378 = vcvt.f32.s32 %v1372
      %v1379 = vshll.u32 %v1378, 16
      %v1380 = vadd.s32 %v1379, %v1377
      %v1381 = vand.u32 %v1321, 65535
      %v1382 = vshra.s32 %v1321, 16
      %v1383 = vcvt.s32.f32 %v1381
      %v1384 = vcvt.s32.f32 %v1382
      %1385 = vmin.xlane.f32.xlu0 %v1384
      %v1386 = vpop.xlane.xlu0 %1385
      %vm1387 = vcmp.eq.f32.partialorder %v1384, %v1386
      %v1388 = vsel %vm1387, %v1383, inf
      %1389 = vmin.xlane.f32.xlu0 %v1388
      %v1390 = vpop.xlane.xlu0 %1389
      %v1391 = vcvt.f32.s32 %v1390
      %v1392 = vcvt.f32.s32 %v1386
      %v1393 = vshll.u32 %v1392, 16
      %v1394 = vadd.s32 %v1393, %v1391
      %v1395 = vand.u32 %v1322, 65535
      %v1396 = vshra.s32 %v1322, 16
      %v1397 = vcvt.s32.f32 %v1395
      %v1398 = vcvt.s32.f32 %v1396
      %1399 = vmin.xlane.f32.xlu0 %v1398
      %v1400 = vpop.xlane.xlu0 %1399
      %vm1401 = vcmp.eq.f32.partialorder %v1398, %v1400
      %v1402 = vsel %vm1401, %v1397, inf
      %1403 = vmin.xlane.f32.xlu0 %v1402
      %v1404 = vpop.xlane.xlu0 %1403
      %v1405 = vcvt.f32.s32 %v1404
      %v1406 = vcvt.f32.s32 %v1400
      %v1407 = vshll.u32 %v1406, 16
      %v1408 = vadd.s32 %v1407, %v1405
      %v1409 = vand.u32 %v1323, 65535
      %v1410 = vshra.s32 %v1323, 16
      %v1411 = vcvt.s32.f32 %v1409
      %v1412 = vcvt.s32.f32 %v1410
      %1413 = vmin.xlane.f32.xlu0 %v1412
      %v1414 = vpop.xlane.xlu0 %1413
      %vm1415 = vcmp.eq.f32.partialorder %v1412, %v1414
      %v1416 = vsel %vm1415, %v1411, inf
      %1417 = vmin.xlane.f32.xlu0 %v1416
      %v1418 = vpop.xlane.xlu0 %1417
      %v1419 = vcvt.f32.s32 %v1418
      %v1420 = vcvt.f32.s32 %v1414
      %v1421 = vshll.u32 %v1420, 16
      %v1422 = vadd.s32 %v1421, %v1419
      %v1423 = vand.u32 %v1324, 65535
      %v1424 = vshra.s32 %v1324, 16
      %v1425 = vcvt.s32.f32 %v1423
      %v1426 = vcvt.s32.f32 %v1424
      %1427 = vmin.xlane.f32.xlu0 %v1426
      %v1428 = vpop.xlane.xlu0 %1427
      %vm1429 = vcmp.eq.f32.partialorder %v1426, %v1428
      %v1430 = vsel %vm1429, %v1425, inf
      %1431 = vmin.xlane.f32.xlu0 %v1430
      %v1432 = vpop.xlane.xlu0 %1431
      %v1433 = vcvt.f32.s32 %v1432
      %v1434 = vcvt.f32.s32 %v1428
      %v1435 = vshll.u32 %v1434, 16
      %v1436 = vadd.s32 %v1435, %v1433
      %vm1437 = vcmp.eq.s32.totalorder %v554, %v1338
      %vm1438 = vcmp.eq.s32.totalorder %v554, %v1352
      %vm1439 = vcmp.eq.s32.totalorder %v554, %v1366
      %vm1440 = vcmp.eq.s32.totalorder %v554, %v1380
      %vm1441 = vcmp.eq.s32.totalorder %v554, %v1394
      %vm1442 = vcmp.eq.s32.totalorder %v554, %v1408
      %vm1443 = vcmp.eq.s32.totalorder %v554, %v1422
      %vm1444 = vcmp.eq.s32.totalorder %v554, %v1436
      %v1445 = vsel %vm1437, -inf, %v1285
      %v1446 = vsel %vm1438, -inf, %v1286
      %v1447 = vsel %vm1439, -inf, %v1287
      %v1448 = vsel %vm1440, -inf, %v1288
      %v1449 = vsel %vm1441, -inf, %v1289
      %v1450 = vsel %vm1442, -inf, %v1290
      %v1451 = vsel %vm1443, -inf, %v1291
      %v1452 = vsel %vm1444, -inf, %v1292
      %1453 = vmax.xlane.f32.xlu0 %v1445
      %v1454 = vpop.xlane.xlu0 %1453
      %1455 = vmax.xlane.f32.xlu0 %v1446
      %v1456 = vpop.xlane.xlu0 %1455
      %1457 = vmax.xlane.f32.xlu0 %v1447
      %v1458 = vpop.xlane.xlu0 %1457
      %1459 = vmax.xlane.f32.xlu0 %v1448
      %v1460 = vpop.xlane.xlu0 %1459
      %1461 = vmax.xlane.f32.xlu0 %v1449
      %v1462 = vpop.xlane.xlu0 %1461
      %1463 = vmax.xlane.f32.xlu0 %v1450
      %v1464 = vpop.xlane.xlu0 %1463
      %1465 = vmax.xlane.f32.xlu0 %v1451
      %v1466 = vpop.xlane.xlu0 %1465
      %1467 = vmax.xlane.f32.xlu0 %v1452
      %v1468 = vpop.xlane.xlu0 %1467
      %vm1469 = vcmp.ge.f32.partialorder %v515, %v1454
      %vm1470 = vcmp.ge.f32.partialorder %v520, %v1456
      %vm1471 = vcmp.ge.f32.partialorder %v525, %v1458
      %vm1472 = vcmp.ge.f32.partialorder %v530, %v1460
      %vm1473 = vcmp.ge.f32.partialorder %v535, %v1462
      %vm1474 = vcmp.ge.f32.partialorder %v540, %v1464
      %vm1475 = vcmp.ge.f32.partialorder %v545, %v1466
      %vm1476 = vcmp.ge.f32.partialorder %v550, %v1468
      %vm1477 = vmxor %vm1469, 1
      %vm1478 = vmxor %vm1470, 1
      %vm1479 = vmxor %vm1471, 1
      %vm1480 = vmxor %vm1472, 1
      %vm1481 = vmxor %vm1473, 1
      %vm1482 = vmxor %vm1474, 1
      %vm1483 = vmxor %vm1475, 1
      %vm1484 = vmxor %vm1476, 1
      %vm1485 = vmor %vm605, %vm1477
      %vm1486 = vmor %vm606, %vm1478
      %vm1487 = vmor %vm607, %vm1479
      %vm1488 = vmor %vm608, %vm1480
      %vm1489 = vmor %vm609, %vm1481
      %vm1490 = vmor %vm610, %vm1482
      %vm1491 = vmor %vm611, %vm1483
      %vm1492 = vmor %vm612, %vm1484
      %v1493 = vsel %vm1485, %v621, -1e+09
      %v1494 = vsel %vm1486, %v622, -1e+09
      %v1495 = vsel %vm1487, %v623, -1e+09
      %v1496 = vsel %vm1488, %v624, -1e+09
      %v1497 = vsel %vm1489, %v625, -1e+09
      %v1498 = vsel %vm1490, %v626, -1e+09
      %v1499 = vsel %vm1491, %v627, -1e+09
      %v1500 = vsel %vm1492, %v628, -1e+09
      %1501 = vmax.xlane.f32.xlu0 %v1493
      %v1502 = vpop.xlane.xlu0 %1501
      %1503 = vmax.xlane.f32.xlu0 %v1494
      %v1504 = vpop.xlane.xlu0 %1503
      %1505 = vmax.xlane.f32.xlu0 %v1495
      %v1506 = vpop.xlane.xlu0 %1505
      %1507 = vmax.xlane.f32.xlu0 %v1496
      %v1508 = vpop.xlane.xlu0 %1507
      %1509 = vmax.xlane.f32.xlu0 %v1497
      %v1510 = vpop.xlane.xlu0 %1509
      %1511 = vmax.xlane.f32.xlu0 %v1498
      %v1512 = vpop.xlane.xlu0 %1511
      %1513 = vmax.xlane.f32.xlu0 %v1499
      %v1514 = vpop.xlane.xlu0 %1513
      %1515 = vmax.xlane.f32.xlu0 %v1500
      %v1516 = vpop.xlane.xlu0 %1515
      %v1517 = vsub.f32 %v1493, %v1502
      %v1518 = vsub.f32 %v1494, %v1504
      %v1519 = vsub.f32 %v1495, %v1506
      %v1520 = vsub.f32 %v1496, %v1508
      %v1521 = vsub.f32 %v1497, %v1510
      %v1522 = vsub.f32 %v1498, %v1512
      %v1523 = vsub.f32 %v1499, %v1514
      %v1524 = vsub.f32 %v1500, %v1516
      %v1525 = vmul.f32 %v1517, 1.442695
      %v1526 = vpow.pop %v1525
      %v1527 = vmul.f32 %v1518, 1.442695
      %v1528 = vpow.pop %v1527
      %v1529 = vmul.f32 %v1519, 1.442695
      %v1530 = vpow.pop %v1529
      %v1531 = vmul.f32 %v1520, 1.442695
      %v1532 = vpow.pop %v1531
      %v1533 = vmul.f32 %v1521, 1.442695
      %v1534 = vpow.pop %v1533
      %v1535 = vmul.f32 %v1522, 1.442695
      %v1536 = vpow.pop %v1535
      %v1537 = vmul.f32 %v1523, 1.442695
      %v1538 = vpow.pop %v1537
      %v1539 = vmul.f32 %v1524, 1.442695
      %v1540 = vpow.pop %v1539
      %1541 = vadd.xlane.f32.xlu0 %v1526
      %v1542 = vpop.xlane.xlu0 %1541
      %1543 = vadd.xlane.f32.xlu0 %v1528
      %v1544 = vpop.xlane.xlu0 %1543
      %1545 = vadd.xlane.f32.xlu0 %v1530
      %v1546 = vpop.xlane.xlu0 %1545
      %1547 = vadd.xlane.f32.xlu0 %v1532
      %v1548 = vpop.xlane.xlu0 %1547
      %1549 = vadd.xlane.f32.xlu0 %v1534
      %v1550 = vpop.xlane.xlu0 %1549
      %1551 = vadd.xlane.f32.xlu0 %v1536
      %v1552 = vpop.xlane.xlu0 %1551
      %1553 = vadd.xlane.f32.xlu0 %v1538
      %v1554 = vpop.xlane.xlu0 %1553
      %1555 = vadd.xlane.f32.xlu0 %v1540
      %v1556 = vpop.xlane.xlu0 %1555
      %v1557 = vlog2.pop %v1542
      %v1558 = vmul.f32 %v1557, 0.6931472
      %v1559 = vlog2.pop %v1544
      %v1560 = vmul.f32 %v1559, 0.6931472
      %v1561 = vlog2.pop %v1546
      %v1562 = vmul.f32 %v1561, 0.6931472
      %v1563 = vlog2.pop %v1548
      %v1564 = vmul.f32 %v1563, 0.6931472
      %v1565 = vlog2.pop %v1550
      %v1566 = vmul.f32 %v1565, 0.6931472
      %v1567 = vlog2.pop %v1552
      %v1568 = vmul.f32 %v1567, 0.6931472
      %v1569 = vlog2.pop %v1554
      %v1570 = vmul.f32 %v1569, 0.6931472
      %v1571 = vlog2.pop %v1556
      %v1572 = vmul.f32 %v1571, 0.6931472
      %v1573 = vadd.f32 %v1502, %v1558
      %v1574 = vadd.f32 %v1504, %v1560
      %v1575 = vadd.f32 %v1506, %v1562
      %v1576 = vadd.f32 %v1508, %v1564
      %v1577 = vadd.f32 %v1510, %v1566
      %v1578 = vadd.f32 %v1512, %v1568
      %v1579 = vadd.f32 %v1514, %v1570
      %v1580 = vadd.f32 %v1516, %v1572
      %v1581 = vsub.f32 %v1573, %v638
      %v1582 = vsub.f32 %v1574, %v640
      %v1583 = vsub.f32 %v1575, %v642
      %v1584 = vsub.f32 %v1576, %v644
      %v1585 = vsub.f32 %v1577, %v646
      %v1586 = vsub.f32 %v1578, %v648
      %v1587 = vsub.f32 %v1579, %v650
      %v1588 = vsub.f32 %v1580, %v652
      %vm1589 = vcmask 7168
      %1590 = vst.msk [vmem:[%s256] sm:$0xff] %vm1589, %v1581
      %1591 = vst.msk [vmem:[%s256 + $0x8] sm:$0xff] %vm1589, %v1582
      %1592 = vst.msk [vmem:[%s256 + $0x10] sm:$0xff] %vm1589, %v1583
      %1593 = vst.msk [vmem:[%s256 + $0x18] sm:$0xff] %vm1589, %v1584
      %1594 = vst.msk [vmem:[%s256 + $0x20] sm:$0xff] %vm1589, %v1585
      %1595 = vst.msk [vmem:[%s256 + $0x28] sm:$0xff] %vm1589, %v1586
      %1596 = vst.msk [vmem:[%s256 + $0x30] sm:$0xff] %vm1589, %v1587
      %1597 = vst.msk [vmem:[%s256 + $0x38] sm:$0xff] %vm1589, %v1588
      %vm1598 = vcmp.eq.f32.partialorder %v1493, %v1502
      %vm1599 = vcmp.eq.f32.partialorder %v1494, %v1504
      %vm1600 = vcmp.eq.f32.partialorder %v1495, %v1506
      %vm1601 = vcmp.eq.f32.partialorder %v1496, %v1508
      %vm1602 = vcmp.eq.f32.partialorder %v1497, %v1510
      %vm1603 = vcmp.eq.f32.partialorder %v1498, %v1512
      %vm1604 = vcmp.eq.f32.partialorder %v1499, %v1514
      %vm1605 = vcmp.eq.f32.partialorder %v1500, %v1516
      %v1606 = vsel %vm1598, %v554, 128
      %v1607 = vsel %vm1599, %v554, 128
      %v1608 = vsel %vm1600, %v554, 128
      %v1609 = vsel %vm1601, %v554, 128
      %v1610 = vsel %vm1602, %v554, 128
      %v1611 = vsel %vm1603, %v554, 128
      %v1612 = vsel %vm1604, %v554, 128
      %v1613 = vsel %vm1605, %v554, 128
      %v1614 = vand.u32 %v1606, 65535
      %v1615 = vshra.s32 %v1606, 16
      %v1616 = vcvt.s32.f32 %v1614
      %v1617 = vcvt.s32.f32 %v1615
      %1618 = vmin.xlane.f32.xlu0 %v1617
      %v1619 = vpop.xlane.xlu0 %1618
      %vm1620 = vcmp.eq.f32.partialorder %v1617, %v1619
      %v1621 = vsel %vm1620, %v1616, inf
      %1622 = vmin.xlane.f32.xlu0 %v1621
      %v1623 = vpop.xlane.xlu0 %1622
      %v1624 = vcvt.f32.s32 %v1623
      %v1625 = vcvt.f32.s32 %v1619
      %v1626 = vshll.u32 %v1625, 16
      %v1627 = vadd.s32 %v1626, %v1624
      %v1628 = vand.u32 %v1607, 65535
      %v1629 = vshra.s32 %v1607, 16
      %v1630 = vcvt.s32.f32 %v1628
      %v1631 = vcvt.s32.f32 %v1629
      %1632 = vmin.xlane.f32.xlu0 %v1631
      %v1633 = vpop.xlane.xlu0 %1632
      %vm1634 = vcmp.eq.f32.partialorder %v1631, %v1633
      %v1635 = vsel %vm1634, %v1630, inf
      %1636 = vmin.xlane.f32.xlu0 %v1635
      %v1637 = vpop.xlane.xlu0 %1636
      %v1638 = vcvt.f32.s32 %v1637
      %v1639 = vcvt.f32.s32 %v1633
      %v1640 = vshll.u32 %v1639, 16
      %v1641 = vadd.s32 %v1640, %v1638
      %v1642 = vand.u32 %v1608, 65535
      %v1643 = vshra.s32 %v1608, 16
      %v1644 = vcvt.s32.f32 %v1642
      %v1645 = vcvt.s32.f32 %v1643
      %1646 = vmin.xlane.f32.xlu0 %v1645
      %v1647 = vpop.xlane.xlu0 %1646
      %vm1648 = vcmp.eq.f32.partialorder %v1645, %v1647
      %v1649 = vsel %vm1648, %v1644, inf
      %1650 = vmin.xlane.f32.xlu0 %v1649
      %v1651 = vpop.xlane.xlu0 %1650
      %v1652 = vcvt.f32.s32 %v1651
      %v1653 = vcvt.f32.s32 %v1647
      %v1654 = vshll.u32 %v1653, 16
      %v1655 = vadd.s32 %v1654, %v1652
      %v1656 = vand.u32 %v1609, 65535
      %v1657 = vshra.s32 %v1609, 16
      %v1658 = vcvt.s32.f32 %v1656
      %v1659 = vcvt.s32.f32 %v1657
      %1660 = vmin.xlane.f32.xlu0 %v1659
      %v1661 = vpop.xlane.xlu0 %1660
      %vm1662 = vcmp.eq.f32.partialorder %v1659, %v1661
      %v1663 = vsel %vm1662, %v1658, inf
      %1664 = vmin.xlane.f32.xlu0 %v1663
      %v1665 = vpop.xlane.xlu0 %1664
      %v1666 = vcvt.f32.s32 %v1665
      %v1667 = vcvt.f32.s32 %v1661
      %v1668 = vshll.u32 %v1667, 16
      %v1669 = vadd.s32 %v1668, %v1666
      %v1670 = vand.u32 %v1610, 65535
      %v1671 = vshra.s32 %v1610, 16
      %v1672 = vcvt.s32.f32 %v1670
      %v1673 = vcvt.s32.f32 %v1671
      %1674 = vmin.xlane.f32.xlu0 %v1673
      %v1675 = vpop.xlane.xlu0 %1674
      %vm1676 = vcmp.eq.f32.partialorder %v1673, %v1675
      %v1677 = vsel %vm1676, %v1672, inf
      %1678 = vmin.xlane.f32.xlu0 %v1677
      %v1679 = vpop.xlane.xlu0 %1678
      %v1680 = vcvt.f32.s32 %v1679
      %v1681 = vcvt.f32.s32 %v1675
      %v1682 = vshll.u32 %v1681, 16
      %v1683 = vadd.s32 %v1682, %v1680
      %v1684 = vand.u32 %v1611, 65535
      %v1685 = vshra.s32 %v1611, 16
      %v1686 = vcvt.s32.f32 %v1684
      %v1687 = vcvt.s32.f32 %v1685
      %1688 = vmin.xlane.f32.xlu0 %v1687
      %v1689 = vpop.xlane.xlu0 %1688
      %vm1690 = vcmp.eq.f32.partialorder %v1687, %v1689
      %v1691 = vsel %vm1690, %v1686, inf
      %1692 = vmin.xlane.f32.xlu0 %v1691
      %v1693 = vpop.xlane.xlu0 %1692
      %v1694 = vcvt.f32.s32 %v1693
      %v1695 = vcvt.f32.s32 %v1689
      %v1696 = vshll.u32 %v1695, 16
      %v1697 = vadd.s32 %v1696, %v1694
      %v1698 = vand.u32 %v1612, 65535
      %v1699 = vshra.s32 %v1612, 16
      %v1700 = vcvt.s32.f32 %v1698
      %v1701 = vcvt.s32.f32 %v1699
      %1702 = vmin.xlane.f32.xlu0 %v1701
      %v1703 = vpop.xlane.xlu0 %1702
      %vm1704 = vcmp.eq.f32.partialorder %v1701, %v1703
      %v1705 = vsel %vm1704, %v1700, inf
      %1706 = vmin.xlane.f32.xlu0 %v1705
      %v1707 = vpop.xlane.xlu0 %1706
      %v1708 = vcvt.f32.s32 %v1707
      %v1709 = vcvt.f32.s32 %v1703
      %v1710 = vshll.u32 %v1709, 16
      %v1711 = vadd.s32 %v1710, %v1708
      %v1712 = vand.u32 %v1613, 65535
      %v1713 = vshra.s32 %v1613, 16
      %v1714 = vcvt.s32.f32 %v1712
      %v1715 = vcvt.s32.f32 %v1713
      %1716 = vmin.xlane.f32.xlu0 %v1715
      %v1717 = vpop.xlane.xlu0 %1716
      %vm1718 = vcmp.eq.f32.partialorder %v1715, %v1717
      %v1719 = vsel %vm1718, %v1714, inf
      %1720 = vmin.xlane.f32.xlu0 %v1719
      %v1721 = vpop.xlane.xlu0 %1720
      %v1722 = vcvt.f32.s32 %v1721
      %v1723 = vcvt.f32.s32 %v1717
      %v1724 = vshll.u32 %v1723, 16
      %v1725 = vadd.s32 %v1724, %v1722
      %vm1726 = vcmp.eq.s32.totalorder %v1627, %v597
      %vm1727 = vcmp.eq.s32.totalorder %v1641, %v598
      %vm1728 = vcmp.eq.s32.totalorder %v1655, %v599
      %vm1729 = vcmp.eq.s32.totalorder %v1669, %v600
      %vm1730 = vcmp.eq.s32.totalorder %v1683, %v601
      %vm1731 = vcmp.eq.s32.totalorder %v1697, %v602
      %vm1732 = vcmp.eq.s32.totalorder %v1711, %v603
      %vm1733 = vcmp.eq.s32.totalorder %v1725, %v604
      %v1734 = vsel %vm1726, 1, 0
      %v1735 = vsel %vm1727, 1, 0
      %v1736 = vsel %vm1728, 1, 0
      %v1737 = vsel %vm1729, 1, 0
      %v1738 = vsel %vm1730, 1, 0
      %v1739 = vsel %vm1731, 1, 0
      %v1740 = vsel %vm1732, 1, 0
      %v1741 = vsel %vm1733, 1, 0
      %v1742 = vcvt.s32.f32 %v1734
      %v1743 = vcvt.s32.f32 %v1735
      %v1744 = vcvt.s32.f32 %v1736
      %v1745 = vcvt.s32.f32 %v1737
      %v1746 = vcvt.s32.f32 %v1738
      %v1747 = vcvt.s32.f32 %v1739
      %v1748 = vcvt.s32.f32 %v1740
      %v1749 = vcvt.s32.f32 %v1741
      %1750 = vst.msk [vmem:[%s262] sm:$0xff] %vm1589, %v1742
      %1751 = vst.msk [vmem:[%s262 + $0x8] sm:$0xff] %vm1589, %v1743
      %1752 = vst.msk [vmem:[%s262 + $0x10] sm:$0xff] %vm1589, %v1744
      %1753 = vst.msk [vmem:[%s262 + $0x18] sm:$0xff] %vm1589, %v1745
      %1754 = vst.msk [vmem:[%s262 + $0x20] sm:$0xff] %vm1589, %v1746
      %1755 = vst.msk [vmem:[%s262 + $0x28] sm:$0xff] %vm1589, %v1747
      %1756 = vst.msk [vmem:[%s262 + $0x30] sm:$0xff] %vm1589, %v1748
      %1757 = vst.msk [vmem:[%s262 + $0x38] sm:$0xff] %vm1589, %v1749
      %s1758 = smul.u32 8, %s17
      %p1759 = scmp.lt.s32.totalorder %s1758, 15
      %s1760 = scalar_select %p1759, %s1758, 15
      %s1761 = smul.addr %s1760, 8
      %s1762 = scalar_lea.vmem %s4, %s1761
      %s1763 = smul.u32 8, %s17
      %p1764 = scmp.lt.s32.totalorder %s1763, 15
      %s1765 = scalar_select %p1764, %s1763, 15
      %s1766 = smul.addr %s1765, 8
      %s1767 = scalar_lea.vmem %s5, %s1766
      // Predicated region
      $region37: #{tpu_custom_call.1} parent=35 // pred_check
        %p1768 = pneg %p129
      $region38: #{tpu_custom_call.1} parent=35 // pred_check_branch
        %1770 = sbr.rel (%p1768) target = $region40
      $region39: #{tpu_custom_call.1} parent=35 // pred_region
        %s1771 = smul.u32 8, %s17
      $region40: #{tpu_custom_call.1} parent=35 // pred_fallthru
        _
      // Predicated region
      $region41: #{tpu_custom_call.1} parent=35 // pred_check
        %p1772 = pneg %p155
      $region42: #{tpu_custom_call.1} parent=35 // pred_check_branch
        %1774 = sbr.rel (%p1772) target = $region44
      $region43: #{tpu_custom_call.1} parent=35 // pred_region
        %s1775 = smul.u32 8, %s17
      $region44: #{tpu_custom_call.1} parent=35 // pred_fallthru
        _
    $region36: #{tpu_custom_call.1} parent=5 // pred_fallthru
      _
    %p1776 = scmp.le.s32.totalorder 2, %s12
    // Predicated region
    $region45: #{tpu_custom_call.1} parent=5 // pred_check
      %p1777 = pneg %p1776
    $region46: #{tpu_custom_call.1} parent=5 // pred_check_branch
      %1779 = sbr.rel (%p1777) target = $region48
    $region47: #{tpu_custom_call.1} parent=5 // pred_region
      %s1780 = ssub.s32 %s12, 2
      // Predicated region
      $region49: #{tpu_custom_call.1} parent=47 // pred_check
        %p1781 = pneg %p135
      $region50: #{tpu_custom_call.1} parent=47 // pred_check_branch
        %1783 = sbr.rel (%p1781) target = $region52
      $region51: #{tpu_custom_call.1} parent=47 // pred_region
        %s1784 = smul.u32 8, %s18
        %p1785 = scmp.lt.s32.totalorder %s1784, 15
        %s1786 = scalar_select %p1785, %s1784, 15
        %s1787 = smul.addr %s1786, 8
        %s1788 = scalar_lea.vmem %s4, %s1787
      $region52: #{tpu_custom_call.1} parent=47 // pred_fallthru
        _
      // Predicated region
      $region53: #{tpu_custom_call.1} parent=47 // pred_check
        %p1789 = pneg %p161
      $region54: #{tpu_custom_call.1} parent=47 // pred_check_branch
        %1791 = sbr.rel (%p1789) target = $region56
      $region55: #{tpu_custom_call.1} parent=47 // pred_region
        %s1792 = smul.u32 8, %s18
        %p1793 = scmp.lt.s32.totalorder %s1792, 15
        %s1794 = scalar_select %p1793, %s1792, 15
        %s1795 = smul.addr %s1794, 8
        %s1796 = scalar_lea.vmem %s5, %s1795
      $region56: #{tpu_custom_call.1} parent=47 // pred_fallthru
        _
    $region48: #{tpu_custom_call.1} parent=5 // pred_fallthru
      _
  $region6: #{tpu_custom_call.1} parent=0 // loop_footer
    %s16 = sadd.s32 1, %s12
  $region7: #{tpu_custom_call.1} parent=0 // loop_footer_branch
    %11 = sbr.rel target = $region3
  $region8: #{tpu_custom_call.1} parent=0 // loop_exit
    _

</llo_original>
